<compile_context>
chip_gen: v7x
topology: tpu7x:2x2x1
jax: 0.10.0
libtpu: 0.0.40
codegen_flags: <defaults>
</compile_context>

<pallas_src>
import numpy as np
import jax
import jax.numpy as jnp
from jax import lax
from jax.experimental import pallas as pl
from jax.experimental.pallas import tpu as pltpu


# ---------------------------------------------------------------------------
# Static geometry helpers (k=3, s=1, p=1 conv on a zero-halo padded volume)
# ---------------------------------------------------------------------------
def _geom(d, h, w):
    """lane j of a stage's conv output holds the voxel at padded flat index
    j + off;  m = number of lanes needed to cover every interior voxel."""
    dp, hp, wp = d + 2, h + 2, w + 2
    sp = dp * hp * wp
    off = hp * wp + wp + 1
    return dict(d=d, h=h, w=w, dp=dp, hp=hp, wp=wp, sp=sp, off=off, m=sp - 2 * off)


def _taps(geo):
    """(tap_index, lane_offset) for the 27 filter taps of a 3x3x3 conv."""
    for kd in range(3):
        for kh in range(3):
            for kw in range(3):
                yield (kd * 9 + kh * 3 + kw,
                       kd * geo["hp"] * geo["wp"] + kh * geo["wp"] + kw)


def _block_max(y, geo):
    """Separable 2x2x2 block max: result[:, j] = max over the 2x2x2 block whose
    first voxel sits at lane j of the conv output y (register-resident values,
    no scratch round-trip)."""
    m = y.shape[1]
    wp, hpwp = geo["wp"], geo["hp"] * geo["wp"]
    a = jnp.maximum(y[:, :m - 1], y[:, 1:])
    b = jnp.maximum(a[:, :m - 1 - wp], a[:, wp:])
    return jnp.maximum(b[:, :m - 1 - wp - hpwp], b[:, hpwp:])


# ---------------------------------------------------------------------------
# The fused kernel (one batch sample per grid step)
# ---------------------------------------------------------------------------
def _make_kernel(geo1, geo2, geo3, c1, c2, c3, num_classes):
    m1, m2, m3 = geo1["m"], geo2["m"], geo3["m"]

    def kernel(x_ref, w1_ref, w2_ref, w3_ref, bn_ref, dm1_ref, dm2_ref,
               sel_ref, fc_ref, out_ref, p1_ref, p2_ref, p3_ref):
        # ---------- stage 1: conv1 (single im2col dot) + BN + ReLU ----------
        xv = x_ref[0]                                         # (1, sp1) f32
        for tap, o in _taps(geo1):                            # 27 row copies
            p1_ref[tap:tap + 1, :] = xv[:, o:o + m1]
        acc1 = jnp.dot(w1_ref[...], p1_ref[...],
                       preferred_element_type=jnp.float32)    # (c1, m1)
        y1 = jnp.maximum(acc1 * bn_ref[:c1, 0:1] + bn_ref[:c1, 1:2], 0.0)
        # maxpool(2) + halo-preserving scatter as ONE decimation matmul
        apt2 = jnp.dot(_block_max(y1, geo1).astype(jnp.bfloat16), dm1_ref[...],
                       preferred_element_type=jnp.float32
                       ).astype(jnp.bfloat16)                 # (c1, sp2)

        # ---------- stage 2: conv2 + BN + ReLU + maxpool ---------------------
        for tap, o in _taps(geo2):                            # 27 block copies
            p2_ref[tap * c1:(tap + 1) * c1, :] = apt2[:, o:o + m2]
        acc2 = jnp.dot(w2_ref[...], p2_ref[...],
                       preferred_element_type=jnp.float32)    # (c2, m2)
        y2 = jnp.maximum(acc2 * bn_ref[:c2, 2:3] + bn_ref[:c2, 3:4], 0.0)
        apt3 = jnp.dot(_block_max(y2, geo2).astype(jnp.bfloat16), dm2_ref[...],
                       preferred_element_type=jnp.float32
                       ).astype(jnp.bfloat16)                 # (c2, sp3)

        # ---------- stage 3: conv3 + BN + ReLU + AdaptiveAvgPool + FC --------
        for tap, o in _taps(geo3):
            p3_ref[tap * c2:(tap + 1) * c2, :] = apt3[:, o:o + m3]
        acc3 = jnp.dot(w3_ref[...], p3_ref[...],
                       preferred_element_type=jnp.float32)    # (c3, m3)
        y3 = jnp.maximum(acc3 * bn_ref[:c3, 4:5] + bn_ref[:c3, 5:6], 0.0)
        # AdaptiveAvgPool3d((1,1,1)): masked mean over the interior lanes
        pooled = jnp.sum(y3 * sel_ref[...], axis=1, keepdims=True)   # (c3, 1)
        logits = (jnp.dot(fc_ref[:, :c3], pooled,
                          preferred_element_type=jnp.float32)
                  + fc_ref[:, c3:c3 + 1])                     # (cls, 1)
        # lane-dense per-sample output tile; host reads lane 0
        out_ref[...] = jnp.broadcast_to(logits, (1, num_classes, 128))

    return kernel


# ---------------------------------------------------------------------------
# Host-side constant builders (static shapes, tiny)
# ---------------------------------------------------------------------------
def _pool_matrix(geo, geo_next):
    """0/1 matrix that decimates the 2x2x2 block-max by 2 in every axis and
    scatters the result into the next stage's zero-halo padded volume."""
    bm_len = geo["m"] - 1 - geo["wp"] - geo["hp"] * geo["wp"]
    dm = np.zeros((bm_len, geo_next["sp"]), np.float32)
    hpwp, wp = geo["hp"] * geo["wp"], geo["wp"]
    hpwp2, wp2 = geo_next["hp"] * geo_next["wp"], geo_next["wp"]
    for di in range(geo["d"] // 2):
        for hi in range(geo["h"] // 2):
            for wi in range(geo["w"] // 2):
                src = ((2 * di + 1) * hpwp + (2 * hi + 1) * wp
                       + (2 * wi + 1)) - geo["off"]
                dst = (di + 1) * hpwp2 + (hi + 1) * wp2 + (wi + 1)
                dm[src, dst] = 1.0
    return jnp.asarray(dm, jnp.bfloat16)


def _avg_sel(geo):
    """(1, m) row with 1/(D*H*W) at every interior-voxel lane (AdaptiveAvgPool)."""
    sel = np.zeros((1, geo["m"]), np.float32)
    inv = 1.0 / float(geo["d"] * geo["h"] * geo["w"])
    hpwp, wp = geo["hp"] * geo["wp"], geo["wp"]
    for di in range(geo["d"]):
        for hi in range(geo["h"]):
            for wi in range(geo["w"]):
                q = (di + 1) * hpwp + (hi + 1) * wp + (wi + 1)
                sel[0, q - geo["off"]] = inv
    return jnp.asarray(sel)


# ---------------------------------------------------------------------------
# Forward pass (matches Simple3DCNN.forward, eval-mode BN)
# ---------------------------------------------------------------------------
@jax.jit
def forward(params, x):
    n, cin, d, h, w = x.shape
    assert cin == 1 and d % 4 == 0 and h % 4 == 0 and w % 4 == 0
    g1 = _geom(d, h, w)
    g2 = _geom(d // 2, h // 2, w // 2)
    g3 = _geom(d // 4, h // 4, w // 4)
    c1, c2, c3 = params["w1"].shape[0], params["w2"].shape[0], params["w3"].shape[0]
    ncls = params["fcw"].shape[0]

    # zero-halo padded, flattened per-sample volumes
    xp = jnp.pad(x[:, 0], ((0, 0), (1, 1), (1, 1), (1, 1)))
    x_flat = xp.reshape(n, 1, g1["sp"]).astype(jnp.float32)

    # conv weights as (Cout, 27*Cin) im2col matrices (tap-major, cin-minor cols)
    w1m = params["w1"].reshape(c1, 27).astype(jnp.float32)
    w2m = jnp.transpose(params["w2"], (0, 2, 3, 4, 1)).reshape(c2, 27 * c1
                                                               ).astype(jnp.bfloat16)
    w3m = jnp.transpose(params["w3"], (0, 2, 3, 4, 1)).reshape(c3, 27 * c2
                                                               ).astype(jnp.bfloat16)

    # fold conv bias + eval-mode BN into one packed (c3, 6) scale/shift array
    def fold(b, gamma, beta, mean, var, eps=1e-5):
        s = gamma / jnp.sqrt(var + eps)
        return s, (b - mean) * s + beta

    s1, t1 = fold(params["b1"], params["g1"], params["be1"], params["m1"], params["v1"])
    s2, t2 = fold(params["b2"], params["g2"], params["be2"], params["m2"], params["v2"])
    s3, t3 = fold(params["b3"], params["g3"], params["be3"], params["m3"], params["v3"])

    def col(v):
        return jnp.pad(v, (0, c3 - v.shape[0])).reshape(c3, 1)

    bn_all = jnp.concatenate(
        [col(s1), col(t1), col(s2), col(t2), col(s3), col(t3)], axis=1)  # (64, 6)

    dm1 = _pool_matrix(g1, g2)          # (667, sp2) bf16
    dm2 = _pool_matrix(g2, g3)          # (87,  sp3) bf16
    sel3 = _avg_sel(g3)                 # (1, m3)    f32
    fc_aug = jnp.concatenate(
        [params["fcw"], params["fcb"].reshape(-1, 1)], axis=1)           # (cls, 65)

    out = pl.pallas_call(
        _make_kernel(g1, g2, g3, c1, c2, c3, ncls),
        out_shape=jax.ShapeDtypeStruct((n, ncls, 128), jnp.float32),
        grid=(n,),
        in_specs=[
            pl.BlockSpec((1, 1, g1["sp"]), lambda i: (i, 0, 0)),   # x (per sample)
            pl.BlockSpec(w1m.shape, lambda i: (0, 0)),
            pl.BlockSpec(w2m.shape, lambda i: (0, 0)),
            pl.BlockSpec(w3m.shape, lambda i: (0, 0)),
            pl.BlockSpec(bn_all.shape, lambda i: (0, 0)),
            pl.BlockSpec(dm1.shape, lambda i: (0, 0)),
            pl.BlockSpec(dm2.shape, lambda i: (0, 0)),
            pl.BlockSpec(sel3.shape, lambda i: (0, 0)),
            pl.BlockSpec(fc_aug.shape, lambda i: (0, 0)),
        ],
        out_specs=pl.BlockSpec((1, ncls, 128), lambda i: (i, 0, 0)),
        scratch_shapes=[
            pltpu.VMEM((27, g1["m"]), jnp.float32),          # conv1 im2col patch
            pltpu.VMEM((27 * c1, g2["m"]), jnp.bfloat16),    # conv2 im2col patch
            pltpu.VMEM((27 * c2, g3["m"]), jnp.bfloat16),    # conv3 im2col patch
        ],
        compiler_params=pltpu.CompilerParams(
            dimension_semantics=("parallel",)),
    )(x_flat, w1m, w2m, w3m, bn_all, dm1, dm2, sel3, fc_aug)
    return out[:, :, 0]                                       # (N, num_classes)


# ---------------------------------------------------------------------------
# Pure-JAX reference (for a numerical sanity check against the fused kernel)
# ---------------------------------------------------------------------------
@jax.jit
def _reference(p, x):
    dn = ("NCDHW", "OIDHW", "NCDHW")

    def block(x, w, b, g, be, m, v):
        y = lax.conv_general_dilated(x, w, (1, 1, 1),
                                     ((1, 1), (1, 1), (1, 1)),
                                     dimension_numbers=dn)
        y = y + b.reshape(1, -1, 1, 1, 1)
        s = (g / jnp.sqrt(v + 1e-5)).reshape(1, -1, 1, 1, 1)
        y = (y - m.reshape(1, -1, 1, 1, 1)) * s + be.reshape(1, -1, 1, 1, 1)
        return jnp.maximum(y, 0.0)

    def pool2(y):
        return lax.reduce_window(y, -jnp.inf, lax.max,
                                 (1, 1, 2, 2, 2), (1, 1, 2, 2, 2), "VALID")

    y = pool2(block(x, p["w1"], p["b1"], p["g1"], p["be1"], p["m1"], p["v1"]))
    y = pool2(block(y, p["w2"], p["b2"], p["g2"], p["be2"], p["m2"], p["v2"]))
    y = block(y, p["w3"], p["b3"], p["g3"], p["be3"], p["m3"], p["v3"])
    pooled = jnp.mean(y, axis=(2, 3, 4))
    return pooled @ p["fcw"].T + p["fcb"]


# ---------------------------------------------------------------------------
# Parameters (deterministic synthetic init matching the PyTorch module shapes)
# ---------------------------------------------------------------------------
def init_params(key, num_classes=3):
    ks = jax.random.split(key, 12)

    def conv_w(k, cout, cin):
        return 0.1 * jax.random.normal(k, (cout, cin, 3, 3, 3), jnp.float32)

    def bn(k, c):
        k1, k2, k3, k4 = jax.random.split(k, 4)
        gamma = 1.0 + 0.1 * jax.random.normal(k1, (c,), jnp.float32)
        beta = 0.1 * jax.random.normal(k2, (c,), jnp.float32)
        mean = 0.05 * jax.random.normal(k3, (c,), jnp.float32)
        var = 1.0 + 0.1 * jax.random.uniform(k4, (c,), jnp.float32)
        return gamma, beta, mean, var

    p = {}
    p["w1"] = conv_w(ks[0], 16, 1)
    p["b1"] = 0.05 * jax.random.normal(ks[1], (16,), jnp.float32)
    p["g1"], p["be1"], p["m1"], p["v1"] = bn(ks[2], 16)
    p["w2"] = conv_w(ks[3], 32, 16)
    p["b2"] = 0.05 * jax.random.normal(ks[4], (32,), jnp.float32)
    p["g2"], p["be2"], p["m2"], p["v2"] = bn(ks[5], 32)
    p["w3"] = conv_w(ks[6], 64, 32)
    p["b3"] = 0.05 * jax.random.normal(ks[7], (64,), jnp.float32)
    p["g3"], p["be3"], p["m3"], p["v3"] = bn(ks[8], 64)
    p["fcw"] = 0.1 * jax.random.normal(ks[9], (num_classes, 64), jnp.float32)
    p["fcb"] = 0.05 * jax.random.normal(ks[10], (num_classes,), jnp.float32)
    return p


if __name__ == "__main__":
    key = jax.random.PRNGKey(0)
    pkey, xkey = jax.random.split(key)
    params = init_params(pkey, num_classes=3)
    # PyTorch input layout NCDHW: (batch=2, channels=1, D=H=W=8)
    x = jax.random.normal(xkey, (2, 1, 8, 8, 8), jnp.float32)

    out = forward(params, x)
    jax.block_until_ready(out)
    assert out.shape == (2, 3), out.shape
    assert bool(jnp.all(jnp.isfinite(out)))

    # numerical sanity check (tolerance covers bf16 conv2/conv3 operands)
    ref = _reference(params, x)
    np.testing.assert_allclose(np.asarray(out), np.asarray(ref),
                               rtol=1e-1, atol=1e-1)
    print("KERNEL_OK")
</pallas_src>

<mosaic_0001>
module attributes {stable_mosaic.version = 11 : i64} {
  func.func @kernel(%arg0: i32, %arg1: memref<1x1x1000xf32, #tpu.memory_space<vmem>>, %arg2: memref<16x27xf32, #tpu.memory_space<vmem>>, %arg3: memref<32x432xbf16, #tpu.memory_space<vmem>>, %arg4: memref<64x864xbf16, #tpu.memory_space<vmem>>, %arg5: memref<64x6xf32, #tpu.memory_space<vmem>>, %arg6: memref<667x216xbf16, #tpu.memory_space<vmem>>, %arg7: memref<87x64xbf16, #tpu.memory_space<vmem>>, %arg8: memref<1x22xf32, #tpu.memory_space<vmem>>, %arg9: memref<3x65xf32, #tpu.memory_space<vmem>>, %arg10: memref<1x3x128xf32, #tpu.memory_space<vmem>>, %arg11: memref<27x778xf32, #tpu.memory_space<vmem>>, %arg12: memref<432x130xbf16, #tpu.memory_space<vmem>>, %arg13: memref<864x22xbf16, #tpu.memory_space<vmem>>) attributes {dimension_semantics = [#tpu.dimension_semantics<parallel>], iteration_bounds = array<i64: 2>, scalar_prefetch = 0 : i64, scratch_operands = 3 : i64, tpu.core_type = #tpu.core_type<tc>, window_params = [{transform_indices = @transform_0, window_bounds = array<i64: 1, 1, 1000>}, {pipeline_mode = #tpu.pipeline_mode<synchronous>, transform_indices = @transform_1, window_bounds = array<i64: 16, 27>}, {pipeline_mode = #tpu.pipeline_mode<synchronous>, transform_indices = @transform_2, window_bounds = array<i64: 32, 432>}, {pipeline_mode = #tpu.pipeline_mode<synchronous>, transform_indices = @transform_3, window_bounds = array<i64: 64, 864>}, {pipeline_mode = #tpu.pipeline_mode<synchronous>, transform_indices = @transform_4, window_bounds = array<i64: 64, 6>}, {pipeline_mode = #tpu.pipeline_mode<synchronous>, transform_indices = @transform_5, window_bounds = array<i64: 667, 216>}, {pipeline_mode = #tpu.pipeline_mode<synchronous>, transform_indices = @transform_6, window_bounds = array<i64: 87, 64>}, {pipeline_mode = #tpu.pipeline_mode<synchronous>, transform_indices = @transform_7, window_bounds = array<i64: 1, 22>}, {pipeline_mode = #tpu.pipeline_mode<synchronous>, transform_indices = @transform_8, window_bounds = array<i64: 3, 65>}, {transform_indices = @transform_9, window_bounds = array<i64: 1, 3, 128>}]} {
    %c0 = arith.constant 0 : index
    %c0_0 = arith.constant 0 : index
    %c0_1 = arith.constant 0 : index
    %0 = vector.load %arg1[%c0, %c0_0, %c0_1] : memref<1x1x1000xf32, #tpu.memory_space<vmem>>, vector<1x1x1000xf32>
    %1 = vector.shape_cast %0 : vector<1x1x1000xf32> to vector<1x1000xf32>
    %2 = vector.extract_strided_slice %1 {offsets = [0, 0], sizes = [1, 778], strides = [1, 1]} : vector<1x1000xf32> to vector<1x778xf32>
    %c0_2 = arith.constant 0 : index
    %c0_3 = arith.constant 0 : index
    %3 = vector.load %arg11[%c0_2, %c0_3] : memref<27x778xf32, #tpu.memory_space<vmem>>, vector<1x778xf32>
    tpu.vector_store %arg11[%c0_2, %c0_3], %2 {strides = array<i32>} : memref<27x778xf32, #tpu.memory_space<vmem>>, vector<1x778xf32>,
    %4 = vector.extract_strided_slice %1 {offsets = [0, 1], sizes = [1, 778], strides = [1, 1]} : vector<1x1000xf32> to vector<1x778xf32>
    %c1 = arith.constant 1 : index
    %c0_4 = arith.constant 0 : index
    %5 = vector.load %arg11[%c1, %c0_4] : memref<27x778xf32, #tpu.memory_space<vmem>>, vector<1x778xf32>
    tpu.vector_store %arg11[%c1, %c0_4], %4 {strides = array<i32>} : memref<27x778xf32, #tpu.memory_space<vmem>>, vector<1x778xf32>,
    %6 = vector.extract_strided_slice %1 {offsets = [0, 2], sizes = [1, 778], strides = [1, 1]} : vector<1x1000xf32> to vector<1x778xf32>
    %c2 = arith.constant 2 : index
    %c0_5 = arith.constant 0 : index
    %7 = vector.load %arg11[%c2, %c0_5] : memref<27x778xf32, #tpu.memory_space<vmem>>, vector<1x778xf32>
    tpu.vector_store %arg11[%c2, %c0_5], %6 {strides = array<i32>} : memref<27x778xf32, #tpu.memory_space<vmem>>, vector<1x778xf32>,
    %8 = vector.extract_strided_slice %1 {offsets = [0, 10], sizes = [1, 778], strides = [1, 1]} : vector<1x1000xf32> to vector<1x778xf32>
    %c3 = arith.constant 3 : index
    %c0_6 = arith.constant 0 : index
    %9 = vector.load %arg11[%c3, %c0_6] : memref<27x778xf32, #tpu.memory_space<vmem>>, vector<1x778xf32>
    tpu.vector_store %arg11[%c3, %c0_6], %8 {strides = array<i32>} : memref<27x778xf32, #tpu.memory_space<vmem>>, vector<1x778xf32>,
    %10 = vector.extract_strided_slice %1 {offsets = [0, 11], sizes = [1, 778], strides = [1, 1]} : vector<1x1000xf32> to vector<1x778xf32>
    %c4 = arith.constant 4 : index
    %c0_7 = arith.constant 0 : index
    %11 = vector.load %arg11[%c4, %c0_7] : memref<27x778xf32, #tpu.memory_space<vmem>>, vector<1x778xf32>
    tpu.vector_store %arg11[%c4, %c0_7], %10 {strides = array<i32>} : memref<27x778xf32, #tpu.memory_space<vmem>>, vector<1x778xf32>,
    %12 = vector.extract_strided_slice %1 {offsets = [0, 12], sizes = [1, 778], strides = [1, 1]} : vector<1x1000xf32> to vector<1x778xf32>
    %c5 = arith.constant 5 : index
    %c0_8 = arith.constant 0 : index
    %13 = vector.load %arg11[%c5, %c0_8] : memref<27x778xf32, #tpu.memory_space<vmem>>, vector<1x778xf32>
    tpu.vector_store %arg11[%c5, %c0_8], %12 {strides = array<i32>} : memref<27x778xf32, #tpu.memory_space<vmem>>, vector<1x778xf32>,
    %14 = vector.extract_strided_slice %1 {offsets = [0, 20], sizes = [1, 778], strides = [1, 1]} : vector<1x1000xf32> to vector<1x778xf32>
    %c6 = arith.constant 6 : index
    %c0_9 = arith.constant 0 : index
    %15 = vector.load %arg11[%c6, %c0_9] : memref<27x778xf32, #tpu.memory_space<vmem>>, vector<1x778xf32>
    tpu.vector_store %arg11[%c6, %c0_9], %14 {strides = array<i32>} : memref<27x778xf32, #tpu.memory_space<vmem>>, vector<1x778xf32>,
    %16 = vector.extract_strided_slice %1 {offsets = [0, 21], sizes = [1, 778], strides = [1, 1]} : vector<1x1000xf32> to vector<1x778xf32>
    %c7 = arith.constant 7 : index
    %c0_10 = arith.constant 0 : index
    %17 = vector.load %arg11[%c7, %c0_10] : memref<27x778xf32, #tpu.memory_space<vmem>>, vector<1x778xf32>
    tpu.vector_store %arg11[%c7, %c0_10], %16 {strides = array<i32>} : memref<27x778xf32, #tpu.memory_space<vmem>>, vector<1x778xf32>,
    %18 = vector.extract_strided_slice %1 {offsets = [0, 22], sizes = [1, 778], strides = [1, 1]} : vector<1x1000xf32> to vector<1x778xf32>
    %c8 = arith.constant 8 : index
    %c0_11 = arith.constant 0 : index
    %19 = vector.load %arg11[%c8, %c0_11] : memref<27x778xf32, #tpu.memory_space<vmem>>, vector<1x778xf32>
    tpu.vector_store %arg11[%c8, %c0_11], %18 {strides = array<i32>} : memref<27x778xf32, #tpu.memory_space<vmem>>, vector<1x778xf32>,
    %20 = vector.extract_strided_slice %1 {offsets = [0, 100], sizes = [1, 778], strides = [1, 1]} : vector<1x1000xf32> to vector<1x778xf32>
    %c9 = arith.constant 9 : index
    %c0_12 = arith.constant 0 : index
    %21 = vector.load %arg11[%c9, %c0_12] : memref<27x778xf32, #tpu.memory_space<vmem>>, vector<1x778xf32>
    tpu.vector_store %arg11[%c9, %c0_12], %20 {strides = array<i32>} : memref<27x778xf32, #tpu.memory_space<vmem>>, vector<1x778xf32>,
    %22 = vector.extract_strided_slice %1 {offsets = [0, 101], sizes = [1, 778], strides = [1, 1]} : vector<1x1000xf32> to vector<1x778xf32>
    %c10 = arith.constant 10 : index
    %c0_13 = arith.constant 0 : index
    %23 = vector.load %arg11[%c10, %c0_13] : memref<27x778xf32, #tpu.memory_space<vmem>>, vector<1x778xf32>
    tpu.vector_store %arg11[%c10, %c0_13], %22 {strides = array<i32>} : memref<27x778xf32, #tpu.memory_space<vmem>>, vector<1x778xf32>,
    %24 = vector.extract_strided_slice %1 {offsets = [0, 102], sizes = [1, 778], strides = [1, 1]} : vector<1x1000xf32> to vector<1x778xf32>
    %c11 = arith.constant 11 : index
    %c0_14 = arith.constant 0 : index
    %25 = vector.load %arg11[%c11, %c0_14] : memref<27x778xf32, #tpu.memory_space<vmem>>, vector<1x778xf32>
    tpu.vector_store %arg11[%c11, %c0_14], %24 {strides = array<i32>} : memref<27x778xf32, #tpu.memory_space<vmem>>, vector<1x778xf32>,
    %26 = vector.extract_strided_slice %1 {offsets = [0, 110], sizes = [1, 778], strides = [1, 1]} : vector<1x1000xf32> to vector<1x778xf32>
    %c12 = arith.constant 12 : index
    %c0_15 = arith.constant 0 : index
    %27 = vector.load %arg11[%c12, %c0_15] : memref<27x778xf32, #tpu.memory_space<vmem>>, vector<1x778xf32>
    tpu.vector_store %arg11[%c12, %c0_15], %26 {strides = array<i32>} : memref<27x778xf32, #tpu.memory_space<vmem>>, vector<1x778xf32>,
    %28 = vector.extract_strided_slice %1 {offsets = [0, 111], sizes = [1, 778], strides = [1, 1]} : vector<1x1000xf32> to vector<1x778xf32>
    %c13 = arith.constant 13 : index
    %c0_16 = arith.constant 0 : index
    %29 = vector.load %arg11[%c13, %c0_16] : memref<27x778xf32, #tpu.memory_space<vmem>>, vector<1x778xf32>
    tpu.vector_store %arg11[%c13, %c0_16], %28 {strides = array<i32>} : memref<27x778xf32, #tpu.memory_space<vmem>>, vector<1x778xf32>,
    %30 = vector.extract_strided_slice %1 {offsets = [0, 112], sizes = [1, 778], strides = [1, 1]} : vector<1x1000xf32> to vector<1x778xf32>
    %c14 = arith.constant 14 : index
    %c0_17 = arith.constant 0 : index
    %31 = vector.load %arg11[%c14, %c0_17] : memref<27x778xf32, #tpu.memory_space<vmem>>, vector<1x778xf32>
    tpu.vector_store %arg11[%c14, %c0_17], %30 {strides = array<i32>} : memref<27x778xf32, #tpu.memory_space<vmem>>, vector<1x778xf32>,
    %32 = vector.extract_strided_slice %1 {offsets = [0, 120], sizes = [1, 778], strides = [1, 1]} : vector<1x1000xf32> to vector<1x778xf32>
    %c15 = arith.constant 15 : index
    %c0_18 = arith.constant 0 : index
    %33 = vector.load %arg11[%c15, %c0_18] : memref<27x778xf32, #tpu.memory_space<vmem>>, vector<1x778xf32>
    tpu.vector_store %arg11[%c15, %c0_18], %32 {strides = array<i32>} : memref<27x778xf32, #tpu.memory_space<vmem>>, vector<1x778xf32>,
    %34 = vector.extract_strided_slice %1 {offsets = [0, 121], sizes = [1, 778], strides = [1, 1]} : vector<1x1000xf32> to vector<1x778xf32>
    %c16 = arith.constant 16 : index
    %c0_19 = arith.constant 0 : index
    %35 = vector.load %arg11[%c16, %c0_19] : memref<27x778xf32, #tpu.memory_space<vmem>>, vector<1x778xf32>
    tpu.vector_store %arg11[%c16, %c0_19], %34 {strides = array<i32>} : memref<27x778xf32, #tpu.memory_space<vmem>>, vector<1x778xf32>,
    %36 = vector.extract_strided_slice %1 {offsets = [0, 122], sizes = [1, 778], strides = [1, 1]} : vector<1x1000xf32> to vector<1x778xf32>
    %c17 = arith.constant 17 : index
    %c0_20 = arith.constant 0 : index
    %37 = vector.load %arg11[%c17, %c0_20] : memref<27x778xf32, #tpu.memory_space<vmem>>, vector<1x778xf32>
    tpu.vector_store %arg11[%c17, %c0_20], %36 {strides = array<i32>} : memref<27x778xf32, #tpu.memory_space<vmem>>, vector<1x778xf32>,
    %38 = vector.extract_strided_slice %1 {offsets = [0, 200], sizes = [1, 778], strides = [1, 1]} : vector<1x1000xf32> to vector<1x778xf32>
    %c18 = arith.constant 18 : index
    %c0_21 = arith.constant 0 : index
    %39 = vector.load %arg11[%c18, %c0_21] : memref<27x778xf32, #tpu.memory_space<vmem>>, vector<1x778xf32>
    tpu.vector_store %arg11[%c18, %c0_21], %38 {strides = array<i32>} : memref<27x778xf32, #tpu.memory_space<vmem>>, vector<1x778xf32>,
    %40 = vector.extract_strided_slice %1 {offsets = [0, 201], sizes = [1, 778], strides = [1, 1]} : vector<1x1000xf32> to vector<1x778xf32>
    %c19 = arith.constant 19 : index
    %c0_22 = arith.constant 0 : index
    %41 = vector.load %arg11[%c19, %c0_22] : memref<27x778xf32, #tpu.memory_space<vmem>>, vector<1x778xf32>
    tpu.vector_store %arg11[%c19, %c0_22], %40 {strides = array<i32>} : memref<27x778xf32, #tpu.memory_space<vmem>>, vector<1x778xf32>,
    %42 = vector.extract_strided_slice %1 {offsets = [0, 202], sizes = [1, 778], strides = [1, 1]} : vector<1x1000xf32> to vector<1x778xf32>
    %c20 = arith.constant 20 : index
    %c0_23 = arith.constant 0 : index
    %43 = vector.load %arg11[%c20, %c0_23] : memref<27x778xf32, #tpu.memory_space<vmem>>, vector<1x778xf32>
    tpu.vector_store %arg11[%c20, %c0_23], %42 {strides = array<i32>} : memref<27x778xf32, #tpu.memory_space<vmem>>, vector<1x778xf32>,
    %44 = vector.extract_strided_slice %1 {offsets = [0, 210], sizes = [1, 778], strides = [1, 1]} : vector<1x1000xf32> to vector<1x778xf32>
    %c21 = arith.constant 21 : index
    %c0_24 = arith.constant 0 : index
    %45 = vector.load %arg11[%c21, %c0_24] : memref<27x778xf32, #tpu.memory_space<vmem>>, vector<1x778xf32>
    tpu.vector_store %arg11[%c21, %c0_24], %44 {strides = array<i32>} : memref<27x778xf32, #tpu.memory_space<vmem>>, vector<1x778xf32>,
    %46 = vector.extract_strided_slice %1 {offsets = [0, 211], sizes = [1, 778], strides = [1, 1]} : vector<1x1000xf32> to vector<1x778xf32>
    %c22 = arith.constant 22 : index
    %c0_25 = arith.constant 0 : index
    %47 = vector.load %arg11[%c22, %c0_25] : memref<27x778xf32, #tpu.memory_space<vmem>>, vector<1x778xf32>
    tpu.vector_store %arg11[%c22, %c0_25], %46 {strides = array<i32>} : memref<27x778xf32, #tpu.memory_space<vmem>>, vector<1x778xf32>,
    %48 = vector.extract_strided_slice %1 {offsets = [0, 212], sizes = [1, 778], strides = [1, 1]} : vector<1x1000xf32> to vector<1x778xf32>
    %c23 = arith.constant 23 : index
    %c0_26 = arith.constant 0 : index
    %49 = vector.load %arg11[%c23, %c0_26] : memref<27x778xf32, #tpu.memory_space<vmem>>, vector<1x778xf32>
    tpu.vector_store %arg11[%c23, %c0_26], %48 {strides = array<i32>} : memref<27x778xf32, #tpu.memory_space<vmem>>, vector<1x778xf32>,
    %50 = vector.extract_strided_slice %1 {offsets = [0, 220], sizes = [1, 778], strides = [1, 1]} : vector<1x1000xf32> to vector<1x778xf32>
    %c24 = arith.constant 24 : index
    %c0_27 = arith.constant 0 : index
    %51 = vector.load %arg11[%c24, %c0_27] : memref<27x778xf32, #tpu.memory_space<vmem>>, vector<1x778xf32>
    tpu.vector_store %arg11[%c24, %c0_27], %50 {strides = array<i32>} : memref<27x778xf32, #tpu.memory_space<vmem>>, vector<1x778xf32>,
    %52 = vector.extract_strided_slice %1 {offsets = [0, 221], sizes = [1, 778], strides = [1, 1]} : vector<1x1000xf32> to vector<1x778xf32>
    %c25 = arith.constant 25 : index
    %c0_28 = arith.constant 0 : index
    %53 = vector.load %arg11[%c25, %c0_28] : memref<27x778xf32, #tpu.memory_space<vmem>>, vector<1x778xf32>
    tpu.vector_store %arg11[%c25, %c0_28], %52 {strides = array<i32>} : memref<27x778xf32, #tpu.memory_space<vmem>>, vector<1x778xf32>,
    %54 = vector.extract_strided_slice %1 {offsets = [0, 222], sizes = [1, 778], strides = [1, 1]} : vector<1x1000xf32> to vector<1x778xf32>
    %c26 = arith.constant 26 : index
    %c0_29 = arith.constant 0 : index
    %55 = vector.load %arg11[%c26, %c0_29] : memref<27x778xf32, #tpu.memory_space<vmem>>, vector<1x778xf32>
    tpu.vector_store %arg11[%c26, %c0_29], %54 {strides = array<i32>} : memref<27x778xf32, #tpu.memory_space<vmem>>, vector<1x778xf32>,
    %c0_30 = arith.constant 0 : index
    %c0_31 = arith.constant 0 : index
    %56 = vector.load %arg2[%c0_30, %c0_31] : memref<16x27xf32, #tpu.memory_space<vmem>>, vector<16x27xf32>
    %c0_32 = arith.constant 0 : index
    %c0_33 = arith.constant 0 : index
    %57 = vector.load %arg11[%c0_32, %c0_33] : memref<27x778xf32, #tpu.memory_space<vmem>>, vector<27x778xf32>
    %cst = arith.constant dense<0.000000e+00> : vector<16x778xf32>
    %58 = tpu.matmul %56, %57, %cst {dimension_numbers = #tpu.dot_dimension_numbers<[1], [0], [0], [1], [0, 0, 1, 1], [], []>} : vector<16x27xf32>, vector<27x778xf32>, vector<16x778xf32> -> vector<16x778xf32>
    %c0_34 = arith.constant 0 : index
    %c0_35 = arith.constant 0 : index
    %59 = vector.load %arg5[%c0_34, %c0_35] : memref<64x6xf32, #tpu.memory_space<vmem>>, vector<16x1xf32>
    %60 = vector.broadcast %59 : vector<16x1xf32> to vector<16x778xf32>
    %61 = arith.mulf %58, %60 : vector<16x778xf32>
    %c0_36 = arith.constant 0 : index
    %c1_37 = arith.constant 1 : index
    %62 = vector.load %arg5[%c0_36, %c1_37] : memref<64x6xf32, #tpu.memory_space<vmem>>, vector<16x1xf32>
    %63 = vector.broadcast %62 : vector<16x1xf32> to vector<16x778xf32>
    %64 = arith.addf %61, %63 : vector<16x778xf32>
    %cst_38 = arith.constant 0.000000e+00 : f32
    %65 = vector.broadcast %cst_38 : f32 to vector<16x778xf32>
    %66 = arith.maximumf %64, %65 : vector<16x778xf32>
    %67 = vector.extract_strided_slice %66 {offsets = [0, 0], sizes = [16, 777], strides = [1, 1]} : vector<16x778xf32> to vector<16x777xf32>
    %68 = vector.extract_strided_slice %66 {offsets = [0, 1], sizes = [16, 777], strides = [1, 1]} : vector<16x778xf32> to vector<16x777xf32>
    %69 = arith.maximumf %67, %68 : vector<16x777xf32>
    %70 = vector.extract_strided_slice %69 {offsets = [0, 0], sizes = [16, 767], strides = [1, 1]} : vector<16x777xf32> to vector<16x767xf32>
    %71 = vector.extract_strided_slice %69 {offsets = [0, 10], sizes = [16, 767], strides = [1, 1]} : vector<16x777xf32> to vector<16x767xf32>
    %72 = arith.maximumf %70, %71 : vector<16x767xf32>
    %73 = vector.extract_strided_slice %72 {offsets = [0, 0], sizes = [16, 667], strides = [1, 1]} : vector<16x767xf32> to vector<16x667xf32>
    %74 = vector.extract_strided_slice %72 {offsets = [0, 100], sizes = [16, 667], strides = [1, 1]} : vector<16x767xf32> to vector<16x667xf32>
    %75 = arith.maximumf %73, %74 : vector<16x667xf32>
    %76 = arith.truncf %75 : vector<16x667xf32> to vector<16x667xbf16>
    %c0_39 = arith.constant 0 : index
    %c0_40 = arith.constant 0 : index
    %77 = vector.load %arg6[%c0_39, %c0_40] : memref<667x216xbf16, #tpu.memory_space<vmem>>, vector<667x216xbf16>
    %cst_41 = arith.constant dense<0.000000e+00> : vector<16x216xf32>
    %78 = tpu.matmul %76, %77, %cst_41 {dimension_numbers = #tpu.dot_dimension_numbers<[1], [0], [0], [1], [0, 0, 1, 1], [], []>} : vector<16x667xbf16>, vector<667x216xbf16>, vector<16x216xf32> -> vector<16x216xf32>
    %79 = arith.truncf %78 : vector<16x216xf32> to vector<16x216xbf16>
    %80 = vector.extract_strided_slice %79 {offsets = [0, 0], sizes = [16, 130], strides = [1, 1]} : vector<16x216xbf16> to vector<16x130xbf16>
    %c0_42 = arith.constant 0 : index
    %c0_43 = arith.constant 0 : index
    %81 = vector.load %arg12[%c0_42, %c0_43] : memref<432x130xbf16, #tpu.memory_space<vmem>>, vector<16x130xbf16>
    tpu.vector_store %arg12[%c0_42, %c0_43], %80 {strides = array<i32>} : memref<432x130xbf16, #tpu.memory_space<vmem>>, vector<16x130xbf16>,
    %82 = vector.extract_strided_slice %79 {offsets = [0, 1], sizes = [16, 130], strides = [1, 1]} : vector<16x216xbf16> to vector<16x130xbf16>
    %c16_44 = arith.constant 16 : index
    %c0_45 = arith.constant 0 : index
    %83 = vector.load %arg12[%c16_44, %c0_45] : memref<432x130xbf16, #tpu.memory_space<vmem>>, vector<16x130xbf16>
    tpu.vector_store %arg12[%c16_44, %c0_45], %82 {strides = array<i32>} : memref<432x130xbf16, #tpu.memory_space<vmem>>, vector<16x130xbf16>,
    %84 = vector.extract_strided_slice %79 {offsets = [0, 2], sizes = [16, 130], strides = [1, 1]} : vector<16x216xbf16> to vector<16x130xbf16>
    %c32 = arith.constant 32 : index
    %c0_46 = arith.constant 0 : index
    %85 = vector.load %arg12[%c32, %c0_46] : memref<432x130xbf16, #tpu.memory_space<vmem>>, vector<16x130xbf16>
    tpu.vector_store %arg12[%c32, %c0_46], %84 {strides = array<i32>} : memref<432x130xbf16, #tpu.memory_space<vmem>>, vector<16x130xbf16>,
    %86 = vector.extract_strided_slice %79 {offsets = [0, 6], sizes = [16, 130], strides = [1, 1]} : vector<16x216xbf16> to vector<16x130xbf16>
    %c48 = arith.constant 48 : index
    %c0_47 = arith.constant 0 : index
    %87 = vector.load %arg12[%c48, %c0_47] : memref<432x130xbf16, #tpu.memory_space<vmem>>, vector<16x130xbf16>
    tpu.vector_store %arg12[%c48, %c0_47], %86 {strides = array<i32>} : memref<432x130xbf16, #tpu.memory_space<vmem>>, vector<16x130xbf16>,
    %88 = vector.extract_strided_slice %79 {offsets = [0, 7], sizes = [16, 130], strides = [1, 1]} : vector<16x216xbf16> to vector<16x130xbf16>
    %c64 = arith.constant 64 : index
    %c0_48 = arith.constant 0 : index
    %89 = vector.load %arg12[%c64, %c0_48] : memref<432x130xbf16, #tpu.memory_space<vmem>>, vector<16x130xbf16>
    tpu.vector_store %arg12[%c64, %c0_48], %88 {strides = array<i32>} : memref<432x130xbf16, #tpu.memory_space<vmem>>, vector<16x130xbf16>,
    %90 = vector.extract_strided_slice %79 {offsets = [0, 8], sizes = [16, 130], strides = [1, 1]} : vector<16x216xbf16> to vector<16x130xbf16>
    %c80 = arith.constant 80 : index
    %c0_49 = arith.constant 0 : index
    %91 = vector.load %arg12[%c80, %c0_49] : memref<432x130xbf16, #tpu.memory_space<vmem>>, vector<16x130xbf16>
    tpu.vector_store %arg12[%c80, %c0_49], %90 {strides = array<i32>} : memref<432x130xbf16, #tpu.memory_space<vmem>>, vector<16x130xbf16>,
    %92 = vector.extract_strided_slice %79 {offsets = [0, 12], sizes = [16, 130], strides = [1, 1]} : vector<16x216xbf16> to vector<16x130xbf16>
    %c96 = arith.constant 96 : index
    %c0_50 = arith.constant 0 : index
    %93 = vector.load %arg12[%c96, %c0_50] : memref<432x130xbf16, #tpu.memory_space<vmem>>, vector<16x130xbf16>
    tpu.vector_store %arg12[%c96, %c0_50], %92 {strides = array<i32>} : memref<432x130xbf16, #tpu.memory_space<vmem>>, vector<16x130xbf16>,
    %94 = vector.extract_strided_slice %79 {offsets = [0, 13], sizes = [16, 130], strides = [1, 1]} : vector<16x216xbf16> to vector<16x130xbf16>
    %c112 = arith.constant 112 : index
    %c0_51 = arith.constant 0 : index
    %95 = vector.load %arg12[%c112, %c0_51] : memref<432x130xbf16, #tpu.memory_space<vmem>>, vector<16x130xbf16>
    tpu.vector_store %arg12[%c112, %c0_51], %94 {strides = array<i32>} : memref<432x130xbf16, #tpu.memory_space<vmem>>, vector<16x130xbf16>,
    %96 = vector.extract_strided_slice %79 {offsets = [0, 14], sizes = [16, 130], strides = [1, 1]} : vector<16x216xbf16> to vector<16x130xbf16>
    %c128 = arith.constant 128 : index
    %c0_52 = arith.constant 0 : index
    %97 = vector.load %arg12[%c128, %c0_52] : memref<432x130xbf16, #tpu.memory_space<vmem>>, vector<16x130xbf16>
    tpu.vector_store %arg12[%c128, %c0_52], %96 {strides = array<i32>} : memref<432x130xbf16, #tpu.memory_space<vmem>>, vector<16x130xbf16>,
    %98 = vector.extract_strided_slice %79 {offsets = [0, 36], sizes = [16, 130], strides = [1, 1]} : vector<16x216xbf16> to vector<16x130xbf16>
    %c144 = arith.constant 144 : index
    %c0_53 = arith.constant 0 : index
    %99 = vector.load %arg12[%c144, %c0_53] : memref<432x130xbf16, #tpu.memory_space<vmem>>, vector<16x130xbf16>
    tpu.vector_store %arg12[%c144, %c0_53], %98 {strides = array<i32>} : memref<432x130xbf16, #tpu.memory_space<vmem>>, vector<16x130xbf16>,
    %100 = vector.extract_strided_slice %79 {offsets = [0, 37], sizes = [16, 130], strides = [1, 1]} : vector<16x216xbf16> to vector<16x130xbf16>
    %c160 = arith.constant 160 : index
    %c0_54 = arith.constant 0 : index
    %101 = vector.load %arg12[%c160, %c0_54] : memref<432x130xbf16, #tpu.memory_space<vmem>>, vector<16x130xbf16>
    tpu.vector_store %arg12[%c160, %c0_54], %100 {strides = array<i32>} : memref<432x130xbf16, #tpu.memory_space<vmem>>, vector<16x130xbf16>,
    %102 = vector.extract_strided_slice %79 {offsets = [0, 38], sizes = [16, 130], strides = [1, 1]} : vector<16x216xbf16> to vector<16x130xbf16>
    %c176 = arith.constant 176 : index
    %c0_55 = arith.constant 0 : index
    %103 = vector.load %arg12[%c176, %c0_55] : memref<432x130xbf16, #tpu.memory_space<vmem>>, vector<16x130xbf16>
    tpu.vector_store %arg12[%c176, %c0_55], %102 {strides = array<i32>} : memref<432x130xbf16, #tpu.memory_space<vmem>>, vector<16x130xbf16>,
    %104 = vector.extract_strided_slice %79 {offsets = [0, 42], sizes = [16, 130], strides = [1, 1]} : vector<16x216xbf16> to vector<16x130xbf16>
    %c192 = arith.constant 192 : index
    %c0_56 = arith.constant 0 : index
    %105 = vector.load %arg12[%c192, %c0_56] : memref<432x130xbf16, #tpu.memory_space<vmem>>, vector<16x130xbf16>
    tpu.vector_store %arg12[%c192, %c0_56], %104 {strides = array<i32>} : memref<432x130xbf16, #tpu.memory_space<vmem>>, vector<16x130xbf16>,
    %106 = vector.extract_strided_slice %79 {offsets = [0, 43], sizes = [16, 130], strides = [1, 1]} : vector<16x216xbf16> to vector<16x130xbf16>
    %c208 = arith.constant 208 : index
    %c0_57 = arith.constant 0 : index
    %107 = vector.load %arg12[%c208, %c0_57] : memref<432x130xbf16, #tpu.memory_space<vmem>>, vector<16x130xbf16>
    tpu.vector_store %arg12[%c208, %c0_57], %106 {strides = array<i32>} : memref<432x130xbf16, #tpu.memory_space<vmem>>, vector<16x130xbf16>,
    %108 = vector.extract_strided_slice %79 {offsets = [0, 44], sizes = [16, 130], strides = [1, 1]} : vector<16x216xbf16> to vector<16x130xbf16>
    %c224 = arith.constant 224 : index
    %c0_58 = arith.constant 0 : index
    %109 = vector.load %arg12[%c224, %c0_58] : memref<432x130xbf16, #tpu.memory_space<vmem>>, vector<16x130xbf16>
    tpu.vector_store %arg12[%c224, %c0_58], %108 {strides = array<i32>} : memref<432x130xbf16, #tpu.memory_space<vmem>>, vector<16x130xbf16>,
    %110 = vector.extract_strided_slice %79 {offsets = [0, 48], sizes = [16, 130], strides = [1, 1]} : vector<16x216xbf16> to vector<16x130xbf16>
    %c240 = arith.constant 240 : index
    %c0_59 = arith.constant 0 : index
    %111 = vector.load %arg12[%c240, %c0_59] : memref<432x130xbf16, #tpu.memory_space<vmem>>, vector<16x130xbf16>
    tpu.vector_store %arg12[%c240, %c0_59], %110 {strides = array<i32>} : memref<432x130xbf16, #tpu.memory_space<vmem>>, vector<16x130xbf16>,
    %112 = vector.extract_strided_slice %79 {offsets = [0, 49], sizes = [16, 130], strides = [1, 1]} : vector<16x216xbf16> to vector<16x130xbf16>
    %c256 = arith.constant 256 : index
    %c0_60 = arith.constant 0 : index
    %113 = vector.load %arg12[%c256, %c0_60] : memref<432x130xbf16, #tpu.memory_space<vmem>>, vector<16x130xbf16>
    tpu.vector_store %arg12[%c256, %c0_60], %112 {strides = array<i32>} : memref<432x130xbf16, #tpu.memory_space<vmem>>, vector<16x130xbf16>,
    %114 = vector.extract_strided_slice %79 {offsets = [0, 50], sizes = [16, 130], strides = [1, 1]} : vector<16x216xbf16> to vector<16x130xbf16>
    %c272 = arith.constant 272 : index
    %c0_61 = arith.constant 0 : index
    %115 = vector.load %arg12[%c272, %c0_61] : memref<432x130xbf16, #tpu.memory_space<vmem>>, vector<16x130xbf16>
    tpu.vector_store %arg12[%c272, %c0_61], %114 {strides = array<i32>} : memref<432x130xbf16, #tpu.memory_space<vmem>>, vector<16x130xbf16>,
    %116 = vector.extract_strided_slice %79 {offsets = [0, 72], sizes = [16, 130], strides = [1, 1]} : vector<16x216xbf16> to vector<16x130xbf16>
    %c288 = arith.constant 288 : index
    %c0_62 = arith.constant 0 : index
    %117 = vector.load %arg12[%c288, %c0_62] : memref<432x130xbf16, #tpu.memory_space<vmem>>, vector<16x130xbf16>
    tpu.vector_store %arg12[%c288, %c0_62], %116 {strides = array<i32>} : memref<432x130xbf16, #tpu.memory_space<vmem>>, vector<16x130xbf16>,
    %118 = vector.extract_strided_slice %79 {offsets = [0, 73], sizes = [16, 130], strides = [1, 1]} : vector<16x216xbf16> to vector<16x130xbf16>
    %c304 = arith.constant 304 : index
    %c0_63 = arith.constant 0 : index
    %119 = vector.load %arg12[%c304, %c0_63] : memref<432x130xbf16, #tpu.memory_space<vmem>>, vector<16x130xbf16>
    tpu.vector_store %arg12[%c304, %c0_63], %118 {strides = array<i32>} : memref<432x130xbf16, #tpu.memory_space<vmem>>, vector<16x130xbf16>,
    %120 = vector.extract_strided_slice %79 {offsets = [0, 74], sizes = [16, 130], strides = [1, 1]} : vector<16x216xbf16> to vector<16x130xbf16>
    %c320 = arith.constant 320 : index
    %c0_64 = arith.constant 0 : index
    %121 = vector.load %arg12[%c320, %c0_64] : memref<432x130xbf16, #tpu.memory_space<vmem>>, vector<16x130xbf16>
    tpu.vector_store %arg12[%c320, %c0_64], %120 {strides = array<i32>} : memref<432x130xbf16, #tpu.memory_space<vmem>>, vector<16x130xbf16>,
    %122 = vector.extract_strided_slice %79 {offsets = [0, 78], sizes = [16, 130], strides = [1, 1]} : vector<16x216xbf16> to vector<16x130xbf16>
    %c336 = arith.constant 336 : index
    %c0_65 = arith.constant 0 : index
    %123 = vector.load %arg12[%c336, %c0_65] : memref<432x130xbf16, #tpu.memory_space<vmem>>, vector<16x130xbf16>
    tpu.vector_store %arg12[%c336, %c0_65], %122 {strides = array<i32>} : memref<432x130xbf16, #tpu.memory_space<vmem>>, vector<16x130xbf16>,
    %124 = vector.extract_strided_slice %79 {offsets = [0, 79], sizes = [16, 130], strides = [1, 1]} : vector<16x216xbf16> to vector<16x130xbf16>
    %c352 = arith.constant 352 : index
    %c0_66 = arith.constant 0 : index
    %125 = vector.load %arg12[%c352, %c0_66] : memref<432x130xbf16, #tpu.memory_space<vmem>>, vector<16x130xbf16>
    tpu.vector_store %arg12[%c352, %c0_66], %124 {strides = array<i32>} : memref<432x130xbf16, #tpu.memory_space<vmem>>, vector<16x130xbf16>,
    %126 = vector.extract_strided_slice %79 {offsets = [0, 80], sizes = [16, 130], strides = [1, 1]} : vector<16x216xbf16> to vector<16x130xbf16>
    %c368 = arith.constant 368 : index
    %c0_67 = arith.constant 0 : index
    %127 = vector.load %arg12[%c368, %c0_67] : memref<432x130xbf16, #tpu.memory_space<vmem>>, vector<16x130xbf16>
    tpu.vector_store %arg12[%c368, %c0_67], %126 {strides = array<i32>} : memref<432x130xbf16, #tpu.memory_space<vmem>>, vector<16x130xbf16>,
    %128 = vector.extract_strided_slice %79 {offsets = [0, 84], sizes = [16, 130], strides = [1, 1]} : vector<16x216xbf16> to vector<16x130xbf16>
    %c384 = arith.constant 384 : index
    %c0_68 = arith.constant 0 : index
    %129 = vector.load %arg12[%c384, %c0_68] : memref<432x130xbf16, #tpu.memory_space<vmem>>, vector<16x130xbf16>
    tpu.vector_store %arg12[%c384, %c0_68], %128 {strides = array<i32>} : memref<432x130xbf16, #tpu.memory_space<vmem>>, vector<16x130xbf16>,
    %130 = vector.extract_strided_slice %79 {offsets = [0, 85], sizes = [16, 130], strides = [1, 1]} : vector<16x216xbf16> to vector<16x130xbf16>
    %c400 = arith.constant 400 : index
    %c0_69 = arith.constant 0 : index
    %131 = vector.load %arg12[%c400, %c0_69] : memref<432x130xbf16, #tpu.memory_space<vmem>>, vector<16x130xbf16>
    tpu.vector_store %arg12[%c400, %c0_69], %130 {strides = array<i32>} : memref<432x130xbf16, #tpu.memory_space<vmem>>, vector<16x130xbf16>,
    %132 = vector.extract_strided_slice %79 {offsets = [0, 86], sizes = [16, 130], strides = [1, 1]} : vector<16x216xbf16> to vector<16x130xbf16>
    %c416 = arith.constant 416 : index
    %c0_70 = arith.constant 0 : index
    %133 = vector.load %arg12[%c416, %c0_70] : memref<432x130xbf16, #tpu.memory_space<vmem>>, vector<16x130xbf16>
    tpu.vector_store %arg12[%c416, %c0_70], %132 {strides = array<i32>} : memref<432x130xbf16, #tpu.memory_space<vmem>>, vector<16x130xbf16>,
    %c0_71 = arith.constant 0 : index
    %c0_72 = arith.constant 0 : index
    %134 = vector.load %arg3[%c0_71, %c0_72] : memref<32x432xbf16, #tpu.memory_space<vmem>>, vector<32x432xbf16>
    %c0_73 = arith.constant 0 : index
    %c0_74 = arith.constant 0 : index
    %135 = vector.load %arg12[%c0_73, %c0_74] : memref<432x130xbf16, #tpu.memory_space<vmem>>, vector<432x130xbf16>
    %cst_75 = arith.constant dense<0.000000e+00> : vector<32x130xf32>
    %136 = tpu.matmul %134, %135, %cst_75 {dimension_numbers = #tpu.dot_dimension_numbers<[1], [0], [0], [1], [0, 0, 1, 1], [], []>} : vector<32x432xbf16>, vector<432x130xbf16>, vector<32x130xf32> -> vector<32x130xf32>
    %c0_76 = arith.constant 0 : index
    %c2_77 = arith.constant 2 : index
    %137 = vector.load %arg5[%c0_76, %c2_77] : memref<64x6xf32, #tpu.memory_space<vmem>>, vector<32x1xf32>
    %138 = vector.broadcast %137 : vector<32x1xf32> to vector<32x130xf32>
    %139 = arith.mulf %136, %138 : vector<32x130xf32>
    %c0_78 = arith.constant 0 : index
    %c3_79 = arith.constant 3 : index
    %140 = vector.load %arg5[%c0_78, %c3_79] : memref<64x6xf32, #tpu.memory_space<vmem>>, vector<32x1xf32>
    %141 = vector.broadcast %140 : vector<32x1xf32> to vector<32x130xf32>
    %142 = arith.addf %139, %141 : vector<32x130xf32>
    %cst_80 = arith.constant 0.000000e+00 : f32
    %143 = vector.broadcast %cst_80 : f32 to vector<32x130xf32>
    %144 = arith.maximumf %142, %143 : vector<32x130xf32>
    %145 = vector.extract_strided_slice %144 {offsets = [0, 0], sizes = [32, 129], strides = [1, 1]} : vector<32x130xf32> to vector<32x129xf32>
    %146 = vector.extract_strided_slice %144 {offsets = [0, 1], sizes = [32, 129], strides = [1, 1]} : vector<32x130xf32> to vector<32x129xf32>
    %147 = arith.maximumf %145, %146 : vector<32x129xf32>
    %148 = vector.extract_strided_slice %147 {offsets = [0, 0], sizes = [32, 123], strides = [1, 1]} : vector<32x129xf32> to vector<32x123xf32>
    %149 = vector.extract_strided_slice %147 {offsets = [0, 6], sizes = [32, 123], strides = [1, 1]} : vector<32x129xf32> to vector<32x123xf32>
    %150 = arith.maximumf %148, %149 : vector<32x123xf32>
    %151 = vector.extract_strided_slice %150 {offsets = [0, 0], sizes = [32, 87], strides = [1, 1]} : vector<32x123xf32> to vector<32x87xf32>
    %152 = vector.extract_strided_slice %150 {offsets = [0, 36], sizes = [32, 87], strides = [1, 1]} : vector<32x123xf32> to vector<32x87xf32>
    %153 = arith.maximumf %151, %152 : vector<32x87xf32>
    %154 = arith.truncf %153 : vector<32x87xf32> to vector<32x87xbf16>
    %c0_81 = arith.constant 0 : index
    %c0_82 = arith.constant 0 : index
    %155 = vector.load %arg7[%c0_81, %c0_82] : memref<87x64xbf16, #tpu.memory_space<vmem>>, vector<87x64xbf16>
    %cst_83 = arith.constant dense<0.000000e+00> : vector<32x64xf32>
    %156 = tpu.matmul %154, %155, %cst_83 {dimension_numbers = #tpu.dot_dimension_numbers<[1], [0], [0], [1], [0, 0, 1, 1], [], []>} : vector<32x87xbf16>, vector<87x64xbf16>, vector<32x64xf32> -> vector<32x64xf32>
    %157 = arith.truncf %156 : vector<32x64xf32> to vector<32x64xbf16>
    %158 = vector.extract_strided_slice %157 {offsets = [0, 0], sizes = [32, 22], strides = [1, 1]} : vector<32x64xbf16> to vector<32x22xbf16>
    %c0_84 = arith.constant 0 : index
    %c0_85 = arith.constant 0 : index
    %159 = vector.load %arg13[%c0_84, %c0_85] : memref<864x22xbf16, #tpu.memory_space<vmem>>, vector<32x22xbf16>
    tpu.vector_store %arg13[%c0_84, %c0_85], %158 {strides = array<i32>} : memref<864x22xbf16, #tpu.memory_space<vmem>>, vector<32x22xbf16>,
    %160 = vector.extract_strided_slice %157 {offsets = [0, 1], sizes = [32, 22], strides = [1, 1]} : vector<32x64xbf16> to vector<32x22xbf16>
    %c32_86 = arith.constant 32 : index
    %c0_87 = arith.constant 0 : index
    %161 = vector.load %arg13[%c32_86, %c0_87] : memref<864x22xbf16, #tpu.memory_space<vmem>>, vector<32x22xbf16>
    tpu.vector_store %arg13[%c32_86, %c0_87], %160 {strides = array<i32>} : memref<864x22xbf16, #tpu.memory_space<vmem>>, vector<32x22xbf16>,
    %162 = vector.extract_strided_slice %157 {offsets = [0, 2], sizes = [32, 22], strides = [1, 1]} : vector<32x64xbf16> to vector<32x22xbf16>
    %c64_88 = arith.constant 64 : index
    %c0_89 = arith.constant 0 : index
    %163 = vector.load %arg13[%c64_88, %c0_89] : memref<864x22xbf16, #tpu.memory_space<vmem>>, vector<32x22xbf16>
    tpu.vector_store %arg13[%c64_88, %c0_89], %162 {strides = array<i32>} : memref<864x22xbf16, #tpu.memory_space<vmem>>, vector<32x22xbf16>,
    %164 = vector.extract_strided_slice %157 {offsets = [0, 4], sizes = [32, 22], strides = [1, 1]} : vector<32x64xbf16> to vector<32x22xbf16>
    %c96_90 = arith.constant 96 : index
    %c0_91 = arith.constant 0 : index
    %165 = vector.load %arg13[%c96_90, %c0_91] : memref<864x22xbf16, #tpu.memory_space<vmem>>, vector<32x22xbf16>
    tpu.vector_store %arg13[%c96_90, %c0_91], %164 {strides = array<i32>} : memref<864x22xbf16, #tpu.memory_space<vmem>>, vector<32x22xbf16>,
    %166 = vector.extract_strided_slice %157 {offsets = [0, 5], sizes = [32, 22], strides = [1, 1]} : vector<32x64xbf16> to vector<32x22xbf16>
    %c128_92 = arith.constant 128 : index
    %c0_93 = arith.constant 0 : index
    %167 = vector.load %arg13[%c128_92, %c0_93] : memref<864x22xbf16, #tpu.memory_space<vmem>>, vector<32x22xbf16>
    tpu.vector_store %arg13[%c128_92, %c0_93], %166 {strides = array<i32>} : memref<864x22xbf16, #tpu.memory_space<vmem>>, vector<32x22xbf16>,
    %168 = vector.extract_strided_slice %157 {offsets = [0, 6], sizes = [32, 22], strides = [1, 1]} : vector<32x64xbf16> to vector<32x22xbf16>
    %c160_94 = arith.constant 160 : index
    %c0_95 = arith.constant 0 : index
    %169 = vector.load %arg13[%c160_94, %c0_95] : memref<864x22xbf16, #tpu.memory_space<vmem>>, vector<32x22xbf16>
    tpu.vector_store %arg13[%c160_94, %c0_95], %168 {strides = array<i32>} : memref<864x22xbf16, #tpu.memory_space<vmem>>, vector<32x22xbf16>,
    %170 = vector.extract_strided_slice %157 {offsets = [0, 8], sizes = [32, 22], strides = [1, 1]} : vector<32x64xbf16> to vector<32x22xbf16>
    %c192_96 = arith.constant 192 : index
    %c0_97 = arith.constant 0 : index
    %171 = vector.load %arg13[%c192_96, %c0_97] : memref<864x22xbf16, #tpu.memory_space<vmem>>, vector<32x22xbf16>
    tpu.vector_store %arg13[%c192_96, %c0_97], %170 {strides = array<i32>} : memref<864x22xbf16, #tpu.memory_space<vmem>>, vector<32x22xbf16>,
    %172 = vector.extract_strided_slice %157 {offsets = [0, 9], sizes = [32, 22], strides = [1, 1]} : vector<32x64xbf16> to vector<32x22xbf16>
    %c224_98 = arith.constant 224 : index
    %c0_99 = arith.constant 0 : index
    %173 = vector.load %arg13[%c224_98, %c0_99] : memref<864x22xbf16, #tpu.memory_space<vmem>>, vector<32x22xbf16>
    tpu.vector_store %arg13[%c224_98, %c0_99], %172 {strides = array<i32>} : memref<864x22xbf16, #tpu.memory_space<vmem>>, vector<32x22xbf16>,
    %174 = vector.extract_strided_slice %157 {offsets = [0, 10], sizes = [32, 22], strides = [1, 1]} : vector<32x64xbf16> to vector<32x22xbf16>
    %c256_100 = arith.constant 256 : index
    %c0_101 = arith.constant 0 : index
    %175 = vector.load %arg13[%c256_100, %c0_101] : memref<864x22xbf16, #tpu.memory_space<vmem>>, vector<32x22xbf16>
    tpu.vector_store %arg13[%c256_100, %c0_101], %174 {strides = array<i32>} : memref<864x22xbf16, #tpu.memory_space<vmem>>, vector<32x22xbf16>,
    %176 = vector.extract_strided_slice %157 {offsets = [0, 16], sizes = [32, 22], strides = [1, 1]} : vector<32x64xbf16> to vector<32x22xbf16>
    %c288_102 = arith.constant 288 : index
    %c0_103 = arith.constant 0 : index
    %177 = vector.load %arg13[%c288_102, %c0_103] : memref<864x22xbf16, #tpu.memory_space<vmem>>, vector<32x22xbf16>
    tpu.vector_store %arg13[%c288_102, %c0_103], %176 {strides = array<i32>} : memref<864x22xbf16, #tpu.memory_space<vmem>>, vector<32x22xbf16>,
    %178 = vector.extract_strided_slice %157 {offsets = [0, 17], sizes = [32, 22], strides = [1, 1]} : vector<32x64xbf16> to vector<32x22xbf16>
    %c320_104 = arith.constant 320 : index
    %c0_105 = arith.constant 0 : index
    %179 = vector.load %arg13[%c320_104, %c0_105] : memref<864x22xbf16, #tpu.memory_space<vmem>>, vector<32x22xbf16>
    tpu.vector_store %arg13[%c320_104, %c0_105], %178 {strides = array<i32>} : memref<864x22xbf16, #tpu.memory_space<vmem>>, vector<32x22xbf16>,
    %180 = vector.extract_strided_slice %157 {offsets = [0, 18], sizes = [32, 22], strides = [1, 1]} : vector<32x64xbf16> to vector<32x22xbf16>
    %c352_106 = arith.constant 352 : index
    %c0_107 = arith.constant 0 : index
    %181 = vector.load %arg13[%c352_106, %c0_107] : memref<864x22xbf16, #tpu.memory_space<vmem>>, vector<32x22xbf16>
    tpu.vector_store %arg13[%c352_106, %c0_107], %180 {strides = array<i32>} : memref<864x22xbf16, #tpu.memory_space<vmem>>, vector<32x22xbf16>,
    %182 = vector.extract_strided_slice %157 {offsets = [0, 20], sizes = [32, 22], strides = [1, 1]} : vector<32x64xbf16> to vector<32x22xbf16>
    %c384_108 = arith.constant 384 : index
    %c0_109 = arith.constant 0 : index
    %183 = vector.load %arg13[%c384_108, %c0_109] : memref<864x22xbf16, #tpu.memory_space<vmem>>, vector<32x22xbf16>
    tpu.vector_store %arg13[%c384_108, %c0_109], %182 {strides = array<i32>} : memref<864x22xbf16, #tpu.memory_space<vmem>>, vector<32x22xbf16>,
    %184 = vector.extract_strided_slice %157 {offsets = [0, 21], sizes = [32, 22], strides = [1, 1]} : vector<32x64xbf16> to vector<32x22xbf16>
    %c416_110 = arith.constant 416 : index
    %c0_111 = arith.constant 0 : index
    %185 = vector.load %arg13[%c416_110, %c0_111] : memref<864x22xbf16, #tpu.memory_space<vmem>>, vector<32x22xbf16>
    tpu.vector_store %arg13[%c416_110, %c0_111], %184 {strides = array<i32>} : memref<864x22xbf16, #tpu.memory_space<vmem>>, vector<32x22xbf16>,
    %186 = vector.extract_strided_slice %157 {offsets = [0, 22], sizes = [32, 22], strides = [1, 1]} : vector<32x64xbf16> to vector<32x22xbf16>
    %c448 = arith.constant 448 : index
    %c0_112 = arith.constant 0 : index
    %187 = vector.load %arg13[%c448, %c0_112] : memref<864x22xbf16, #tpu.memory_space<vmem>>, vector<32x22xbf16>
    tpu.vector_store %arg13[%c448, %c0_112], %186 {strides = array<i32>} : memref<864x22xbf16, #tpu.memory_space<vmem>>, vector<32x22xbf16>,
    %188 = vector.extract_strided_slice %157 {offsets = [0, 24], sizes = [32, 22], strides = [1, 1]} : vector<32x64xbf16> to vector<32x22xbf16>
    %c480 = arith.constant 480 : index
    %c0_113 = arith.constant 0 : index
    %189 = vector.load %arg13[%c480, %c0_113] : memref<864x22xbf16, #tpu.memory_space<vmem>>, vector<32x22xbf16>
    tpu.vector_store %arg13[%c480, %c0_113], %188 {strides = array<i32>} : memref<864x22xbf16, #tpu.memory_space<vmem>>, vector<32x22xbf16>,
    %190 = vector.extract_strided_slice %157 {offsets = [0, 25], sizes = [32, 22], strides = [1, 1]} : vector<32x64xbf16> to vector<32x22xbf16>
    %c512 = arith.constant 512 : index
    %c0_114 = arith.constant 0 : index
    %191 = vector.load %arg13[%c512, %c0_114] : memref<864x22xbf16, #tpu.memory_space<vmem>>, vector<32x22xbf16>
    tpu.vector_store %arg13[%c512, %c0_114], %190 {strides = array<i32>} : memref<864x22xbf16, #tpu.memory_space<vmem>>, vector<32x22xbf16>,
    %192 = vector.extract_strided_slice %157 {offsets = [0, 26], sizes = [32, 22], strides = [1, 1]} : vector<32x64xbf16> to vector<32x22xbf16>
    %c544 = arith.constant 544 : index
    %c0_115 = arith.constant 0 : index
    %193 = vector.load %arg13[%c544, %c0_115] : memref<864x22xbf16, #tpu.memory_space<vmem>>, vector<32x22xbf16>
    tpu.vector_store %arg13[%c544, %c0_115], %192 {strides = array<i32>} : memref<864x22xbf16, #tpu.memory_space<vmem>>, vector<32x22xbf16>,
    %194 = vector.extract_strided_slice %157 {offsets = [0, 32], sizes = [32, 22], strides = [1, 1]} : vector<32x64xbf16> to vector<32x22xbf16>
    %c576 = arith.constant 576 : index
    %c0_116 = arith.constant 0 : index
    %195 = vector.load %arg13[%c576, %c0_116] : memref<864x22xbf16, #tpu.memory_space<vmem>>, vector<32x22xbf16>
    tpu.vector_store %arg13[%c576, %c0_116], %194 {strides = array<i32>} : memref<864x22xbf16, #tpu.memory_space<vmem>>, vector<32x22xbf16>,
    %196 = vector.extract_strided_slice %157 {offsets = [0, 33], sizes = [32, 22], strides = [1, 1]} : vector<32x64xbf16> to vector<32x22xbf16>
    %c608 = arith.constant 608 : index
    %c0_117 = arith.constant 0 : index
    %197 = vector.load %arg13[%c608, %c0_117] : memref<864x22xbf16, #tpu.memory_space<vmem>>, vector<32x22xbf16>
    tpu.vector_store %arg13[%c608, %c0_117], %196 {strides = array<i32>} : memref<864x22xbf16, #tpu.memory_space<vmem>>, vector<32x22xbf16>,
    %198 = vector.extract_strided_slice %157 {offsets = [0, 34], sizes = [32, 22], strides = [1, 1]} : vector<32x64xbf16> to vector<32x22xbf16>
    %c640 = arith.constant 640 : index
    %c0_118 = arith.constant 0 : index
    %199 = vector.load %arg13[%c640, %c0_118] : memref<864x22xbf16, #tpu.memory_space<vmem>>, vector<32x22xbf16>
    tpu.vector_store %arg13[%c640, %c0_118], %198 {strides = array<i32>} : memref<864x22xbf16, #tpu.memory_space<vmem>>, vector<32x22xbf16>,
    %200 = vector.extract_strided_slice %157 {offsets = [0, 36], sizes = [32, 22], strides = [1, 1]} : vector<32x64xbf16> to vector<32x22xbf16>
    %c672 = arith.constant 672 : index
    %c0_119 = arith.constant 0 : index
    %201 = vector.load %arg13[%c672, %c0_119] : memref<864x22xbf16, #tpu.memory_space<vmem>>, vector<32x22xbf16>
    tpu.vector_store %arg13[%c672, %c0_119], %200 {strides = array<i32>} : memref<864x22xbf16, #tpu.memory_space<vmem>>, vector<32x22xbf16>,
    %202 = vector.extract_strided_slice %157 {offsets = [0, 37], sizes = [32, 22], strides = [1, 1]} : vector<32x64xbf16> to vector<32x22xbf16>
    %c704 = arith.constant 704 : index
    %c0_120 = arith.constant 0 : index
    %203 = vector.load %arg13[%c704, %c0_120] : memref<864x22xbf16, #tpu.memory_space<vmem>>, vector<32x22xbf16>
    tpu.vector_store %arg13[%c704, %c0_120], %202 {strides = array<i32>} : memref<864x22xbf16, #tpu.memory_space<vmem>>, vector<32x22xbf16>,
    %204 = vector.extract_strided_slice %157 {offsets = [0, 38], sizes = [32, 22], strides = [1, 1]} : vector<32x64xbf16> to vector<32x22xbf16>
    %c736 = arith.constant 736 : index
    %c0_121 = arith.constant 0 : index
    %205 = vector.load %arg13[%c736, %c0_121] : memref<864x22xbf16, #tpu.memory_space<vmem>>, vector<32x22xbf16>
    tpu.vector_store %arg13[%c736, %c0_121], %204 {strides = array<i32>} : memref<864x22xbf16, #tpu.memory_space<vmem>>, vector<32x22xbf16>,
    %206 = vector.extract_strided_slice %157 {offsets = [0, 40], sizes = [32, 22], strides = [1, 1]} : vector<32x64xbf16> to vector<32x22xbf16>
    %c768 = arith.constant 768 : index
    %c0_122 = arith.constant 0 : index
    %207 = vector.load %arg13[%c768, %c0_122] : memref<864x22xbf16, #tpu.memory_space<vmem>>, vector<32x22xbf16>
    tpu.vector_store %arg13[%c768, %c0_122], %206 {strides = array<i32>} : memref<864x22xbf16, #tpu.memory_space<vmem>>, vector<32x22xbf16>,
    %208 = vector.extract_strided_slice %157 {offsets = [0, 41], sizes = [32, 22], strides = [1, 1]} : vector<32x64xbf16> to vector<32x22xbf16>
    %c800 = arith.constant 800 : index
    %c0_123 = arith.constant 0 : index
    %209 = vector.load %arg13[%c800, %c0_123] : memref<864x22xbf16, #tpu.memory_space<vmem>>, vector<32x22xbf16>
    tpu.vector_store %arg13[%c800, %c0_123], %208 {strides = array<i32>} : memref<864x22xbf16, #tpu.memory_space<vmem>>, vector<32x22xbf16>,
    %210 = vector.extract_strided_slice %157 {offsets = [0, 42], sizes = [32, 22], strides = [1, 1]} : vector<32x64xbf16> to vector<32x22xbf16>
    %c832 = arith.constant 832 : index
    %c0_124 = arith.constant 0 : index
    %211 = vector.load %arg13[%c832, %c0_124] : memref<864x22xbf16, #tpu.memory_space<vmem>>, vector<32x22xbf16>
    tpu.vector_store %arg13[%c832, %c0_124], %210 {strides = array<i32>} : memref<864x22xbf16, #tpu.memory_space<vmem>>, vector<32x22xbf16>,
    %c0_125 = arith.constant 0 : index
    %c0_126 = arith.constant 0 : index
    %212 = vector.load %arg4[%c0_125, %c0_126] : memref<64x864xbf16, #tpu.memory_space<vmem>>, vector<64x864xbf16>
    %c0_127 = arith.constant 0 : index
    %c0_128 = arith.constant 0 : index
    %213 = vector.load %arg13[%c0_127, %c0_128] : memref<864x22xbf16, #tpu.memory_space<vmem>>, vector<864x22xbf16>
    %cst_129 = arith.constant dense<0.000000e+00> : vector<64x22xf32>
    %214 = tpu.matmul %212, %213, %cst_129 {dimension_numbers = #tpu.dot_dimension_numbers<[1], [0], [0], [1], [0, 0, 1, 1], [], []>} : vector<64x864xbf16>, vector<864x22xbf16>, vector<64x22xf32> -> vector<64x22xf32>
    %c0_130 = arith.constant 0 : index
    %c4_131 = arith.constant 4 : index
    %215 = vector.load %arg5[%c0_130, %c4_131] : memref<64x6xf32, #tpu.memory_space<vmem>>, vector<64x1xf32>
    %216 = vector.broadcast %215 : vector<64x1xf32> to vector<64x22xf32>
    %217 = arith.mulf %214, %216 : vector<64x22xf32>
    %c0_132 = arith.constant 0 : index
    %c5_133 = arith.constant 5 : index
    %218 = vector.load %arg5[%c0_132, %c5_133] : memref<64x6xf32, #tpu.memory_space<vmem>>, vector<64x1xf32>
    %219 = vector.broadcast %218 : vector<64x1xf32> to vector<64x22xf32>
    %220 = arith.addf %217, %219 : vector<64x22xf32>
    %cst_134 = arith.constant 0.000000e+00 : f32
    %221 = vector.broadcast %cst_134 : f32 to vector<64x22xf32>
    %222 = arith.maximumf %220, %221 : vector<64x22xf32>
    %c0_135 = arith.constant 0 : index
    %c0_136 = arith.constant 0 : index
    %223 = vector.load %arg8[%c0_135, %c0_136] : memref<1x22xf32, #tpu.memory_space<vmem>>, vector<1x22xf32>
    %224 = vector.broadcast %223 : vector<1x22xf32> to vector<64x22xf32>
    %225 = arith.mulf %222, %224 : vector<64x22xf32>
    %cst_137 = arith.constant dense<0.000000e+00> : vector<64xf32>
    %226 = vector.multi_reduction <add>, %225, %cst_137 [1] : vector<64x22xf32> to vector<64xf32>
    %227 = vector.shape_cast %226 : vector<64xf32> to vector<64x1xf32>
    %c0_138 = arith.constant 0 : index
    %c0_139 = arith.constant 0 : index
    %228 = vector.load %arg9[%c0_138, %c0_139] : memref<3x65xf32, #tpu.memory_space<vmem>>, vector<3x64xf32>
    %cst_140 = arith.constant dense<0.000000e+00> : vector<3x1xf32>
    %229 = tpu.matmul %228, %227, %cst_140 {dimension_numbers = #tpu.dot_dimension_numbers<[1], [0], [0], [1], [0, 0, 1, 1], [], []>} : vector<3x64xf32>, vector<64x1xf32>, vector<3x1xf32> -> vector<3x1xf32>
    %c0_141 = arith.constant 0 : index
    %c64_142 = arith.constant 64 : index
    %230 = vector.load %arg9[%c0_141, %c64_142] : memref<3x65xf32, #tpu.memory_space<vmem>>, vector<3x1xf32>
    %231 = arith.addf %229, %230 : vector<3x1xf32>
    %232 = vector.shape_cast %231 : vector<3x1xf32> to vector<1x3x1xf32>
    %233 = vector.broadcast %232 : vector<1x3x1xf32> to vector<1x3x128xf32>
    %c0_143 = arith.constant 0 : index
    %c0_144 = arith.constant 0 : index
    %c0_145 = arith.constant 0 : index
    %234 = vector.load %arg10[%c0_143, %c0_144, %c0_145] : memref<1x3x128xf32, #tpu.memory_space<vmem>>, vector<1x3x128xf32>
    tpu.vector_store %arg10[%c0_143, %c0_144, %c0_145], %233 {strides = array<i32>} : memref<1x3x128xf32, #tpu.memory_space<vmem>>, vector<1x3x128xf32>,
    return
  }
  func.func @transform_0(%arg0: i32) -> (i32, i32, i32) {
    %c0_i32 = arith.constant 0 : i32
    %c0_i32_0 = arith.constant 0 : i32
    %c0_i32_1 = arith.constant 0 : i32
    return %arg0, %c0_i32, %c0_i32_0 : i32, i32, i32
  }
  func.func @transform_1(%arg0: i32) -> (i32, i32) {
    %c0_i32 = arith.constant 0 : i32
    %c0_i32_0 = arith.constant 0 : i32
    %c0_i32_1 = arith.constant 0 : i32
    return %c0_i32, %c0_i32_0 : i32, i32
  }
  func.func @transform_2(%arg0: i32) -> (i32, i32) {
    %c0_i32 = arith.constant 0 : i32
    %c0_i32_0 = arith.constant 0 : i32
    %c0_i32_1 = arith.constant 0 : i32
    return %c0_i32, %c0_i32_0 : i32, i32
  }
  func.func @transform_3(%arg0: i32) -> (i32, i32) {
    %c0_i32 = arith.constant 0 : i32
    %c0_i32_0 = arith.constant 0 : i32
    %c0_i32_1 = arith.constant 0 : i32
    return %c0_i32, %c0_i32_0 : i32, i32
  }
  func.func @transform_4(%arg0: i32) -> (i32, i32) {
    %c0_i32 = arith.constant 0 : i32
    %c0_i32_0 = arith.constant 0 : i32
    %c0_i32_1 = arith.constant 0 : i32
    return %c0_i32, %c0_i32_0 : i32, i32
  }
  func.func @transform_5(%arg0: i32) -> (i32, i32) {
    %c0_i32 = arith.constant 0 : i32
    %c0_i32_0 = arith.constant 0 : i32
    %c0_i32_1 = arith.constant 0 : i32
    return %c0_i32, %c0_i32_0 : i32, i32
  }
  func.func @transform_6(%arg0: i32) -> (i32, i32) {
    %c0_i32 = arith.constant 0 : i32
    %c0_i32_0 = arith.constant 0 : i32
    %c0_i32_1 = arith.constant 0 : i32
    return %c0_i32, %c0_i32_0 : i32, i32
  }
  func.func @transform_7(%arg0: i32) -> (i32, i32) {
    %c0_i32 = arith.constant 0 : i32
    %c0_i32_0 = arith.constant 0 : i32
    %c0_i32_1 = arith.constant 0 : i32
    return %c0_i32, %c0_i32_0 : i32, i32
  }
  func.func @transform_8(%arg0: i32) -> (i32, i32) {
    %c0_i32 = arith.constant 0 : i32
    %c0_i32_0 = arith.constant 0 : i32
    %c0_i32_1 = arith.constant 0 : i32
    return %c0_i32, %c0_i32_0 : i32, i32
  }
  func.func @transform_9(%arg0: i32) -> (i32, i32, i32) {
    %c0_i32 = arith.constant 0 : i32
    %c0_i32_0 = arith.constant 0 : i32
    %c0_i32_1 = arith.constant 0 : i32
    return %arg0, %c0_i32, %c0_i32_0 : i32, i32, i32
  }
}

</mosaic_0001>

<llo_original>
// kernel: forward.1
$region0: #{forward.1}
  #allocation0 [shape = 'u32[]', space=smem, size = 0x4, offset = 0x4, fixed_abs, tag = 'smem constant byte address 0x4 - core index']
  #allocation1 [shape = 'u32[144,128]{1,0:T(1,128)}', space=vmem, size = 0x12000, scoped, tag = 'internal scratch']
  #allocation2 [shape = 'f32[27,778]{1,0:T(8,128)}', space=vmem, size = 0x1c000, scoped, tag = 'scratch operand']
  #allocation3 [shape = 'bf16[432,130]{1,0:T(16,128)(2,1)}', space=vmem, size = 0x36000, scoped, tag = 'scratch operand']
  #allocation4 [shape = 'bf16[864,22]{1,0:T(16,128)(2,1)}', space=vmem, size = 0x36000, scoped, tag = 'scratch operand']
  %s0 = inlined_call_operand.vmem [shape: f32[2,1,1000], index: 0, kind: input, shape index: {}]
  %s1 = inlined_call_operand.vmem [shape: f32[16,27], index: 1, kind: input, shape index: {}]
  %s2 = inlined_call_operand.vmem [shape: bf16[32,432], index: 2, kind: input, shape index: {}]
  %s3 = inlined_call_operand.vmem [shape: bf16[64,864], index: 3, kind: input, shape index: {}]
  %s4 = inlined_call_operand.vmem [shape: f32[64,6], index: 4, kind: input, shape index: {}]
  %s5 = inlined_call_operand.vmem [shape: bf16[667,216], index: 5, kind: input, shape index: {}]
  %s6 = inlined_call_operand.vmem [shape: bf16[87,64], index: 6, kind: input, shape index: {}]
  %s7 = inlined_call_operand.vmem [shape: f32[1,22], index: 7, kind: input, shape index: {}]
  %s8 = inlined_call_operand.vmem [shape: f32[3,65], index: 8, kind: input, shape index: {}]
  %s9 = inlined_call_operand.vmem [shape: f32[2,3,128], index: 9, kind: output, shape index: {}]
  %s10 = sld [smem:[#allocation0]]
  $region69: #{forward.1} parent=0
    _
  %s12 = ssub.s32 1, %s10
  %s13 = scalar_select 0, %s12, %s10
  loop: start=0, step=1, limit=4
  $region2: #{forward.1} parent=0 // loop_pre_header
    _
  $region3: #{forward.1} parent=0 // loop_header
    %s15 = sphi 0, %s19
    %p16 = scmp.ge.s32.totalorder %s15, 4
    %s25 = sphi 0, %s27
    %s28 = sphi 0, %s25
    %s29 = sphi 0, %s28
    %s45 = sphi 0, %s29
    %s49 = sphi 0, %s49
    %s51 = sphi 0, %s49
    %s52 = sphi 0, %s51
    %s66 = sphi 0, %s52
    %s70 = sphi 0, %s70
    %s72 = sphi 0, %s70
    %s73 = sphi 0, %s72
    %s87 = sphi 0, %s73
    %s91 = sphi 0, %s91
    %s93 = sphi 0, %s91
    %s94 = sphi 0, %s93
    %s108 = sphi 0, %s94
    %s112 = sphi 0, %s112
    %s114 = sphi 0, %s112
    %s115 = sphi 0, %s114
    %s129 = sphi 0, %s115
    %s133 = sphi 0, %s133
    %s135 = sphi 0, %s133
    %s136 = sphi 0, %s135
    %s150 = sphi 0, %s136
    %s154 = sphi 0, %s154
    %s156 = sphi 0, %s154
    %s157 = sphi 0, %s156
    %s171 = sphi 0, %s157
    %s175 = sphi 0, %s175
    %s177 = sphi 0, %s175
    %s178 = sphi 0, %s177
    %s192 = sphi 0, %s178
    %s196 = sphi 0, %s196
    %s198 = sphi 0, %s196
    %s199 = sphi 0, %s198
    %s213 = sphi 0, %s199
    %s219 = sphi 0, %s221
    %s222 = sphi 0, %s219
    %s223 = sphi 0, %s222
    %s239 = sphi 0, %s223
  $region4: #{forward.1} parent=0 // loop_header_branch
    %18 = sbr.rel (%p16) target = $region8
  $region5: #{forward.1} parent=0 // loop_body
    %s20 = ssub.s32 %s15, 1
    %s21 = ssub.s32 %s15, 2
    %s22 = sadd.s32 %s15, 1
    %s23 = ssub.s32 %s15, %s22
    %p24 = scmp.eq.s32.totalorder %s23, 0
    %s26 = sadd.s32 %s25, 1
    %s27 = scalar_select %p24, %s25, %s26
    %p30 = pneg %p24
    %p31 = scmp.eq.s32.totalorder %s15, 1
    %p32 = por %p30, %p31
    %p33 = scmp.ne.s32.totalorder %s25, %s28
    %p34 = scmp.eq.s32.totalorder %s15, 0
    %p35 = por %p33, %p34
    %p36 = scmp.ne.s32.totalorder %s25, %s28
    %p37 = scmp.eq.s32.totalorder %s20, 1
    %p38 = por %p36, %p37
    %p39 = scmp.ne.s32.totalorder %s28, %s29
    %p40 = scmp.eq.s32.totalorder %s20, 0
    %p41 = por %p39, %p40
    %p42 = scmp.ne.s32.totalorder %s28, %s29
    %p43 = scmp.eq.s32.totalorder %s21, 1
    %p44 = por %p42, %p43
    %p46 = scmp.ne.s32.totalorder %s29, %s45
    %p47 = scmp.eq.s32.totalorder %s21, 0
    %p48 = por %p46, %p47
    %s50 = sadd.s32 %s49, 1
    %p53 = scmp.eq.s32.totalorder %s15, 1
    %p54 = scmp.ne.s32.totalorder %s49, %s51
    %p55 = scmp.eq.s32.totalorder %s15, 0
    %p56 = por %p54, %p55
    %p57 = scmp.ne.s32.totalorder %s49, %s51
    %p58 = scmp.eq.s32.totalorder %s20, 1
    %p59 = por %p57, %p58
    %p60 = scmp.ne.s32.totalorder %s51, %s52
    %p61 = scmp.eq.s32.totalorder %s20, 0
    %p62 = por %p60, %p61
    %p63 = scmp.ne.s32.totalorder %s51, %s52
    %p64 = scmp.eq.s32.totalorder %s21, 1
    %p65 = por %p63, %p64
    %p67 = scmp.ne.s32.totalorder %s52, %s66
    %p68 = scmp.eq.s32.totalorder %s21, 0
    %p69 = por %p67, %p68
    %s71 = sadd.s32 %s70, 1
    %p74 = scmp.eq.s32.totalorder %s15, 1
    %p75 = scmp.ne.s32.totalorder %s70, %s72
    %p76 = scmp.eq.s32.totalorder %s15, 0
    %p77 = por %p75, %p76
    %p78 = scmp.ne.s32.totalorder %s70, %s72
    %p79 = scmp.eq.s32.totalorder %s20, 1
    %p80 = por %p78, %p79
    %p81 = scmp.ne.s32.totalorder %s72, %s73
    %p82 = scmp.eq.s32.totalorder %s20, 0
    %p83 = por %p81, %p82
    %p84 = scmp.ne.s32.totalorder %s72, %s73
    %p85 = scmp.eq.s32.totalorder %s21, 1
    %p86 = por %p84, %p85
    %p88 = scmp.ne.s32.totalorder %s73, %s87
    %p89 = scmp.eq.s32.totalorder %s21, 0
    %p90 = por %p88, %p89
    %s92 = sadd.s32 %s91, 1
    %p95 = scmp.eq.s32.totalorder %s15, 1
    %p96 = scmp.ne.s32.totalorder %s91, %s93
    %p97 = scmp.eq.s32.totalorder %s15, 0
    %p98 = por %p96, %p97
    %p99 = scmp.ne.s32.totalorder %s91, %s93
    %p100 = scmp.eq.s32.totalorder %s20, 1
    %p101 = por %p99, %p100
    %p102 = scmp.ne.s32.totalorder %s93, %s94
    %p103 = scmp.eq.s32.totalorder %s20, 0
    %p104 = por %p102, %p103
    %p105 = scmp.ne.s32.totalorder %s93, %s94
    %p106 = scmp.eq.s32.totalorder %s21, 1
    %p107 = por %p105, %p106
    %p109 = scmp.ne.s32.totalorder %s94, %s108
    %p110 = scmp.eq.s32.totalorder %s21, 0
    %p111 = por %p109, %p110
    %s113 = sadd.s32 %s112, 1
    %p116 = scmp.eq.s32.totalorder %s15, 1
    %p117 = scmp.ne.s32.totalorder %s112, %s114
    %p118 = scmp.eq.s32.totalorder %s15, 0
    %p119 = por %p117, %p118
    %p120 = scmp.ne.s32.totalorder %s112, %s114
    %p121 = scmp.eq.s32.totalorder %s20, 1
    %p122 = por %p120, %p121
    %p123 = scmp.ne.s32.totalorder %s114, %s115
    %p124 = scmp.eq.s32.totalorder %s20, 0
    %p125 = por %p123, %p124
    %p126 = scmp.ne.s32.totalorder %s114, %s115
    %p127 = scmp.eq.s32.totalorder %s21, 1
    %p128 = por %p126, %p127
    %p130 = scmp.ne.s32.totalorder %s115, %s129
    %p131 = scmp.eq.s32.totalorder %s21, 0
    %p132 = por %p130, %p131
    %s134 = sadd.s32 %s133, 1
    %p137 = scmp.eq.s32.totalorder %s15, 1
    %p138 = scmp.ne.s32.totalorder %s133, %s135
    %p139 = scmp.eq.s32.totalorder %s15, 0
    %p140 = por %p138, %p139
    %p141 = scmp.ne.s32.totalorder %s133, %s135
    %p142 = scmp.eq.s32.totalorder %s20, 1
    %p143 = por %p141, %p142
    %p144 = scmp.ne.s32.totalorder %s135, %s136
    %p145 = scmp.eq.s32.totalorder %s20, 0
    %p146 = por %p144, %p145
    %p147 = scmp.ne.s32.totalorder %s135, %s136
    %p148 = scmp.eq.s32.totalorder %s21, 1
    %p149 = por %p147, %p148
    %p151 = scmp.ne.s32.totalorder %s136, %s150
    %p152 = scmp.eq.s32.totalorder %s21, 0
    %p153 = por %p151, %p152
    %s155 = sadd.s32 %s154, 1
    %p158 = scmp.eq.s32.totalorder %s15, 1
    %p159 = scmp.ne.s32.totalorder %s154, %s156
    %p160 = scmp.eq.s32.totalorder %s15, 0
    %p161 = por %p159, %p160
    %p162 = scmp.ne.s32.totalorder %s154, %s156
    %p163 = scmp.eq.s32.totalorder %s20, 1
    %p164 = por %p162, %p163
    %p165 = scmp.ne.s32.totalorder %s156, %s157
    %p166 = scmp.eq.s32.totalorder %s20, 0
    %p167 = por %p165, %p166
    %p168 = scmp.ne.s32.totalorder %s156, %s157
    %p169 = scmp.eq.s32.totalorder %s21, 1
    %p170 = por %p168, %p169
    %p172 = scmp.ne.s32.totalorder %s157, %s171
    %p173 = scmp.eq.s32.totalorder %s21, 0
    %p174 = por %p172, %p173
    %s176 = sadd.s32 %s175, 1
    %p179 = scmp.eq.s32.totalorder %s15, 1
    %p180 = scmp.ne.s32.totalorder %s175, %s177
    %p181 = scmp.eq.s32.totalorder %s15, 0
    %p182 = por %p180, %p181
    %p183 = scmp.ne.s32.totalorder %s175, %s177
    %p184 = scmp.eq.s32.totalorder %s20, 1
    %p185 = por %p183, %p184
    %p186 = scmp.ne.s32.totalorder %s177, %s178
    %p187 = scmp.eq.s32.totalorder %s20, 0
    %p188 = por %p186, %p187
    %p189 = scmp.ne.s32.totalorder %s177, %s178
    %p190 = scmp.eq.s32.totalorder %s21, 1
    %p191 = por %p189, %p190
    %p193 = scmp.ne.s32.totalorder %s178, %s192
    %p194 = scmp.eq.s32.totalorder %s21, 0
    %p195 = por %p193, %p194
    %s197 = sadd.s32 %s196, 1
    %p200 = scmp.eq.s32.totalorder %s15, 1
    %p201 = scmp.ne.s32.totalorder %s196, %s198
    %p202 = scmp.eq.s32.totalorder %s15, 0
    %p203 = por %p201, %p202
    %p204 = scmp.ne.s32.totalorder %s196, %s198
    %p205 = scmp.eq.s32.totalorder %s20, 1
    %p206 = por %p204, %p205
    %p207 = scmp.ne.s32.totalorder %s198, %s199
    %p208 = scmp.eq.s32.totalorder %s20, 0
    %p209 = por %p207, %p208
    %p210 = scmp.ne.s32.totalorder %s198, %s199
    %p211 = scmp.eq.s32.totalorder %s21, 1
    %p212 = por %p210, %p211
    %p214 = scmp.ne.s32.totalorder %s199, %s213
    %p215 = scmp.eq.s32.totalorder %s21, 0
    %p216 = por %p214, %p215
    %s217 = ssub.s32 %s15, %s22
    %p218 = scmp.eq.s32.totalorder %s217, 0
    %s220 = sadd.s32 %s219, 1
    %s221 = scalar_select %p218, %s219, %s220
    %p224 = pneg %p218
    %p225 = scmp.eq.s32.totalorder %s15, 1
    %p226 = por %p224, %p225
    %p227 = scmp.ne.s32.totalorder %s219, %s222
    %p228 = scmp.eq.s32.totalorder %s15, 0
    %p229 = por %p227, %p228
    %p230 = scmp.ne.s32.totalorder %s219, %s222
    %p231 = scmp.eq.s32.totalorder %s20, 1
    %p232 = por %p230, %p231
    %p233 = scmp.ne.s32.totalorder %s222, %s223
    %p234 = scmp.eq.s32.totalorder %s20, 0
    %p235 = por %p233, %p234
    %p236 = scmp.ne.s32.totalorder %s222, %s223
    %p237 = scmp.eq.s32.totalorder %s21, 1
    %p238 = por %p236, %p237
    %p240 = scmp.ne.s32.totalorder %s223, %s239
    %p241 = scmp.eq.s32.totalorder %s21, 0
    %p242 = por %p240, %p241
    %p243 = scmp.le.s32.totalorder 1, %s15
    %p244 = scmp.lt.s32.totalorder %s15, 3
    %p245 = pnand %p243, %p244
    %p246 = pneg %p245
    // Predicated region
    $region9: #{forward.1} parent=5 // pred_check
      _
    $region10: #{forward.1} parent=5 // pred_check_branch
      %248 = sbr.rel (%p245) target = $region12
    $region11: #{forward.1} parent=5 // pred_region
      %s249 = ssub.s32 %s15, 1
      // Predicated region
      $region13: #{forward.1} parent=11 // pred_check
        %p250 = pneg %p62
      $region14: #{forward.1} parent=11 // pred_check_branch
        %252 = sbr.rel (%p250) target = $region16
      $region15: #{forward.1} parent=11 // pred_region
        _
      $region16: #{forward.1} parent=11 // pred_fallthru
        _
      // Predicated region
      $region17: #{forward.1} parent=11 // pred_check
        %p253 = pneg %p83
      $region18: #{forward.1} parent=11 // pred_check_branch
        %255 = sbr.rel (%p253) target = $region20
      $region19: #{forward.1} parent=11 // pred_region
        _
      $region20: #{forward.1} parent=11 // pred_fallthru
        _
      // Predicated region
      $region21: #{forward.1} parent=11 // pred_check
        %p256 = pneg %p104
      $region22: #{forward.1} parent=11 // pred_check_branch
        %258 = sbr.rel (%p256) target = $region24
      $region23: #{forward.1} parent=11 // pred_region
        _
      $region24: #{forward.1} parent=11 // pred_fallthru
        _
      // Predicated region
      $region25: #{forward.1} parent=11 // pred_check
        %p259 = pneg %p125
      $region26: #{forward.1} parent=11 // pred_check_branch
        %261 = sbr.rel (%p259) target = $region28
      $region27: #{forward.1} parent=11 // pred_region
        _
      $region28: #{forward.1} parent=11 // pred_fallthru
        _
      // Predicated region
      $region29: #{forward.1} parent=11 // pred_check
        %p262 = pneg %p146
      $region30: #{forward.1} parent=11 // pred_check_branch
        %264 = sbr.rel (%p262) target = $region32
      $region31: #{forward.1} parent=11 // pred_region
        _
      $region32: #{forward.1} parent=11 // pred_fallthru
        _
      // Predicated region
      $region33: #{forward.1} parent=11 // pred_check
        %p265 = pneg %p167
      $region34: #{forward.1} parent=11 // pred_check_branch
        %267 = sbr.rel (%p265) target = $region36
      $region35: #{forward.1} parent=11 // pred_region
        _
      $region36: #{forward.1} parent=11 // pred_fallthru
        _
      // Predicated region
      $region37: #{forward.1} parent=11 // pred_check
        %p268 = pneg %p188
      $region38: #{forward.1} parent=11 // pred_check_branch
        %270 = sbr.rel (%p268) target = $region40
      $region39: #{forward.1} parent=11 // pred_region
        _
      $region40: #{forward.1} parent=11 // pred_fallthru
        _
      // Predicated region
      $region41: #{forward.1} parent=11 // pred_check
        %p271 = pneg %p209
      $region42: #{forward.1} parent=11 // pred_check_branch
        %273 = sbr.rel (%p271) target = $region44
      $region43: #{forward.1} parent=11 // pred_region
        _
      $region44: #{forward.1} parent=11 // pred_fallthru
        _
    $region12: #{forward.1} parent=5 // pred_fallthru
      _
    %p274 = scmp.lt.s32.totalorder %s15, 2
    // Predicated region
    $region45: #{forward.1} parent=5 // pred_check
      %p275 = pneg %p274
    $region46: #{forward.1} parent=5 // pred_check_branch
      %277 = sbr.rel (%p275) target = $region48
    $region47: #{forward.1} parent=5 // pred_region
      // Predicated region
      $region49: #{forward.1} parent=47 // pred_check
        %p278 = pneg %p35
      $region50: #{forward.1} parent=47 // pred_check_branch
        %280 = sbr.rel (%p278) target = $region52
      $region51: #{forward.1} parent=47 // pred_region
        %p281 = scmp.lt.s32.totalorder %s15, 1
        %s282 = scalar_select %p281, %s15, 1
        %s283 = smul.addr %s282, 8
        %s284 = scalar_lea.vmem %s0, %s283
      $region52: #{forward.1} parent=47 // pred_fallthru
        _
    $region48: #{forward.1} parent=5 // pred_fallthru
      _
    %p285 = scmp.le.s32.totalorder 1, %s15
    %p286 = scmp.lt.s32.totalorder %s15, 3
    %p287 = pnand %p285, %p286
    %p288 = pneg %p287
    // Predicated region
    $region53: #{forward.1} parent=5 // pred_check
      _
    $region54: #{forward.1} parent=5 // pred_check_branch
      %290 = sbr.rel (%p287) target = $region56
    $region55: #{forward.1} parent=5 // pred_region
      %s291 = ssub.s32 %s15, 1
      %p292 = scmp.lt.s32.totalorder %s20, 1
      %s293 = scalar_select %p292, %s20, 1
      %s294 = smul.addr %s293, 8
      %s295 = scalar_lea.vmem %s0, %s294
      %p296 = pneg %p41
      %p297 = pneg %p38
      %p298 = pneg %p62
      %p299 = pneg %p59
      %p300 = pneg %p83
      %p301 = pneg %p80
      %p302 = pneg %p104
      %p303 = pneg %p101
      %p304 = pneg %p125
      %p305 = pneg %p122
      %p306 = pneg %p146
      %p307 = pneg %p143
      %p308 = pneg %p167
      %p309 = pneg %p164
      %p310 = pneg %p188
      %p311 = pneg %p185
      %p312 = pneg %p209
      %p313 = pneg %p206
      %p314 = pneg %p235
      %p315 = pneg %p232
      %p316 = scmp.lt.s32.totalorder %s20, 1
      %s317 = scalar_select %p316, %s20, 1
      %s318 = smul.addr %s317, 4
      %s319 = scalar_lea.vmem %s9, %s318
      %p320 = scmp.lt.s32.totalorder %s20, 1
      %s321 = scalar_select %p320, %s20, 1
      %s322 = smul.addr %s321, 8
      %s323 = scalar_lea.vmem %s0, %s322
      %p324 = scmp.lt.s32.totalorder %s20, 1
      %s325 = scalar_select %p324, %s20, 1
      %s326 = smul.addr %s325, 4
      %s327 = scalar_lea.vmem %s9, %s326
      %v329 = vld [vmem:[%s323] sm:$0xff]
      %v330 = vlaneseq
      %vm331 = vcmp.ge.s32.totalorder %v330, 0
      %vm332 = vcmp.lt.s32.totalorder %v330, 778
      %vm333 = vmand %vm331, %vm332
      %334 = vst.msk [vmem:[#allocation2] ss:$8 sm:$0xf] %vm333, %v329
      %335 = vst.msk [vmem:[#allocation2] ss:$8 sm:$0x70] %vm333, %v329
      %337 = vrot.lane.b32.xlu0 %v329, 127
      %v338 = vpop.permute.xlu0 %337
      %v339 = vrot.slane %v338, 1
      %vm340 = vcmask 1039360
      %v341 = vsel %vm340, %v338, %v339
      %s343 = scalar_lea.vmem [#allocation2], 1
      %344 = vst.msk [vmem:[%s343] ss:$8 sm:$0xf] %vm333, %v341
      %345 = vst.msk [vmem:[%s343] ss:$8 sm:$0x70] %vm333, %v341
      %346 = vrot.lane.b32.xlu0 %v329, 126
      %v347 = vpop.permute.xlu0 %346
      %v348 = vrot.slane %v347, 1
      %vm349 = vcmask 1031168
      %v350 = vsel %vm349, %v347, %v348
      %s352 = scalar_lea.vmem [#allocation2], 2
      %353 = vst.msk [vmem:[%s352] ss:$8 sm:$0xf] %vm333, %v350
      %354 = vst.msk [vmem:[%s352] ss:$8 sm:$0x70] %vm333, %v350
      %355 = vrot.lane.b32.xlu0 %v329, 118
      %v356 = vpop.permute.xlu0 %355
      %v357 = vrot.slane %v356, 1
      %vm358 = vcmask 965632
      %v359 = vsel %vm358, %v356, %v357
      %s361 = scalar_lea.vmem [#allocation2], 3
      %362 = vst.msk [vmem:[%s361] ss:$8 sm:$0xf] %vm333, %v359
      %363 = vst.msk [vmem:[%s361] ss:$8 sm:$0x70] %vm333, %v359
      %364 = vrot.lane.b32.xlu0 %v329, 117
      %v365 = vpop.permute.xlu0 %364
      %v366 = vrot.slane %v365, 1
      %vm367 = vcmask 957440
      %v368 = vsel %vm367, %v365, %v366
      %s370 = scalar_lea.vmem [#allocation2], 4
      %371 = vst.msk [vmem:[%s370] ss:$8 sm:$0xf] %vm333, %v368
      %372 = vst.msk [vmem:[%s370] ss:$8 sm:$0x70] %vm333, %v368
      %373 = vrot.lane.b32.xlu0 %v329, 116
      %v374 = vpop.permute.xlu0 %373
      %v375 = vrot.slane %v374, 1
      %vm376 = vcmask 949248
      %v377 = vsel %vm376, %v374, %v375
      %s379 = scalar_lea.vmem [#allocation2], 5
      %380 = vst.msk [vmem:[%s379] ss:$8 sm:$0xf] %vm333, %v377
      %381 = vst.msk [vmem:[%s379] ss:$8 sm:$0x70] %vm333, %v377
      %382 = vrot.lane.b32.xlu0 %v329, 108
      %v383 = vpop.permute.xlu0 %382
      %v384 = vrot.slane %v383, 1
      %vm385 = vcmask 883712
      %v386 = vsel %vm385, %v383, %v384
      %s388 = scalar_lea.vmem [#allocation2], 6
      %389 = vst.msk [vmem:[%s388] ss:$8 sm:$0xf] %vm333, %v386
      %390 = vst.msk [vmem:[%s388] ss:$8 sm:$0x70] %vm333, %v386
      %391 = vrot.lane.b32.xlu0 %v329, 107
      %v392 = vpop.permute.xlu0 %391
      %v393 = vrot.slane %v392, 1
      %vm394 = vcmask 875520
      %v395 = vsel %vm394, %v392, %v393
      %s397 = scalar_lea.vmem [#allocation2], 7
      %398 = vst.msk [vmem:[%s397] ss:$8 sm:$0xf] %vm333, %v395
      %399 = vst.msk [vmem:[%s397] ss:$8 sm:$0x70] %vm333, %v395
      %400 = vrot.lane.b32.xlu0 %v329, 106
      %v401 = vpop.permute.xlu0 %400
      %v402 = vrot.slane %v401, 1
      %vm403 = vcmask 867328
      %v404 = vsel %vm403, %v401, %v402
      %s406 = scalar_lea.vmem [#allocation2], 56
      %407 = vst.msk [vmem:[%s406] ss:$8 sm:$0xf] %vm333, %v404
      %408 = vst.msk [vmem:[%s406] ss:$8 sm:$0x70] %vm333, %v404
      %409 = vrot.lane.b32.xlu0 %v329, 28
      %v410 = vpop.permute.xlu0 %409
      %v411 = vrot.slane %v410, 1
      %vm412 = vcmask 228352
      %v413 = vsel %vm412, %v410, %v411
      %s415 = scalar_lea.vmem [#allocation2], 57
      %416 = vst.msk [vmem:[%s415] ss:$8 sm:$0xf] %vm333, %v413
      %417 = vst.msk [vmem:[%s415] ss:$8 sm:$0x70] %vm333, %v413
      %418 = vrot.lane.b32.xlu0 %v329, 27
      %v419 = vpop.permute.xlu0 %418
      %v420 = vrot.slane %v419, 1
      %vm421 = vcmask 220160
      %v422 = vsel %vm421, %v419, %v420
      %s424 = scalar_lea.vmem [#allocation2], 58
      %425 = vst.msk [vmem:[%s424] ss:$8 sm:$0xf] %vm333, %v422
      %426 = vst.msk [vmem:[%s424] ss:$8 sm:$0x70] %vm333, %v422
      %427 = vrot.lane.b32.xlu0 %v329, 26
      %v428 = vpop.permute.xlu0 %427
      %v429 = vrot.slane %v428, 1
      %vm430 = vcmask 211968
      %v431 = vsel %vm430, %v428, %v429
      %s433 = scalar_lea.vmem [#allocation2], 59
      %434 = vst.msk [vmem:[%s433] ss:$8 sm:$0xf] %vm333, %v431
      %435 = vst.msk [vmem:[%s433] ss:$8 sm:$0x70] %vm333, %v431
      %436 = vrot.lane.b32.xlu0 %v329, 18
      %v437 = vpop.permute.xlu0 %436
      %v438 = vrot.slane %v437, 1
      %vm439 = vcmask 146432
      %v440 = vsel %vm439, %v437, %v438
      %s442 = scalar_lea.vmem [#allocation2], 60
      %443 = vst.msk [vmem:[%s442] ss:$8 sm:$0xf] %vm333, %v440
      %444 = vst.msk [vmem:[%s442] ss:$8 sm:$0x70] %vm333, %v440
      %445 = vrot.lane.b32.xlu0 %v329, 17
      %v446 = vpop.permute.xlu0 %445
      %v447 = vrot.slane %v446, 1
      %vm448 = vcmask 138240
      %v449 = vsel %vm448, %v446, %v447
      %s451 = scalar_lea.vmem [#allocation2], 61
      %452 = vst.msk [vmem:[%s451] ss:$8 sm:$0xf] %vm333, %v449
      %453 = vst.msk [vmem:[%s451] ss:$8 sm:$0x70] %vm333, %v449
      %454 = vrot.lane.b32.xlu0 %v329, 16
      %v455 = vpop.permute.xlu0 %454
      %v456 = vrot.slane %v455, 1
      %vm457 = vcmask 130048
      %v458 = vsel %vm457, %v455, %v456
      %s460 = scalar_lea.vmem [#allocation2], 62
      %461 = vst.msk [vmem:[%s460] ss:$8 sm:$0xf] %vm333, %v458
      %462 = vst.msk [vmem:[%s460] ss:$8 sm:$0x70] %vm333, %v458
      %463 = vrot.lane.b32.xlu0 %v329, 8
      %v464 = vpop.permute.xlu0 %463
      %v465 = vrot.slane %v464, 1
      %vm466 = vcmask 64512
      %v467 = vsel %vm466, %v464, %v465
      %s469 = scalar_lea.vmem [#allocation2], 63
      %470 = vst.msk [vmem:[%s469] ss:$8 sm:$0xf] %vm333, %v467
      %471 = vst.msk [vmem:[%s469] ss:$8 sm:$0x70] %vm333, %v467
      %472 = vrot.lane.b32.xlu0 %v329, 7
      %v473 = vpop.permute.xlu0 %472
      %v474 = vrot.slane %v473, 1
      %vm475 = vcmask 56320
      %v476 = vsel %vm475, %v473, %v474
      %s478 = scalar_lea.vmem [#allocation2], 112
      %479 = vst.msk [vmem:[%s478] ss:$8 sm:$0xf] %vm333, %v476
      %480 = vst.msk [vmem:[%s478] ss:$8 sm:$0x70] %vm333, %v476
      %481 = vrot.lane.b32.xlu0 %v329, 6
      %v482 = vpop.permute.xlu0 %481
      %v483 = vrot.slane %v482, 1
      %vm484 = vcmask 48128
      %v485 = vsel %vm484, %v482, %v483
      %s487 = scalar_lea.vmem [#allocation2], 113
      %488 = vst.msk [vmem:[%s487] ss:$8 sm:$0xf] %vm333, %v485
      %489 = vst.msk [vmem:[%s487] ss:$8 sm:$0x70] %vm333, %v485
      %490 = vrot.lane.b32.xlu0 %v329, 56
      %v491 = vpop.permute.xlu0 %490
      %v492 = vrot.slane %v491, 1
      %v493 = vrot.slane %v491, 2
      %vm494 = vcmask 457728
      %v495 = vsel %vm494, %v492, %v493
      %s497 = scalar_lea.vmem [#allocation2], 114
      %498 = vst.msk [vmem:[%s497] ss:$8 sm:$0xf] %vm333, %v495
      %499 = vst.msk [vmem:[%s497] ss:$8 sm:$0x70] %vm333, %v495
      %500 = vrot.lane.b32.xlu0 %v329, 55
      %v501 = vpop.permute.xlu0 %500
      %v502 = vrot.slane %v501, 1
      %v503 = vrot.slane %v501, 2
      %vm504 = vcmask 449536
      %v505 = vsel %vm504, %v502, %v503
      %s507 = scalar_lea.vmem [#allocation2], 115
      %508 = vst.msk [vmem:[%s507] ss:$8 sm:$0xf] %vm333, %v505
      %509 = vst.msk [vmem:[%s507] ss:$8 sm:$0x70] %vm333, %v505
      %510 = vrot.lane.b32.xlu0 %v329, 54
      %v511 = vpop.permute.xlu0 %510
      %v512 = vrot.slane %v511, 1
      %v513 = vrot.slane %v511, 2
      %vm514 = vcmask 441344
      %v515 = vsel %vm514, %v512, %v513
      %s517 = scalar_lea.vmem [#allocation2], 116
      %518 = vst.msk [vmem:[%s517] ss:$8 sm:$0xf] %vm333, %v515
      %519 = vst.msk [vmem:[%s517] ss:$8 sm:$0x70] %vm333, %v515
      %520 = vrot.lane.b32.xlu0 %v329, 46
      %v521 = vpop.permute.xlu0 %520
      %v522 = vrot.slane %v521, 1
      %v523 = vrot.slane %v521, 2
      %vm524 = vcmask 375808
      %v525 = vsel %vm524, %v522, %v523
      %s527 = scalar_lea.vmem [#allocation2], 117
      %528 = vst.msk [vmem:[%s527] ss:$8 sm:$0xf] %vm333, %v525
      %529 = vst.msk [vmem:[%s527] ss:$8 sm:$0x70] %vm333, %v525
      %530 = vrot.lane.b32.xlu0 %v329, 45
      %v531 = vpop.permute.xlu0 %530
      %v532 = vrot.slane %v531, 1
      %v533 = vrot.slane %v531, 2
      %vm534 = vcmask 367616
      %v535 = vsel %vm534, %v532, %v533
      %s537 = scalar_lea.vmem [#allocation2], 118
      %538 = vst.msk [vmem:[%s537] ss:$8 sm:$0xf] %vm333, %v535
      %539 = vst.msk [vmem:[%s537] ss:$8 sm:$0x70] %vm333, %v535
      %540 = vrot.lane.b32.xlu0 %v329, 44
      %v541 = vpop.permute.xlu0 %540
      %v542 = vrot.slane %v541, 1
      %v543 = vrot.slane %v541, 2
      %vm544 = vcmask 359424
      %v545 = vsel %vm544, %v542, %v543
      %s547 = scalar_lea.vmem [#allocation2], 119
      %548 = vst.msk [vmem:[%s547] ss:$8 sm:$0xf] %vm333, %v545
      %549 = vst.msk [vmem:[%s547] ss:$8 sm:$0x70] %vm333, %v545
      %550 = vrot.lane.b32.xlu0 %v329, 36
      %v551 = vpop.permute.xlu0 %550
      %v552 = vrot.slane %v551, 1
      %v553 = vrot.slane %v551, 2
      %vm554 = vcmask 293888
      %v555 = vsel %vm554, %v552, %v553
      %s557 = scalar_lea.vmem [#allocation2], 168
      %558 = vst.msk [vmem:[%s557] ss:$8 sm:$0xf] %vm333, %v555
      %559 = vst.msk [vmem:[%s557] ss:$8 sm:$0x70] %vm333, %v555
      %560 = vrot.lane.b32.xlu0 %v329, 35
      %v561 = vpop.permute.xlu0 %560
      %v562 = vrot.slane %v561, 1
      %v563 = vrot.slane %v561, 2
      %vm564 = vcmask 285696
      %v565 = vsel %vm564, %v562, %v563
      %s567 = scalar_lea.vmem [#allocation2], 169
      %568 = vst.msk [vmem:[%s567] ss:$8 sm:$0xf] %vm333, %v565
      %569 = vst.msk [vmem:[%s567] ss:$8 sm:$0x70] %vm333, %v565
      %570 = vrot.lane.b32.xlu0 %v329, 34
      %v571 = vpop.permute.xlu0 %570
      %v572 = vrot.slane %v571, 1
      %v573 = vrot.slane %v571, 2
      %vm574 = vcmask 277504
      %v575 = vsel %vm574, %v572, %v573
      %s577 = scalar_lea.vmem [#allocation2], 170
      %578 = vst.msk [vmem:[%s577] ss:$8 sm:$0xf] %vm333, %v575
      %579 = vst.msk [vmem:[%s577] ss:$8 sm:$0x70] %vm333, %v575
      %v580 = vld [vmem:[%s1] sm:$0xff]
      %v581 = vld [vmem:[%s1 + $0x8] sm:$0xff]
      %v582 = vld [vmem:[#allocation2] sm:$0xff]
      %v583 = vld [vmem:[#allocation2 + $0x8] sm:$0xff]
      %v584 = vld [vmem:[#allocation2 + $0x10] sm:$0xff]
      %v585 = vld [vmem:[#allocation2 + $0x18] sm:$0xff]
      %v586 = vld [vmem:[#allocation2 + $0x20] sm:$0xff]
      %v587 = vld [vmem:[#allocation2 + $0x28] sm:$0xff]
      %v588 = vld [vmem:[#allocation2 + $0x30] sm:$0xff]
      %v589 = vld [vmem:[#allocation2 + $0x38] sm:$0xff]
      %v590 = vld [vmem:[#allocation2 + $0x40] sm:$0xff]
      %v591 = vld [vmem:[#allocation2 + $0x48] sm:$0xff]
      %v592 = vld [vmem:[#allocation2 + $0x50] sm:$0xff]
      %v593 = vld [vmem:[#allocation2 + $0x58] sm:$0xff]
      %v594 = vld [vmem:[#allocation2 + $0x60] sm:$0xff]
      %v595 = vld [vmem:[#allocation2 + $0x68] sm:$0xff]
      %v596 = vld [vmem:[#allocation2 + $0x70] sm:$0xff]
      %v597 = vld [vmem:[#allocation2 + $0x78] sm:$0xff]
      %v598 = vld [vmem:[#allocation2 + $0x80] sm:$0xff]
      %v599 = vld [vmem:[#allocation2 + $0x88] sm:$0xff]
      %v600 = vld [vmem:[#allocation2 + $0x90] sm:$0xff]
      %v601 = vld [vmem:[#allocation2 + $0x98] sm:$0xff]
      %v602 = vld [vmem:[#allocation2 + $0xa0] sm:$0xff]
      %v603 = vld [vmem:[#allocation2 + $0xa8] sm:$0x7]
      %v604 = vld [vmem:[#allocation2 + $0xb0] sm:$0x7]
      %v605 = vld [vmem:[#allocation2 + $0xb8] sm:$0x7]
      %v606 = vld [vmem:[#allocation2 + $0xc0] sm:$0x7]
      %v607 = vld [vmem:[#allocation2 + $0xc8] sm:$0x7]
      %v608 = vld [vmem:[#allocation2 + $0xd0] sm:$0x7]
      %v609 = vld [vmem:[#allocation2 + $0xd8] sm:$0x7]
      %v611 = vsel %vm421, %v580, 0
      %v614 = vsel %vm421, %v581, 0
      %vm616 = vcmask 1042432
      %v618 = vsel %vm616, %v603, 0
      %v621 = vsel %vm616, %v604, 0
      %v624 = vsel %vm616, %v605, 0
      %v627 = vsel %vm616, %v606, 0
      %v630 = vsel %vm616, %v607, 0
      %v633 = vsel %vm616, %v608, 0
      %v636 = vsel %vm616, %v609, 0
      %638 = vmatprep.subr.mxu0 %v583
      %639 = vmatpush1.msra.mxu0 %v582
      %640 = vmatprep.subr.mxu0 %v590
      %641 = vmatpush1.msra.mxu0 %v589
      %642 = vmatprep.subr.mxu0 %v597
      %643 = vmatpush1.msra.mxu0 %v596
      %644 = vmatprep.subr.mxu0 %v621
      %645 = vmatpush1.msra.mxu0 %v618
      %646 = vmatprep.subr.mxu0 0.0
      %647 = vmatpush1.msra.mxu0 0.0
      %648 = vmatprep.subr.mxu0 0.0
      %649 = vmatpush1.msra.mxu0 0.0
      %650 = vmatprep.subr.mxu0 0.0
      %651 = vmatpush1.msra.mxu0 0.0
      %652 = vmatprep.subr.mxu0 0.0
      %653 = vmatpush1.msra.mxu0 0.0
      %654 = vmatprep.subr.mxu0 0.0
      %655 = vmatpush1.msra.mxu0 0.0
      %656 = vmatprep.subr.mxu0 0.0
      %657 = vmatpush1.msra.mxu0 0.0
      %658 = vmatprep.subr.mxu0 0.0
      %659 = vmatpush1.msra.mxu0 0.0
      %660 = vmatprep.subr.mxu0 0.0
      %661 = vmatpush1.msra.mxu0 0.0
      %662 = vmatprep.subr.mxu0 0.0
      %663 = vmatpush1.msra.mxu0 0.0
      %664 = vmatprep.subr.mxu0 0.0
      %665 = vmatpush1.msra.mxu0 0.0
      %666 = vmatprep.subr.mxu0 0.0
      %667 = vmatpush1.msra.mxu0 0.0
      %668 = vmatprep.subr.mxu0 0.0
      %669 = vmatpush1.msra.mxu0 0.0
      %670 = vmatprep.subr.mxu0 0.0
      %671 = vmatpush1.msra.mxu0 0.0
      %672 = vmatprep.subr.mxu0 0.0
      %673 = vmatpush1.msra.mxu0 0.0
      %674 = vmatprep.subr.mxu0 0.0
      %675 = vmatpush1.msra.mxu0 0.0
      %676 = vmatprep.subr.mxu0 0.0
      %677 = vmatpush1.msra.mxu0 0.0
      %678 = vmatprep.subr.mxu0 0.0
      %679 = vmatpush1.msra.mxu0 0.0
      %680 = vmatprep.subr.mxu0 0.0
      %681 = vmatpush1.msra.mxu0 0.0
      %682 = vmatprep.subr.mxu0 0.0
      %683 = vmatpush1.msra.mxu0 0.0
      %684 = vmatprep.subr.mxu0 0.0
      %685 = vmatpush1.msra.mxu0 0.0
      %686 = vmatprep.subr.mxu0 0.0
      %687 = vmatpush1.msra.mxu0 0.0
      %688 = vmatprep.subr.mxu0 0.0
      %689 = vmatpush1.msra.mxu0 0.0
      %690 = vmatprep.subr.mxu0 0.0
      %691 = vmatpush1.msra.mxu0 0.0
      %692 = vmatprep.subr.mxu0 0.0
      %693 = vmatpush1.msra.mxu0 0.0
      %694 = vmatprep.subr.mxu0 0.0
      %695 = vmatpush1.msra.mxu0 0.0
      %696 = vmatprep.subr.mxu0 0.0
      %697 = vmatpush1.msra.mxu0 0.0
      %698 = vmatprep.subr.mxu0 0.0
      %699 = vmatpush1.msra.mxu0 0.0
      %700 = vmatprep.subr.mxu0 0.0
      %701 = vmatpush1.msra.mxu0 0.0
      %702 = vmatprep.mubr.f32.mxu0 0.0
      %703 = vmatmul.mubr.f32.gmra.mrb[0].mxu0 %v611
      %v704 = vpop.f32.mrb[0].mxu0
      %v705 = vadd.f32 0.0, %v704
      %v706 = vpop.f32.mrb[0].mxu0
      %v707 = vadd.f32 0.0, %v706
      %708 = vmatprep.mubr.f32.mxu0 0.0
      %709 = vmatmul.mubr.f32.gmra.mrb[0].mxu0 %v614
      %v710 = vpop.f32.mrb[0].mxu0
      %v711 = vadd.f32 0.0, %v710
      %v712 = vpop.f32.mrb[0].mxu0
      %v713 = vadd.f32 0.0, %v712
      %714 = vdwg.mxu0
      %715 = vmatprep.subr.mxu0 %v585
      %716 = vmatpush1.msra.mxu0 %v584
      %717 = vmatprep.subr.mxu0 %v592
      %718 = vmatpush1.msra.mxu0 %v591
      %719 = vmatprep.subr.mxu0 %v599
      %720 = vmatpush1.msra.mxu0 %v598
      %721 = vmatprep.subr.mxu0 %v627
      %722 = vmatpush1.msra.mxu0 %v624
      %723 = vmatprep.subr.mxu0 0.0
      %724 = vmatpush1.msra.mxu0 0.0
      %725 = vmatprep.subr.mxu0 0.0
      %726 = vmatpush1.msra.mxu0 0.0
      %727 = vmatprep.subr.mxu0 0.0
      %728 = vmatpush1.msra.mxu0 0.0
      %729 = vmatprep.subr.mxu0 0.0
      %730 = vmatpush1.msra.mxu0 0.0
      %731 = vmatprep.subr.mxu0 0.0
      %732 = vmatpush1.msra.mxu0 0.0
      %733 = vmatprep.subr.mxu0 0.0
      %734 = vmatpush1.msra.mxu0 0.0
      %735 = vmatprep.subr.mxu0 0.0
      %736 = vmatpush1.msra.mxu0 0.0
      %737 = vmatprep.subr.mxu0 0.0
      %738 = vmatpush1.msra.mxu0 0.0
      %739 = vmatprep.subr.mxu0 0.0
      %740 = vmatpush1.msra.mxu0 0.0
      %741 = vmatprep.subr.mxu0 0.0
      %742 = vmatpush1.msra.mxu0 0.0
      %743 = vmatprep.subr.mxu0 0.0
      %744 = vmatpush1.msra.mxu0 0.0
      %745 = vmatprep.subr.mxu0 0.0
      %746 = vmatpush1.msra.mxu0 0.0
      %747 = vmatprep.subr.mxu0 0.0
      %748 = vmatpush1.msra.mxu0 0.0
      %749 = vmatprep.subr.mxu0 0.0
      %750 = vmatpush1.msra.mxu0 0.0
      %751 = vmatprep.subr.mxu0 0.0
      %752 = vmatpush1.msra.mxu0 0.0
      %753 = vmatprep.subr.mxu0 0.0
      %754 = vmatpush1.msra.mxu0 0.0
      %755 = vmatprep.subr.mxu0 0.0
      %756 = vmatpush1.msra.mxu0 0.0
      %757 = vmatprep.subr.mxu0 0.0
      %758 = vmatpush1.msra.mxu0 0.0
      %759 = vmatprep.subr.mxu0 0.0
      %760 = vmatpush1.msra.mxu0 0.0
      %761 = vmatprep.subr.mxu0 0.0
      %762 = vmatpush1.msra.mxu0 0.0
      %763 = vmatprep.subr.mxu0 0.0
      %764 = vmatpush1.msra.mxu0 0.0
      %765 = vmatprep.subr.mxu0 0.0
      %766 = vmatpush1.msra.mxu0 0.0
      %767 = vmatprep.subr.mxu0 0.0
      %768 = vmatpush1.msra.mxu0 0.0
      %769 = vmatprep.subr.mxu0 0.0
      %770 = vmatpush1.msra.mxu0 0.0
      %771 = vmatprep.subr.mxu0 0.0
      %772 = vmatpush1.msra.mxu0 0.0
      %773 = vmatprep.subr.mxu0 0.0
      %774 = vmatpush1.msra.mxu0 0.0
      %775 = vmatprep.subr.mxu0 0.0
      %776 = vmatpush1.msra.mxu0 0.0
      %777 = vmatprep.subr.mxu0 0.0
      %778 = vmatpush1.msra.mxu0 0.0
      %779 = vmatprep.mubr.f32.mxu0 0.0
      %780 = vmatmul.mubr.f32.gmra.mrb[0].mxu0 %v611
      %v781 = vpop.f32.mrb[0].mxu0
      %v782 = vadd.f32 0.0, %v781
      %v783 = vpop.f32.mrb[0].mxu0
      %v784 = vadd.f32 0.0, %v783
      %785 = vmatprep.mubr.f32.mxu0 0.0
      %786 = vmatmul.mubr.f32.gmra.mrb[0].mxu0 %v614
      %v787 = vpop.f32.mrb[0].mxu0
      %v788 = vadd.f32 0.0, %v787
      %v789 = vpop.f32.mrb[0].mxu0
      %v790 = vadd.f32 0.0, %v789
      %791 = vdwg.mxu0
      %792 = vmatprep.subr.mxu0 %v587
      %793 = vmatpush1.msra.mxu0 %v586
      %794 = vmatprep.subr.mxu0 %v594
      %795 = vmatpush1.msra.mxu0 %v593
      %796 = vmatprep.subr.mxu0 %v601
      %797 = vmatpush1.msra.mxu0 %v600
      %798 = vmatprep.subr.mxu0 %v633
      %799 = vmatpush1.msra.mxu0 %v630
      %800 = vmatprep.subr.mxu0 0.0
      %801 = vmatpush1.msra.mxu0 0.0
      %802 = vmatprep.subr.mxu0 0.0
      %803 = vmatpush1.msra.mxu0 0.0
      %804 = vmatprep.subr.mxu0 0.0
      %805 = vmatpush1.msra.mxu0 0.0
      %806 = vmatprep.subr.mxu0 0.0
      %807 = vmatpush1.msra.mxu0 0.0
      %808 = vmatprep.subr.mxu0 0.0
      %809 = vmatpush1.msra.mxu0 0.0
      %810 = vmatprep.subr.mxu0 0.0
      %811 = vmatpush1.msra.mxu0 0.0
      %812 = vmatprep.subr.mxu0 0.0
      %813 = vmatpush1.msra.mxu0 0.0
      %814 = vmatprep.subr.mxu0 0.0
      %815 = vmatpush1.msra.mxu0 0.0
      %816 = vmatprep.subr.mxu0 0.0
      %817 = vmatpush1.msra.mxu0 0.0
      %818 = vmatprep.subr.mxu0 0.0
      %819 = vmatpush1.msra.mxu0 0.0
      %820 = vmatprep.subr.mxu0 0.0
      %821 = vmatpush1.msra.mxu0 0.0
      %822 = vmatprep.subr.mxu0 0.0
      %823 = vmatpush1.msra.mxu0 0.0
      %824 = vmatprep.subr.mxu0 0.0
      %825 = vmatpush1.msra.mxu0 0.0
      %826 = vmatprep.subr.mxu0 0.0
      %827 = vmatpush1.msra.mxu0 0.0
      %828 = vmatprep.subr.mxu0 0.0
      %829 = vmatpush1.msra.mxu0 0.0
      %830 = vmatprep.subr.mxu0 0.0
      %831 = vmatpush1.msra.mxu0 0.0
      %832 = vmatprep.subr.mxu0 0.0
      %833 = vmatpush1.msra.mxu0 0.0
      %834 = vmatprep.subr.mxu0 0.0
      %835 = vmatpush1.msra.mxu0 0.0
      %836 = vmatprep.subr.mxu0 0.0
      %837 = vmatpush1.msra.mxu0 0.0
      %838 = vmatprep.subr.mxu0 0.0
      %839 = vmatpush1.msra.mxu0 0.0
      %840 = vmatprep.subr.mxu0 0.0
      %841 = vmatpush1.msra.mxu0 0.0
      %842 = vmatprep.subr.mxu0 0.0
      %843 = vmatpush1.msra.mxu0 0.0
      %844 = vmatprep.subr.mxu0 0.0
      %845 = vmatpush1.msra.mxu0 0.0
      %846 = vmatprep.subr.mxu0 0.0
      %847 = vmatpush1.msra.mxu0 0.0
      %848 = vmatprep.subr.mxu0 0.0
      %849 = vmatpush1.msra.mxu0 0.0
      %850 = vmatprep.subr.mxu0 0.0
      %851 = vmatpush1.msra.mxu0 0.0
      %852 = vmatprep.subr.mxu0 0.0
      %853 = vmatpush1.msra.mxu0 0.0
      %854 = vmatprep.subr.mxu0 0.0
      %855 = vmatpush1.msra.mxu0 0.0
      %856 = vmatprep.mubr.f32.mxu0 0.0
      %857 = vmatmul.mubr.f32.gmra.mrb[0].mxu0 %v611
      %v858 = vpop.f32.mrb[0].mxu0
      %v859 = vadd.f32 0.0, %v858
      %v860 = vpop.f32.mrb[0].mxu0
      %v861 = vadd.f32 0.0, %v860
      %862 = vmatprep.mubr.f32.mxu0 0.0
      %863 = vmatmul.mubr.f32.gmra.mrb[0].mxu0 %v614
      %v864 = vpop.f32.mrb[0].mxu0
      %v865 = vadd.f32 0.0, %v864
      %v866 = vpop.f32.mrb[0].mxu0
      %v867 = vadd.f32 0.0, %v866
      %868 = vdwg.mxu0
      %869 = vmatprep.subr.mxu0 0.0
      %870 = vmatpush1.msra.mxu0 %v588
      %871 = vmatprep.subr.mxu0 0.0
      %872 = vmatpush1.msra.mxu0 %v595
      %873 = vmatprep.subr.mxu0 0.0
      %874 = vmatpush1.msra.mxu0 %v602
      %875 = vmatprep.subr.mxu0 0.0
      %876 = vmatpush1.msra.mxu0 %v636
      %877 = vmatprep.subr.mxu0 0.0
      %878 = vmatpush1.msra.mxu0 0.0
      %879 = vmatprep.subr.mxu0 0.0
      %880 = vmatpush1.msra.mxu0 0.0
      %881 = vmatprep.subr.mxu0 0.0
      %882 = vmatpush1.msra.mxu0 0.0
      %883 = vmatprep.subr.mxu0 0.0
      %884 = vmatpush1.msra.mxu0 0.0
      %885 = vmatprep.subr.mxu0 0.0
      %886 = vmatpush1.msra.mxu0 0.0
      %887 = vmatprep.subr.mxu0 0.0
      %888 = vmatpush1.msra.mxu0 0.0
      %889 = vmatprep.subr.mxu0 0.0
      %890 = vmatpush1.msra.mxu0 0.0
      %891 = vmatprep.subr.mxu0 0.0
      %892 = vmatpush1.msra.mxu0 0.0
      %893 = vmatprep.subr.mxu0 0.0
      %894 = vmatpush1.msra.mxu0 0.0
      %895 = vmatprep.subr.mxu0 0.0
      %896 = vmatpush1.msra.mxu0 0.0
      %897 = vmatprep.subr.mxu0 0.0
      %898 = vmatpush1.msra.mxu0 0.0
      %899 = vmatprep.subr.mxu0 0.0
      %900 = vmatpush1.msra.mxu0 0.0
      %901 = vmatprep.subr.mxu0 0.0
      %902 = vmatpush1.msra.mxu0 0.0
      %903 = vmatprep.subr.mxu0 0.0
      %904 = vmatpush1.msra.mxu0 0.0
      %905 = vmatprep.subr.mxu0 0.0
      %906 = vmatpush1.msra.mxu0 0.0
      %907 = vmatprep.subr.mxu0 0.0
      %908 = vmatpush1.msra.mxu0 0.0
      %909 = vmatprep.subr.mxu0 0.0
      %910 = vmatpush1.msra.mxu0 0.0
      %911 = vmatprep.subr.mxu0 0.0
      %912 = vmatpush1.msra.mxu0 0.0
      %913 = vmatprep.subr.mxu0 0.0
      %914 = vmatpush1.msra.mxu0 0.0
      %915 = vmatprep.subr.mxu0 0.0
      %916 = vmatpush1.msra.mxu0 0.0
      %917 = vmatprep.subr.mxu0 0.0
      %918 = vmatpush1.msra.mxu0 0.0
      %919 = vmatprep.subr.mxu0 0.0
      %920 = vmatpush1.msra.mxu0 0.0
      %921 = vmatprep.subr.mxu0 0.0
      %922 = vmatpush1.msra.mxu0 0.0
      %923 = vmatprep.subr.mxu0 0.0
      %924 = vmatpush1.msra.mxu0 0.0
      %925 = vmatprep.subr.mxu0 0.0
      %926 = vmatpush1.msra.mxu0 0.0
      %927 = vmatprep.subr.mxu0 0.0
      %928 = vmatpush1.msra.mxu0 0.0
      %929 = vmatprep.subr.mxu0 0.0
      %930 = vmatpush1.msra.mxu0 0.0
      %931 = vmatprep.subr.mxu0 0.0
      %932 = vmatpush1.msra.mxu0 0.0
      %933 = vmatprep.mubr.f32.mxu0 0.0
      %934 = vmatmul.mubr.f32.gmra.mrb[0].mxu0 %v611
      %v935 = vpop.f32.mrb[0].mxu0
      %v936 = vadd.f32 0.0, %v935
      %v937 = vpop.f32.mrb[0].mxu0
      %938 = vmatprep.mubr.f32.mxu0 0.0
      %939 = vmatmul.mubr.f32.gmra.mrb[0].mxu0 %v614
      %v940 = vpop.f32.mrb[0].mxu0
      %v941 = vadd.f32 0.0, %v940
      %v942 = vpop.f32.mrb[0].mxu0
      %943 = vdwg.mxu0
      %v944 = vld [vmem:[%s4] sm:$0xff]
      %v945 = vld [vmem:[%s4 + $0x8] sm:$0xff]
      %947 = vset.pattern.permute.xlu0 0
      %948 = vperm.xlu0 %947, %v944
      %v949 = vpop.permute.xlu0 %948
      %952 = vset.pattern.permute.xlu0 0
      %953 = vperm.xlu0 %952, %v945
      %v954 = vpop.permute.xlu0 %953
      %v956 = vmul.f32 %v705, %v949
      %v957 = vmul.f32 %v707, %v949
      %v958 = vmul.f32 %v782, %v949
      %v959 = vmul.f32 %v784, %v949
      %v960 = vmul.f32 %v859, %v949
      %v961 = vmul.f32 %v861, %v949
      %v962 = vmul.f32 %v936, %v949
      %v963 = vmul.f32 %v711, %v954
      %v964 = vmul.f32 %v713, %v954
      %v965 = vmul.f32 %v788, %v954
      %v966 = vmul.f32 %v790, %v954
      %v967 = vmul.f32 %v865, %v954
      %v968 = vmul.f32 %v867, %v954
      %v969 = vmul.f32 %v941, %v954
      %970 = vset.pattern.permute.xlu0 1
      %971 = vperm.xlu0 %970, %v944
      %v972 = vpop.permute.xlu0 %971
      %974 = vset.pattern.permute.xlu0 1
      %975 = vperm.xlu0 %974, %v945
      %v976 = vpop.permute.xlu0 %975
      %v978 = vadd.f32 %v956, %v972
      %v979 = vadd.f32 %v957, %v972
      %v980 = vadd.f32 %v958, %v972
      %v981 = vadd.f32 %v959, %v972
      %v982 = vadd.f32 %v960, %v972
      %v983 = vadd.f32 %v961, %v972
      %v984 = vadd.f32 %v962, %v972
      %v985 = vadd.f32 %v963, %v976
      %v986 = vadd.f32 %v964, %v976
      %v987 = vadd.f32 %v965, %v976
      %v988 = vadd.f32 %v966, %v976
      %v989 = vadd.f32 %v967, %v976
      %v990 = vadd.f32 %v968, %v976
      %v991 = vadd.f32 %v969, %v976
      %v992 = vmax.f32 %v978, 0.0
      %v993 = vmax.f32 %v979, 0.0
      %v994 = vmax.f32 %v980, 0.0
      %v995 = vmax.f32 %v981, 0.0
      %v996 = vmax.f32 %v982, 0.0
      %v997 = vmax.f32 %v983, 0.0
      %v998 = vmax.f32 %v984, 0.0
      %v999 = vmax.f32 %v985, 0.0
      %v1000 = vmax.f32 %v986, 0.0
      %v1001 = vmax.f32 %v987, 0.0
      %v1002 = vmax.f32 %v988, 0.0
      %v1003 = vmax.f32 %v989, 0.0
      %v1004 = vmax.f32 %v990, 0.0
      %v1005 = vmax.f32 %v991, 0.0
      %1020 = vrot.lane.b32.xlu0 %v992, 127
      %v1021 = vpop.permute.xlu0 %1020
      %1022 = vrot.lane.b32.xlu0 %v993, 127
      %v1023 = vpop.permute.xlu0 %1022
      %1024 = vrot.lane.b32.xlu0 %v994, 127
      %v1025 = vpop.permute.xlu0 %1024
      %1026 = vrot.lane.b32.xlu0 %v995, 127
      %v1027 = vpop.permute.xlu0 %1026
      %1028 = vrot.lane.b32.xlu0 %v996, 127
      %v1029 = vpop.permute.xlu0 %1028
      %1030 = vrot.lane.b32.xlu0 %v997, 127
      %v1031 = vpop.permute.xlu0 %1030
      %1032 = vrot.lane.b32.xlu0 %v998, 127
      %v1033 = vpop.permute.xlu0 %1032
      %1034 = vrot.lane.b32.xlu0 %v999, 127
      %v1035 = vpop.permute.xlu0 %1034
      %1036 = vrot.lane.b32.xlu0 %v1000, 127
      %v1037 = vpop.permute.xlu0 %1036
      %1038 = vrot.lane.b32.xlu0 %v1001, 127
      %v1039 = vpop.permute.xlu0 %1038
      %1040 = vrot.lane.b32.xlu0 %v1002, 127
      %v1041 = vpop.permute.xlu0 %1040
      %1042 = vrot.lane.b32.xlu0 %v1003, 127
      %v1043 = vpop.permute.xlu0 %1042
      %1044 = vrot.lane.b32.xlu0 %v1004, 127
      %v1045 = vpop.permute.xlu0 %1044
      %1046 = vrot.lane.b32.xlu0 %v1005, 127
      %v1047 = vpop.permute.xlu0 %1046
      %v1048 = vsel %vm340, %v1021, %v1023
      %v1049 = vsel %vm340, %v1023, %v1025
      %v1050 = vsel %vm340, %v1025, %v1027
      %v1051 = vsel %vm340, %v1027, %v1029
      %v1052 = vsel %vm340, %v1029, %v1031
      %v1053 = vsel %vm340, %v1031, %v1033
      %v1054 = vsel %vm340, %v1035, %v1037
      %v1055 = vsel %vm340, %v1037, %v1039
      %v1056 = vsel %vm340, %v1039, %v1041
      %v1057 = vsel %vm340, %v1041, %v1043
      %v1058 = vsel %vm340, %v1043, %v1045
      %v1059 = vsel %vm340, %v1045, %v1047
      %v1074 = vmax.f32 %v992, %v1048
      %v1075 = vmax.f32 %v993, %v1049
      %v1076 = vmax.f32 %v994, %v1050
      %v1077 = vmax.f32 %v995, %v1051
      %v1078 = vmax.f32 %v996, %v1052
      %v1079 = vmax.f32 %v997, %v1053
      %v1080 = vmax.f32 %v998, %v1033
      %v1081 = vmax.f32 %v999, %v1054
      %v1082 = vmax.f32 %v1000, %v1055
      %v1083 = vmax.f32 %v1001, %v1056
      %v1084 = vmax.f32 %v1002, %v1057
      %v1085 = vmax.f32 %v1003, %v1058
      %v1086 = vmax.f32 %v1004, %v1059
      %v1087 = vmax.f32 %v1005, %v1047
      %1102 = vrot.lane.b32.xlu0 %v1074, 118
      %v1103 = vpop.permute.xlu0 %1102
      %1104 = vrot.lane.b32.xlu0 %v1075, 118
      %v1105 = vpop.permute.xlu0 %1104
      %1106 = vrot.lane.b32.xlu0 %v1076, 118
      %v1107 = vpop.permute.xlu0 %1106
      %1108 = vrot.lane.b32.xlu0 %v1077, 118
      %v1109 = vpop.permute.xlu0 %1108
      %1110 = vrot.lane.b32.xlu0 %v1078, 118
      %v1111 = vpop.permute.xlu0 %1110
      %1112 = vrot.lane.b32.xlu0 %v1079, 118
      %v1113 = vpop.permute.xlu0 %1112
      %1114 = vrot.lane.b32.xlu0 %v1080, 118
      %v1115 = vpop.permute.xlu0 %1114
      %1116 = vrot.lane.b32.xlu0 %v1081, 118
      %v1117 = vpop.permute.xlu0 %1116
      %1118 = vrot.lane.b32.xlu0 %v1082, 118
      %v1119 = vpop.permute.xlu0 %1118
      %1120 = vrot.lane.b32.xlu0 %v1083, 118
      %v1121 = vpop.permute.xlu0 %1120
      %1122 = vrot.lane.b32.xlu0 %v1084, 118
      %v1123 = vpop.permute.xlu0 %1122
      %1124 = vrot.lane.b32.xlu0 %v1085, 118
      %v1125 = vpop.permute.xlu0 %1124
      %1126 = vrot.lane.b32.xlu0 %v1086, 118
      %v1127 = vpop.permute.xlu0 %1126
      %1128 = vrot.lane.b32.xlu0 %v1087, 118
      %v1129 = vpop.permute.xlu0 %1128
      %v1130 = vsel %vm358, %v1103, %v1105
      %v1131 = vsel %vm358, %v1105, %v1107
      %v1132 = vsel %vm358, %v1107, %v1109
      %v1133 = vsel %vm358, %v1109, %v1111
      %v1134 = vsel %vm358, %v1111, %v1113
      %v1135 = vsel %vm358, %v1113, %v1115
      %v1136 = vsel %vm358, %v1117, %v1119
      %v1137 = vsel %vm358, %v1119, %v1121
      %v1138 = vsel %vm358, %v1121, %v1123
      %v1139 = vsel %vm358, %v1123, %v1125
      %v1140 = vsel %vm358, %v1125, %v1127
      %v1141 = vsel %vm358, %v1127, %v1129
      %v1154 = vmax.f32 %v1074, %v1130
      %v1155 = vmax.f32 %v1075, %v1131
      %v1156 = vmax.f32 %v1076, %v1132
      %v1157 = vmax.f32 %v1077, %v1133
      %v1158 = vmax.f32 %v1078, %v1134
      %v1159 = vmax.f32 %v1079, %v1135
      %v1160 = vmax.f32 %v1081, %v1136
      %v1161 = vmax.f32 %v1082, %v1137
      %v1162 = vmax.f32 %v1083, %v1138
      %v1163 = vmax.f32 %v1084, %v1139
      %v1164 = vmax.f32 %v1085, %v1140
      %v1165 = vmax.f32 %v1086, %v1141
      %1178 = vrot.lane.b32.xlu0 %v1154, 28
      %v1179 = vpop.permute.xlu0 %1178
      %1180 = vrot.lane.b32.xlu0 %v1155, 28
      %v1181 = vpop.permute.xlu0 %1180
      %1182 = vrot.lane.b32.xlu0 %v1156, 28
      %v1183 = vpop.permute.xlu0 %1182
      %1184 = vrot.lane.b32.xlu0 %v1157, 28
      %v1185 = vpop.permute.xlu0 %1184
      %1186 = vrot.lane.b32.xlu0 %v1158, 28
      %v1187 = vpop.permute.xlu0 %1186
      %1188 = vrot.lane.b32.xlu0 %v1159, 28
      %v1189 = vpop.permute.xlu0 %1188
      %1190 = vrot.lane.b32.xlu0 %v1160, 28
      %v1191 = vpop.permute.xlu0 %1190
      %1192 = vrot.lane.b32.xlu0 %v1161, 28
      %v1193 = vpop.permute.xlu0 %1192
      %1194 = vrot.lane.b32.xlu0 %v1162, 28
      %v1195 = vpop.permute.xlu0 %1194
      %1196 = vrot.lane.b32.xlu0 %v1163, 28
      %v1197 = vpop.permute.xlu0 %1196
      %1198 = vrot.lane.b32.xlu0 %v1164, 28
      %v1199 = vpop.permute.xlu0 %1198
      %1200 = vrot.lane.b32.xlu0 %v1165, 28
      %v1201 = vpop.permute.xlu0 %1200
      %v1202 = vsel %vm412, %v1179, %v1181
      %v1203 = vsel %vm412, %v1181, %v1183
      %v1204 = vsel %vm412, %v1183, %v1185
      %v1205 = vsel %vm412, %v1185, %v1187
      %v1206 = vsel %vm412, %v1187, %v1189
      %v1207 = vsel %vm412, %v1191, %v1193
      %v1208 = vsel %vm412, %v1193, %v1195
      %v1209 = vsel %vm412, %v1195, %v1197
      %v1210 = vsel %vm412, %v1197, %v1199
      %v1211 = vsel %vm412, %v1199, %v1201
      %v1224 = vmax.f32 %v1154, %v1202
      %v1225 = vmax.f32 %v1155, %v1203
      %v1226 = vmax.f32 %v1156, %v1204
      %v1227 = vmax.f32 %v1157, %v1205
      %v1228 = vmax.f32 %v1158, %v1206
      %v1229 = vmax.f32 %v1159, %v1189
      %v1230 = vmax.f32 %v1160, %v1207
      %v1231 = vmax.f32 %v1161, %v1208
      %v1232 = vmax.f32 %v1162, %v1209
      %v1233 = vmax.f32 %v1163, %v1210
      %v1234 = vmax.f32 %v1164, %v1211
      %v1235 = vmax.f32 %v1165, %v1201
      %v1236 = vpack.c.bf16 %v1230, %v1224
      %v1237 = vpack.c.bf16 %v1231, %v1225
      %v1238 = vpack.c.bf16 %v1232, %v1226
      %v1239 = vpack.c.bf16 %v1233, %v1227
      %v1240 = vpack.c.bf16 %v1234, %v1228
      %v1241 = vpack.c.bf16 %v1235, %v1229
      %v1242 = vld [vmem:[%s5] sm:$0xff]
      %v1243 = vld [vmem:[%s5 + $0x8] sm:$0xff]
      %v1244 = vld [vmem:[%s5 + $0x10] sm:$0xff]
      %v1245 = vld [vmem:[%s5 + $0x18] sm:$0xff]
      %v1246 = vld [vmem:[%s5 + $0x20] sm:$0xff]
      %v1247 = vld [vmem:[%s5 + $0x28] sm:$0xff]
      %v1248 = vld [vmem:[%s5 + $0x30] sm:$0xff]
      %v1249 = vld [vmem:[%s5 + $0x38] sm:$0xff]
      %v1250 = vld [vmem:[%s5 + $0x40] sm:$0xff]
      %v1251 = vld [vmem:[%s5 + $0x48] sm:$0xff]
      %v1252 = vld [vmem:[%s5 + $0x50] sm:$0xff]
      %v1253 = vld [vmem:[%s5 + $0x58] sm:$0xff]
      %v1254 = vld [vmem:[%s5 + $0x60] sm:$0xff]
      %v1255 = vld [vmem:[%s5 + $0x68] sm:$0xff]
      %v1256 = vld [vmem:[%s5 + $0x70] sm:$0xff]
      %v1257 = vld [vmem:[%s5 + $0x78] sm:$0xff]
      %v1258 = vld [vmem:[%s5 + $0x80] sm:$0xff]
      %v1259 = vld [vmem:[%s5 + $0x88] sm:$0xff]
      %v1260 = vld [vmem:[%s5 + $0x90] sm:$0xff]
      %v1261 = vld [vmem:[%s5 + $0x98] sm:$0xff]
      %v1262 = vld [vmem:[%s5 + $0xa0] sm:$0xff]
      %v1263 = vld [vmem:[%s5 + $0xa8] sm:$0xff]
      %v1264 = vld [vmem:[%s5 + $0xb0] sm:$0xff]
      %v1265 = vld [vmem:[%s5 + $0xb8] sm:$0xff]
      %v1266 = vld [vmem:[%s5 + $0xc0] sm:$0xff]
      %v1267 = vld [vmem:[%s5 + $0xc8] sm:$0xff]
      %v1268 = vld [vmem:[%s5 + $0xd0] sm:$0xff]
      %v1269 = vld [vmem:[%s5 + $0xd8] sm:$0xff]
      %v1270 = vld [vmem:[%s5 + $0xe0] sm:$0xff]
      %v1271 = vld [vmem:[%s5 + $0xe8] sm:$0xff]
      %v1272 = vld [vmem:[%s5 + $0xf0] sm:$0xff]
      %v1273 = vld [vmem:[%s5 + $0xf8] sm:$0xff]
      %v1274 = vld [vmem:[%s5 + $0x100] sm:$0xff]
      %v1275 = vld [vmem:[%s5 + $0x108] sm:$0xff]
      %v1276 = vld [vmem:[%s5 + $0x110] sm:$0xff]
      %v1277 = vld [vmem:[%s5 + $0x118] sm:$0xff]
      %v1278 = vld [vmem:[%s5 + $0x120] sm:$0xff]
      %v1279 = vld [vmem:[%s5 + $0x128] sm:$0xff]
      %v1280 = vld [vmem:[%s5 + $0x130] sm:$0xff]
      %v1281 = vld [vmem:[%s5 + $0x138] sm:$0xff]
      %v1282 = vld [vmem:[%s5 + $0x140] sm:$0xff]
      %v1283 = vld [vmem:[%s5 + $0x148] sm:$0xff]
      %v1284 = vld [vmem:[%s5 + $0x150] sm:$0xff]
      %v1285 = vld [vmem:[%s5 + $0x158] sm:$0xff]
      %v1286 = vld [vmem:[%s5 + $0x160] sm:$0xff]
      %v1287 = vld [vmem:[%s5 + $0x168] sm:$0xff]
      %v1288 = vld [vmem:[%s5 + $0x170] sm:$0xff]
      %v1289 = vld [vmem:[%s5 + $0x178] sm:$0xff]
      %v1290 = vld [vmem:[%s5 + $0x180] sm:$0xff]
      %v1291 = vld [vmem:[%s5 + $0x188] sm:$0xff]
      %v1292 = vld [vmem:[%s5 + $0x190] sm:$0xff]
      %v1293 = vld [vmem:[%s5 + $0x198] sm:$0xff]
      %v1294 = vld [vmem:[%s5 + $0x1a0] sm:$0xff]
      %v1295 = vld [vmem:[%s5 + $0x1a8] sm:$0xff]
      %v1296 = vld [vmem:[%s5 + $0x1b0] sm:$0xff]
      %v1297 = vld [vmem:[%s5 + $0x1b8] sm:$0xff]
      %v1298 = vld [vmem:[%s5 + $0x1c0] sm:$0xff]
      %v1299 = vld [vmem:[%s5 + $0x1c8] sm:$0xff]
      %v1300 = vld [vmem:[%s5 + $0x1d0] sm:$0xff]
      %v1301 = vld [vmem:[%s5 + $0x1d8] sm:$0xff]
      %v1302 = vld [vmem:[%s5 + $0x1e0] sm:$0xff]
      %v1303 = vld [vmem:[%s5 + $0x1e8] sm:$0xff]
      %v1304 = vld [vmem:[%s5 + $0x1f0] sm:$0xff]
      %v1305 = vld [vmem:[%s5 + $0x1f8] sm:$0xff]
      %v1306 = vld [vmem:[%s5 + $0x200] sm:$0xff]
      %v1307 = vld [vmem:[%s5 + $0x208] sm:$0xff]
      %v1308 = vld [vmem:[%s5 + $0x210] sm:$0xff]
      %v1309 = vld [vmem:[%s5 + $0x218] sm:$0xff]
      %v1310 = vld [vmem:[%s5 + $0x220] sm:$0xff]
      %v1311 = vld [vmem:[%s5 + $0x228] sm:$0xff]
      %v1312 = vld [vmem:[%s5 + $0x230] sm:$0xff]
      %v1313 = vld [vmem:[%s5 + $0x238] sm:$0xff]
      %v1314 = vld [vmem:[%s5 + $0x240] sm:$0xff]
      %v1315 = vld [vmem:[%s5 + $0x248] sm:$0xff]
      %v1316 = vld [vmem:[%s5 + $0x250] sm:$0xff]
      %v1317 = vld [vmem:[%s5 + $0x258] sm:$0xff]
      %v1318 = vld [vmem:[%s5 + $0x260] sm:$0xff]
      %v1319 = vld [vmem:[%s5 + $0x268] sm:$0xff]
      %v1320 = vld [vmem:[%s5 + $0x270] sm:$0xff]
      %v1321 = vld [vmem:[%s5 + $0x278] sm:$0xff]
      %v1322 = vld [vmem:[%s5 + $0x280] sm:$0xff]
      %v1323 = vld [vmem:[%s5 + $0x288] sm:$0xff]
      %v1324 = vld [vmem:[%s5 + $0x290] sm:$0xff]
      %v1325 = vld [vmem:[%s5 + $0x298] sm:$0x33]
      %v1410 = vunpack.c.l.b16 %v1242
      %v1411 = vunpack.c.h.b16 %v1242
      %v1412 = vunpack.c.l.b16 %v1243
      %v1413 = vunpack.c.h.b16 %v1243
      %v1414 = vunpack.c.l.b16 %v1244
      %v1415 = vunpack.c.h.b16 %v1244
      %v1416 = vunpack.c.l.b16 %v1245
      %v1417 = vunpack.c.h.b16 %v1245
      %v1418 = vunpack.c.l.b16 %v1246
      %v1419 = vunpack.c.h.b16 %v1246
      %v1420 = vunpack.c.l.b16 %v1247
      %v1421 = vunpack.c.h.b16 %v1247
      %v1422 = vunpack.c.l.b16 %v1248
      %v1423 = vunpack.c.h.b16 %v1248
      %v1424 = vunpack.c.l.b16 %v1249
      %v1425 = vunpack.c.h.b16 %v1249
      %v1426 = vunpack.c.l.b16 %v1250
      %v1427 = vunpack.c.h.b16 %v1250
      %v1428 = vunpack.c.l.b16 %v1251
      %v1429 = vunpack.c.h.b16 %v1251
      %v1430 = vunpack.c.l.b16 %v1252
      %v1431 = vunpack.c.h.b16 %v1252
      %v1432 = vunpack.c.l.b16 %v1253
      %v1433 = vunpack.c.h.b16 %v1253
      %v1434 = vunpack.c.l.b16 %v1254
      %v1435 = vunpack.c.h.b16 %v1254
      %v1436 = vunpack.c.l.b16 %v1255
      %v1437 = vunpack.c.h.b16 %v1255
      %v1438 = vunpack.c.l.b16 %v1256
      %v1439 = vunpack.c.h.b16 %v1256
      %v1440 = vunpack.c.l.b16 %v1257
      %v1441 = vunpack.c.h.b16 %v1257
      %v1442 = vunpack.c.l.b16 %v1258
      %v1443 = vunpack.c.h.b16 %v1258
      %v1444 = vunpack.c.l.b16 %v1259
      %v1445 = vunpack.c.h.b16 %v1259
      %v1446 = vunpack.c.l.b16 %v1260
      %v1447 = vunpack.c.h.b16 %v1260
      %v1448 = vunpack.c.l.b16 %v1261
      %v1449 = vunpack.c.h.b16 %v1261
      %v1450 = vunpack.c.l.b16 %v1262
      %v1451 = vunpack.c.h.b16 %v1262
      %v1452 = vunpack.c.l.b16 %v1263
      %v1453 = vunpack.c.h.b16 %v1263
      %v1454 = vunpack.c.l.b16 %v1264
      %v1455 = vunpack.c.h.b16 %v1264
      %v1456 = vunpack.c.l.b16 %v1265
      %v1457 = vunpack.c.h.b16 %v1265
      %v1458 = vunpack.c.l.b16 %v1266
      %v1459 = vunpack.c.h.b16 %v1266
      %v1460 = vunpack.c.l.b16 %v1267
      %v1461 = vunpack.c.h.b16 %v1267
      %v1462 = vunpack.c.l.b16 %v1268
      %v1463 = vunpack.c.h.b16 %v1268
      %v1464 = vunpack.c.l.b16 %v1269
      %v1465 = vunpack.c.h.b16 %v1269
      %v1466 = vunpack.c.l.b16 %v1270
      %v1467 = vunpack.c.h.b16 %v1270
      %v1468 = vunpack.c.l.b16 %v1271
      %v1469 = vunpack.c.h.b16 %v1271
      %v1470 = vunpack.c.l.b16 %v1272
      %v1471 = vunpack.c.h.b16 %v1272
      %v1472 = vunpack.c.l.b16 %v1273
      %v1473 = vunpack.c.h.b16 %v1273
      %v1474 = vunpack.c.l.b16 %v1274
      %v1475 = vunpack.c.h.b16 %v1274
      %v1476 = vunpack.c.l.b16 %v1275
      %v1477 = vunpack.c.h.b16 %v1275
      %v1478 = vunpack.c.l.b16 %v1276
      %v1479 = vunpack.c.h.b16 %v1276
      %v1480 = vunpack.c.l.b16 %v1277
      %v1481 = vunpack.c.h.b16 %v1277
      %v1482 = vunpack.c.l.b16 %v1278
      %v1483 = vunpack.c.h.b16 %v1278
      %v1484 = vunpack.c.l.b16 %v1279
      %v1485 = vunpack.c.h.b16 %v1279
      %v1486 = vunpack.c.l.b16 %v1280
      %v1487 = vunpack.c.h.b16 %v1280
      %v1488 = vunpack.c.l.b16 %v1281
      %v1489 = vunpack.c.h.b16 %v1281
      %v1490 = vunpack.c.l.b16 %v1282
      %v1491 = vunpack.c.h.b16 %v1282
      %v1492 = vunpack.c.l.b16 %v1283
      %v1493 = vunpack.c.h.b16 %v1283
      %v1494 = vunpack.c.l.b16 %v1284
      %v1495 = vunpack.c.h.b16 %v1284
      %v1496 = vunpack.c.l.b16 %v1285
      %v1497 = vunpack.c.h.b16 %v1285
      %v1498 = vunpack.c.l.b16 %v1286
      %v1499 = vunpack.c.h.b16 %v1286
      %v1500 = vunpack.c.l.b16 %v1287
      %v1501 = vunpack.c.h.b16 %v1287
      %v1502 = vunpack.c.l.b16 %v1288
      %v1503 = vunpack.c.h.b16 %v1288
      %v1504 = vunpack.c.l.b16 %v1289
      %v1505 = vunpack.c.h.b16 %v1289
      %v1506 = vunpack.c.l.b16 %v1290
      %v1507 = vunpack.c.h.b16 %v1290
      %v1508 = vunpack.c.l.b16 %v1291
      %v1509 = vunpack.c.h.b16 %v1291
      %v1510 = vunpack.c.l.b16 %v1292
      %v1511 = vunpack.c.h.b16 %v1292
      %v1512 = vunpack.c.l.b16 %v1293
      %v1513 = vunpack.c.h.b16 %v1293
      %v1514 = vunpack.c.l.b16 %v1294
      %v1515 = vunpack.c.h.b16 %v1294
      %v1516 = vunpack.c.l.b16 %v1295
      %v1517 = vunpack.c.h.b16 %v1295
      %v1518 = vunpack.c.l.b16 %v1296
      %v1519 = vunpack.c.h.b16 %v1296
      %v1520 = vunpack.c.l.b16 %v1297
      %v1521 = vunpack.c.h.b16 %v1297
      %v1522 = vunpack.c.l.b16 %v1298
      %v1523 = vunpack.c.h.b16 %v1298
      %v1524 = vunpack.c.l.b16 %v1299
      %v1525 = vunpack.c.h.b16 %v1299
      %v1526 = vunpack.c.l.b16 %v1300
      %v1527 = vunpack.c.h.b16 %v1300
      %v1528 = vunpack.c.l.b16 %v1301
      %v1529 = vunpack.c.h.b16 %v1301
      %v1530 = vunpack.c.l.b16 %v1302
      %v1531 = vunpack.c.h.b16 %v1302
      %v1532 = vunpack.c.l.b16 %v1303
      %v1533 = vunpack.c.h.b16 %v1303
      %v1534 = vunpack.c.l.b16 %v1304
      %v1535 = vunpack.c.h.b16 %v1304
      %v1536 = vunpack.c.l.b16 %v1305
      %v1537 = vunpack.c.h.b16 %v1305
      %v1538 = vunpack.c.l.b16 %v1306
      %v1539 = vunpack.c.h.b16 %v1306
      %v1540 = vunpack.c.l.b16 %v1307
      %v1541 = vunpack.c.h.b16 %v1307
      %v1542 = vunpack.c.l.b16 %v1308
      %v1543 = vunpack.c.h.b16 %v1308
      %v1544 = vunpack.c.l.b16 %v1309
      %v1545 = vunpack.c.h.b16 %v1309
      %v1546 = vunpack.c.l.b16 %v1310
      %v1547 = vunpack.c.h.b16 %v1310
      %v1548 = vunpack.c.l.b16 %v1311
      %v1549 = vunpack.c.h.b16 %v1311
      %v1550 = vunpack.c.l.b16 %v1312
      %v1551 = vunpack.c.h.b16 %v1312
      %v1552 = vunpack.c.l.b16 %v1313
      %v1553 = vunpack.c.h.b16 %v1313
      %v1554 = vunpack.c.l.b16 %v1314
      %v1555 = vunpack.c.h.b16 %v1314
      %v1556 = vunpack.c.l.b16 %v1315
      %v1557 = vunpack.c.h.b16 %v1315
      %v1558 = vunpack.c.l.b16 %v1316
      %v1559 = vunpack.c.h.b16 %v1316
      %v1560 = vunpack.c.l.b16 %v1317
      %v1561 = vunpack.c.h.b16 %v1317
      %v1562 = vunpack.c.l.b16 %v1318
      %v1563 = vunpack.c.h.b16 %v1318
      %v1564 = vunpack.c.l.b16 %v1319
      %v1565 = vunpack.c.h.b16 %v1319
      %v1566 = vunpack.c.l.b16 %v1320
      %v1567 = vunpack.c.h.b16 %v1320
      %v1568 = vunpack.c.l.b16 %v1321
      %v1569 = vunpack.c.h.b16 %v1321
      %v1570 = vunpack.c.l.b16 %v1322
      %v1571 = vunpack.c.h.b16 %v1322
      %v1572 = vunpack.c.l.b16 %v1323
      %v1573 = vunpack.c.h.b16 %v1323
      %v1574 = vunpack.c.l.b16 %v1324
      %v1575 = vunpack.c.h.b16 %v1324
      %v1576 = vunpack.c.l.b16 %v1325
      %v1577 = vunpack.c.h.b16 %v1325
      %v1578 = vpack.c.b16 %v1412, %v1410
      %v1579 = vpack.c.b16 %v1413, %v1411
      %v1580 = vpack.c.b16 %v1416, %v1414
      %v1581 = vpack.c.b16 %v1417, %v1415
      %v1582 = vpack.c.b16 %v1420, %v1418
      %v1583 = vpack.c.b16 %v1421, %v1419
      %v1584 = vpack.c.b16 %v1424, %v1422
      %v1585 = vpack.c.b16 %v1425, %v1423
      %v1586 = vpack.c.b16 %v1428, %v1426
      %v1587 = vpack.c.b16 %v1429, %v1427
      %v1588 = vpack.c.b16 %v1432, %v1430
      %v1589 = vpack.c.b16 %v1433, %v1431
      %v1590 = vpack.c.b16 %v1436, %v1434
      %v1591 = vpack.c.b16 %v1437, %v1435
      %v1592 = vpack.c.b16 %v1440, %v1438
      %v1593 = vpack.c.b16 %v1441, %v1439
      %v1594 = vpack.c.b16 %v1444, %v1442
      %v1595 = vpack.c.b16 %v1445, %v1443
      %v1596 = vpack.c.b16 %v1448, %v1446
      %v1597 = vpack.c.b16 %v1449, %v1447
      %v1598 = vpack.c.b16 %v1452, %v1450
      %v1599 = vpack.c.b16 %v1453, %v1451
      %v1600 = vpack.c.b16 %v1456, %v1454
      %v1601 = vpack.c.b16 %v1457, %v1455
      %v1602 = vpack.c.b16 %v1460, %v1458
      %v1603 = vpack.c.b16 %v1461, %v1459
      %v1604 = vpack.c.b16 %v1464, %v1462
      %v1605 = vpack.c.b16 %v1465, %v1463
      %v1606 = vpack.c.b16 %v1468, %v1466
      %v1607 = vpack.c.b16 %v1469, %v1467
      %v1608 = vpack.c.b16 %v1472, %v1470
      %v1609 = vpack.c.b16 %v1473, %v1471
      %v1610 = vpack.c.b16 %v1476, %v1474
      %v1611 = vpack.c.b16 %v1477, %v1475
      %v1612 = vpack.c.b16 %v1480, %v1478
      %v1613 = vpack.c.b16 %v1481, %v1479
      %v1614 = vpack.c.b16 %v1484, %v1482
      %v1615 = vpack.c.b16 %v1485, %v1483
      %v1616 = vpack.c.b16 %v1488, %v1486
      %v1617 = vpack.c.b16 %v1489, %v1487
      %v1618 = vpack.c.b16 %v1492, %v1490
      %v1619 = vpack.c.b16 %v1493, %v1491
      %v1620 = vpack.c.b16 %v1496, %v1494
      %v1621 = vpack.c.b16 %v1497, %v1495
      %v1622 = vpack.c.b16 %v1500, %v1498
      %v1623 = vpack.c.b16 %v1501, %v1499
      %v1624 = vpack.c.b16 %v1504, %v1502
      %v1625 = vpack.c.b16 %v1505, %v1503
      %v1626 = vpack.c.b16 %v1508, %v1506
      %v1627 = vpack.c.b16 %v1509, %v1507
      %v1628 = vpack.c.b16 %v1512, %v1510
      %v1629 = vpack.c.b16 %v1513, %v1511
      %v1630 = vpack.c.b16 %v1516, %v1514
      %v1631 = vpack.c.b16 %v1517, %v1515
      %v1632 = vpack.c.b16 %v1520, %v1518
      %v1633 = vpack.c.b16 %v1521, %v1519
      %v1634 = vpack.c.b16 %v1524, %v1522
      %v1635 = vpack.c.b16 %v1525, %v1523
      %v1636 = vpack.c.b16 %v1528, %v1526
      %v1637 = vpack.c.b16 %v1529, %v1527
      %v1638 = vpack.c.b16 %v1532, %v1530
      %v1639 = vpack.c.b16 %v1533, %v1531
      %v1640 = vpack.c.b16 %v1536, %v1534
      %v1641 = vpack.c.b16 %v1537, %v1535
      %v1642 = vpack.c.b16 %v1540, %v1538
      %v1643 = vpack.c.b16 %v1541, %v1539
      %v1644 = vpack.c.b16 %v1544, %v1542
      %v1645 = vpack.c.b16 %v1545, %v1543
      %v1646 = vpack.c.b16 %v1548, %v1546
      %v1647 = vpack.c.b16 %v1549, %v1547
      %v1648 = vpack.c.b16 %v1552, %v1550
      %v1649 = vpack.c.b16 %v1553, %v1551
      %v1650 = vpack.c.b16 %v1556, %v1554
      %v1651 = vpack.c.b16 %v1557, %v1555
      %v1652 = vpack.c.b16 %v1560, %v1558
      %v1653 = vpack.c.b16 %v1561, %v1559
      %v1654 = vpack.c.b16 %v1564, %v1562
      %v1655 = vpack.c.b16 %v1565, %v1563
      %v1656 = vpack.c.b16 %v1568, %v1566
      %v1657 = vpack.c.b16 %v1569, %v1567
      %v1658 = vpack.c.b16 %v1572, %v1570
      %v1659 = vpack.c.b16 %v1573, %v1571
      %v1660 = vpack.c.b16 %v1576, %v1574
      %v1661 = vpack.c.b16 %v1577, %v1575
      %v1745 = vsel %vm421, %v1241, 0
      %vm1747 = vcmask 1044480
      %vm1748 = vcmask 1045504
      %v1749 = vsel %vm1747, 4294967295, 65535
      %v1750 = vsel %vm1748, %v1749, 0
      %v1752 = vand.u32 %v1660, %v1750
      %v1755 = vand.u32 %v1661, %v1750
      %1757 = vmatprep.subr.bf16.mxu0 %v1579
      %1758 = vmatpush1.bf16.msra.mxu0 %v1578
      %1759 = vmatprep.subr.bf16.mxu0 %v1581
      %1760 = vmatpush1.bf16.msra.mxu0 %v1580
      %1761 = vmatprep.subr.bf16.mxu0 %v1583
      %1762 = vmatpush1.bf16.msra.mxu0 %v1582
      %1763 = vmatprep.subr.bf16.mxu0 %v1585
      %1764 = vmatpush1.bf16.msra.mxu0 %v1584
      %1765 = vmatprep.subr.bf16.mxu0 %v1587
      %1766 = vmatpush1.bf16.msra.mxu0 %v1586
      %1767 = vmatprep.subr.bf16.mxu0 %v1589
      %1768 = vmatpush1.bf16.msra.mxu0 %v1588
      %1769 = vmatprep.subr.bf16.mxu0 %v1591
      %1770 = vmatpush1.bf16.msra.mxu0 %v1590
      %1771 = vmatprep.subr.bf16.mxu0 %v1593
      %1772 = vmatpush1.bf16.msra.mxu0 %v1592
      %1773 = vmatprep.subr.bf16.mxu0 %v1595
      %1774 = vmatpush1.bf16.msra.mxu0 %v1594
      %1775 = vmatprep.subr.bf16.mxu0 %v1597
      %1776 = vmatpush1.bf16.msra.mxu0 %v1596
      %1777 = vmatprep.subr.bf16.mxu0 %v1599
      %1778 = vmatpush1.bf16.msra.mxu0 %v1598
      %1779 = vmatprep.subr.bf16.mxu0 %v1601
      %1780 = vmatpush1.bf16.msra.mxu0 %v1600
      %1781 = vmatprep.subr.bf16.mxu0 %v1603
      %1782 = vmatpush1.bf16.msra.mxu0 %v1602
      %1783 = vmatprep.subr.bf16.mxu0 %v1605
      %1784 = vmatpush1.bf16.msra.mxu0 %v1604
      %1785 = vmatprep.subr.bf16.mxu0 %v1607
      %1786 = vmatpush1.bf16.msra.mxu0 %v1606
      %1787 = vmatprep.subr.bf16.mxu0 %v1609
      %1788 = vmatpush1.bf16.msra.mxu0 %v1608
      %1789 = vmatprep.mubr.bf16.mxu0 %v1237
      %1790 = vmatmul.mubr.bf16.gmra.mrb[0].mxu0 %v1236
      %v1791 = vpop.f32.mrb[0].mxu0
      %v1792 = vadd.f32 0.0, %v1791
      %v1793 = vpop.f32.mrb[0].mxu0
      %v1794 = vadd.f32 0.0, %v1793
      %v1795 = vpop.f32.mrb[0].mxu0
      %v1796 = vadd.f32 0.0, %v1795
      %v1797 = vpop.f32.mrb[0].mxu0
      %v1798 = vadd.f32 0.0, %v1797
      %1799 = vdwg.mxu0
      %1800 = vmatprep.subr.bf16.mxu0 %v1611
      %1801 = vmatpush1.bf16.msra.mxu0 %v1610
      %1802 = vmatprep.subr.bf16.mxu0 %v1613
      %1803 = vmatpush1.bf16.msra.mxu0 %v1612
      %1804 = vmatprep.subr.bf16.mxu0 %v1615
      %1805 = vmatpush1.bf16.msra.mxu0 %v1614
      %1806 = vmatprep.subr.bf16.mxu0 %v1617
      %1807 = vmatpush1.bf16.msra.mxu0 %v1616
      %1808 = vmatprep.subr.bf16.mxu0 %v1619
      %1809 = vmatpush1.bf16.msra.mxu0 %v1618
      %1810 = vmatprep.subr.bf16.mxu0 %v1621
      %1811 = vmatpush1.bf16.msra.mxu0 %v1620
      %1812 = vmatprep.subr.bf16.mxu0 %v1623
      %1813 = vmatpush1.bf16.msra.mxu0 %v1622
      %1814 = vmatprep.subr.bf16.mxu0 %v1625
      %1815 = vmatpush1.bf16.msra.mxu0 %v1624
      %1816 = vmatprep.subr.bf16.mxu0 %v1627
      %1817 = vmatpush1.bf16.msra.mxu0 %v1626
      %1818 = vmatprep.subr.bf16.mxu0 %v1629
      %1819 = vmatpush1.bf16.msra.mxu0 %v1628
      %1820 = vmatprep.subr.bf16.mxu0 %v1631
      %1821 = vmatpush1.bf16.msra.mxu0 %v1630
      %1822 = vmatprep.subr.bf16.mxu0 %v1633
      %1823 = vmatpush1.bf16.msra.mxu0 %v1632
      %1824 = vmatprep.subr.bf16.mxu0 %v1635
      %1825 = vmatpush1.bf16.msra.mxu0 %v1634
      %1826 = vmatprep.subr.bf16.mxu0 %v1637
      %1827 = vmatpush1.bf16.msra.mxu0 %v1636
      %1828 = vmatprep.subr.bf16.mxu0 %v1639
      %1829 = vmatpush1.bf16.msra.mxu0 %v1638
      %1830 = vmatprep.subr.bf16.mxu0 %v1641
      %1831 = vmatpush1.bf16.msra.mxu0 %v1640
      %1832 = vmatprep.mubr.bf16.mxu0 %v1239
      %1833 = vmatmul.mubr.bf16.gmra.mrb[0].mxu0 %v1238
      %v1834 = vpop.f32.mrb[0].mxu0
      %v1835 = vadd.f32 %v1792, %v1834
      %v1836 = vpop.f32.mrb[0].mxu0
      %v1837 = vadd.f32 %v1794, %v1836
      %v1838 = vpop.f32.mrb[0].mxu0
      %v1839 = vadd.f32 %v1796, %v1838
      %v1840 = vpop.f32.mrb[0].mxu0
      %v1841 = vadd.f32 %v1798, %v1840
      %1842 = vdwg.mxu0
      %1843 = vmatprep.subr.bf16.mxu0 %v1643
      %1844 = vmatpush1.bf16.msra.mxu0 %v1642
      %1845 = vmatprep.subr.bf16.mxu0 %v1645
      %1846 = vmatpush1.bf16.msra.mxu0 %v1644
      %1847 = vmatprep.subr.bf16.mxu0 %v1647
      %1848 = vmatpush1.bf16.msra.mxu0 %v1646
      %1849 = vmatprep.subr.bf16.mxu0 %v1649
      %1850 = vmatpush1.bf16.msra.mxu0 %v1648
      %1851 = vmatprep.subr.bf16.mxu0 %v1651
      %1852 = vmatpush1.bf16.msra.mxu0 %v1650
      %1853 = vmatprep.subr.bf16.mxu0 %v1653
      %1854 = vmatpush1.bf16.msra.mxu0 %v1652
      %1855 = vmatprep.subr.bf16.mxu0 %v1655
      %1856 = vmatpush1.bf16.msra.mxu0 %v1654
      %1857 = vmatprep.subr.bf16.mxu0 %v1657
      %1858 = vmatpush1.bf16.msra.mxu0 %v1656
      %1859 = vmatprep.subr.bf16.mxu0 %v1659
      %1860 = vmatpush1.bf16.msra.mxu0 %v1658
      %1861 = vmatprep.subr.bf16.mxu0 %v1755
      %1862 = vmatpush1.bf16.msra.mxu0 %v1752
      %1863 = vmatprep.subr.bf16.mxu0 0
      %1864 = vmatpush1.bf16.msra.mxu0 0
      %1865 = vmatprep.subr.bf16.mxu0 0
      %1866 = vmatpush1.bf16.msra.mxu0 0
      %1867 = vmatprep.subr.bf16.mxu0 0
      %1868 = vmatpush1.bf16.msra.mxu0 0
      %1869 = vmatprep.subr.bf16.mxu0 0
      %1870 = vmatpush1.bf16.msra.mxu0 0
      %1871 = vmatprep.subr.bf16.mxu0 0
      %1872 = vmatpush1.bf16.msra.mxu0 0
      %1873 = vmatprep.subr.bf16.mxu0 0
      %1874 = vmatpush1.bf16.msra.mxu0 0
      %1875 = vmatprep.mubr.bf16.mxu0 %v1745
      %1876 = vmatmul.mubr.bf16.gmra.mrb[0].mxu0 %v1240
      %v1877 = vpop.f32.mrb[0].mxu0
      %v1878 = vadd.f32 %v1835, %v1877
      %v1879 = vpop.f32.mrb[0].mxu0
      %v1880 = vadd.f32 %v1837, %v1879
      %v1881 = vpop.f32.mrb[0].mxu0
      %v1882 = vadd.f32 %v1839, %v1881
      %v1883 = vpop.f32.mrb[0].mxu0
      %v1884 = vadd.f32 %v1841, %v1883
      %1885 = vdwg.mxu0
      %v1886 = vpack.c.bf16 %v1882, %v1878
      %v1887 = vpack.c.bf16 %v1884, %v1880
      %1888 = vst [vmem:[#allocation3] sm:$0xff] %v1886
      %vm1889 = vcmask 15360
      %1890 = vst.msk [vmem:[#allocation3 + $0x8] sm:$0xff] %vm1889, %v1887
      %1893 = vrot.lane.b32.xlu0 %v1886, 127
      %v1894 = vpop.permute.xlu0 %1893
      %1895 = vrot.lane.b32.xlu0 %v1887, 127
      %v1896 = vpop.permute.xlu0 %1895
      %vm1897 = vcmask 1039360
      %v1898 = vsel %vm1897, %v1894, %v1896
      %1901 = vst [vmem:[#allocation3 + $0x10] sm:$0xff] %v1898
      %1902 = vst.msk [vmem:[#allocation3 + $0x18] sm:$0xff] %vm1889, %v1896
      %1903 = vrot.lane.b32.xlu0 %v1886, 126
      %v1904 = vpop.permute.xlu0 %1903
      %1905 = vrot.lane.b32.xlu0 %v1887, 126
      %v1906 = vpop.permute.xlu0 %1905
      %vm1907 = vcmask 1031168
      %v1908 = vsel %vm1907, %v1904, %v1906
      %1911 = vst [vmem:[#allocation3 + $0x20] sm:$0xff] %v1908
      %1912 = vst.msk [vmem:[#allocation3 + $0x28] sm:$0xff] %vm1889, %v1906
      %1913 = vrot.lane.b32.xlu0 %v1886, 122
      %v1914 = vpop.permute.xlu0 %1913
      %1915 = vrot.lane.b32.xlu0 %v1887, 122
      %v1916 = vpop.permute.xlu0 %1915
      %vm1917 = vcmask 998400
      %v1918 = vsel %vm1917, %v1914, %v1916
      %1921 = vst [vmem:[#allocation3 + $0x30] sm:$0xff] %v1918
      %1922 = vst.msk [vmem:[#allocation3 + $0x38] sm:$0xff] %vm1889, %v1916
      %1923 = vrot.lane.b32.xlu0 %v1886, 121
      %v1924 = vpop.permute.xlu0 %1923
      %1925 = vrot.lane.b32.xlu0 %v1887, 121
      %v1926 = vpop.permute.xlu0 %1925
      %vm1927 = vcmask 990208
      %v1928 = vsel %vm1927, %v1924, %v1926
      %1931 = vst [vmem:[#allocation3 + $0x40] sm:$0xff] %v1928
      %1932 = vst.msk [vmem:[#allocation3 + $0x48] sm:$0xff] %vm1889, %v1926
      %1933 = vrot.lane.b32.xlu0 %v1886, 120
      %v1934 = vpop.permute.xlu0 %1933
      %1935 = vrot.lane.b32.xlu0 %v1887, 120
      %v1936 = vpop.permute.xlu0 %1935
      %vm1937 = vcmask 982016
      %v1938 = vsel %vm1937, %v1934, %v1936
      %1941 = vst [vmem:[#allocation3 + $0x50] sm:$0xff] %v1938
      %1942 = vst.msk [vmem:[#allocation3 + $0x58] sm:$0xff] %vm1889, %v1936
      %1943 = vrot.lane.b32.xlu0 %v1886, 116
      %v1944 = vpop.permute.xlu0 %1943
      %1945 = vrot.lane.b32.xlu0 %v1887, 116
      %v1946 = vpop.permute.xlu0 %1945
      %vm1947 = vcmask 949248
      %v1948 = vsel %vm1947, %v1944, %v1946
      %1951 = vst [vmem:[#allocation3 + $0x60] sm:$0xff] %v1948
      %1952 = vst.msk [vmem:[#allocation3 + $0x68] sm:$0xff] %vm1889, %v1946
      %1953 = vrot.lane.b32.xlu0 %v1886, 115
      %v1954 = vpop.permute.xlu0 %1953
      %1955 = vrot.lane.b32.xlu0 %v1887, 115
      %v1956 = vpop.permute.xlu0 %1955
      %vm1957 = vcmask 941056
      %v1958 = vsel %vm1957, %v1954, %v1956
      %1961 = vst [vmem:[#allocation3 + $0x70] sm:$0xff] %v1958
      %1962 = vst.msk [vmem:[#allocation3 + $0x78] sm:$0xff] %vm1889, %v1956
      %1963 = vrot.lane.b32.xlu0 %v1886, 114
      %v1964 = vpop.permute.xlu0 %1963
      %1965 = vrot.lane.b32.xlu0 %v1887, 114
      %v1966 = vpop.permute.xlu0 %1965
      %vm1967 = vcmask 932864
      %v1968 = vsel %vm1967, %v1964, %v1966
      %1971 = vst [vmem:[#allocation3 + $0x80] sm:$0xff] %v1968
      %1972 = vst.msk [vmem:[#allocation3 + $0x88] sm:$0xff] %vm1889, %v1966
      %1973 = vrot.lane.b32.xlu0 %v1886, 92
      %v1974 = vpop.permute.xlu0 %1973
      %1975 = vrot.lane.b32.xlu0 %v1887, 92
      %v1976 = vpop.permute.xlu0 %1975
      %vm1977 = vcmask 752640
      %v1978 = vsel %vm1977, %v1974, %v1976
      %1981 = vst [vmem:[#allocation3 + $0x90] sm:$0xff] %v1978
      %1982 = vst.msk [vmem:[#allocation3 + $0x98] sm:$0xff] %vm1889, %v1976
      %1983 = vrot.lane.b32.xlu0 %v1886, 91
      %v1984 = vpop.permute.xlu0 %1983
      %1985 = vrot.lane.b32.xlu0 %v1887, 91
      %v1986 = vpop.permute.xlu0 %1985
      %vm1987 = vcmask 744448
      %v1988 = vsel %vm1987, %v1984, %v1986
      %1991 = vst [vmem:[#allocation3 + $0xa0] sm:$0xff] %v1988
      %1992 = vst.msk [vmem:[#allocation3 + $0xa8] sm:$0xff] %vm1889, %v1986
      %1993 = vrot.lane.b32.xlu0 %v1886, 90
      %v1994 = vpop.permute.xlu0 %1993
      %1995 = vrot.lane.b32.xlu0 %v1887, 90
      %v1996 = vpop.permute.xlu0 %1995
      %vm1997 = vcmask 736256
      %v1998 = vsel %vm1997, %v1994, %v1996
      %2001 = vst [vmem:[#allocation3 + $0xb0] sm:$0xff] %v1998
      %2002 = vst.msk [vmem:[#allocation3 + $0xb8] sm:$0xff] %vm1889, %v1996
      %2003 = vrot.lane.b32.xlu0 %v1886, 86
      %v2004 = vpop.permute.xlu0 %2003
      %2005 = vrot.lane.b32.xlu0 %v1887, 86
      %v2006 = vpop.permute.xlu0 %2005
      %vm2007 = vcmask 703488
      %v2008 = vsel %vm2007, %v2004, %v2006
      %2011 = vst [vmem:[#allocation3 + $0xc0] sm:$0xff] %v2008
      %2012 = vst.msk [vmem:[#allocation3 + $0xc8] sm:$0xff] %vm1889, %v2006
      %2013 = vrot.lane.b32.xlu0 %v1886, 85
      %v2014 = vpop.permute.xlu0 %2013
      %2015 = vrot.lane.b32.xlu0 %v1887, 85
      %v2016 = vpop.permute.xlu0 %2015
      %vm2017 = vcmask 695296
      %v2018 = vsel %vm2017, %v2014, %v2016
      %2021 = vst [vmem:[#allocation3 + $0xd0] sm:$0xff] %v2018
      %2022 = vst.msk [vmem:[#allocation3 + $0xd8] sm:$0xff] %vm1889, %v2016
      %2023 = vrot.lane.b32.xlu0 %v1886, 84
      %v2024 = vpop.permute.xlu0 %2023
      %2025 = vrot.lane.b32.xlu0 %v1887, 84
      %v2026 = vpop.permute.xlu0 %2025
      %vm2027 = vcmask 687104
      %v2028 = vsel %vm2027, %v2024, %v2026
      %2031 = vst [vmem:[#allocation3 + $0xe0] sm:$0xff] %v2028
      %2032 = vst.msk [vmem:[#allocation3 + $0xe8] sm:$0xff] %vm1889, %v2026
      %2033 = vrot.lane.b32.xlu0 %v1886, 80
      %v2034 = vpop.permute.xlu0 %2033
      %2035 = vrot.lane.b32.xlu0 %v1887, 80
      %v2036 = vpop.permute.xlu0 %2035
      %vm2037 = vcmask 654336
      %v2038 = vsel %vm2037, %v2034, %v2036
      %2041 = vst [vmem:[#allocation3 + $0xf0] sm:$0xff] %v2038
      %2042 = vst.msk [vmem:[#allocation3 + $0xf8] sm:$0xff] %vm1889, %v2036
      %2043 = vrot.lane.b32.xlu0 %v1886, 79
      %v2044 = vpop.permute.xlu0 %2043
      %2045 = vrot.lane.b32.xlu0 %v1887, 79
      %v2046 = vpop.permute.xlu0 %2045
      %vm2047 = vcmask 646144
      %v2048 = vsel %vm2047, %v2044, %v2046
      %2051 = vst [vmem:[#allocation3 + $0x100] sm:$0xff] %v2048
      %2052 = vst.msk [vmem:[#allocation3 + $0x108] sm:$0xff] %vm1889, %v2046
      %2053 = vrot.lane.b32.xlu0 %v1886, 78
      %v2054 = vpop.permute.xlu0 %2053
      %2055 = vrot.lane.b32.xlu0 %v1887, 78
      %v2056 = vpop.permute.xlu0 %2055
      %vm2057 = vcmask 637952
      %v2058 = vsel %vm2057, %v2054, %v2056
      %2061 = vst [vmem:[#allocation3 + $0x110] sm:$0xff] %v2058
      %2062 = vst.msk [vmem:[#allocation3 + $0x118] sm:$0xff] %vm1889, %v2056
      %2063 = vrot.lane.b32.xlu0 %v1886, 56
      %v2064 = vpop.permute.xlu0 %2063
      %2065 = vrot.lane.b32.xlu0 %v1887, 56
      %v2066 = vpop.permute.xlu0 %2065
      %vm2067 = vcmask 457728
      %v2068 = vsel %vm2067, %v2064, %v2066
      %2071 = vst [vmem:[#allocation3 + $0x120] sm:$0xff] %v2068
      %2072 = vst.msk [vmem:[#allocation3 + $0x128] sm:$0xff] %vm1889, %v2066
      %2073 = vrot.lane.b32.xlu0 %v1886, 55
      %v2074 = vpop.permute.xlu0 %2073
      %2075 = vrot.lane.b32.xlu0 %v1887, 55
      %v2076 = vpop.permute.xlu0 %2075
      %vm2077 = vcmask 449536
      %v2078 = vsel %vm2077, %v2074, %v2076
      %2081 = vst [vmem:[#allocation3 + $0x130] sm:$0xff] %v2078
      %2082 = vst.msk [vmem:[#allocation3 + $0x138] sm:$0xff] %vm1889, %v2076
      %2083 = vrot.lane.b32.xlu0 %v1886, 54
      %v2084 = vpop.permute.xlu0 %2083
      %2085 = vrot.lane.b32.xlu0 %v1887, 54
      %v2086 = vpop.permute.xlu0 %2085
      %vm2087 = vcmask 441344
      %v2088 = vsel %vm2087, %v2084, %v2086
      %2091 = vst [vmem:[#allocation3 + $0x140] sm:$0xff] %v2088
      %2092 = vst.msk [vmem:[#allocation3 + $0x148] sm:$0xff] %vm1889, %v2086
      %2093 = vrot.lane.b32.xlu0 %v1886, 50
      %v2094 = vpop.permute.xlu0 %2093
      %2095 = vrot.lane.b32.xlu0 %v1887, 50
      %v2096 = vpop.permute.xlu0 %2095
      %vm2097 = vcmask 408576
      %v2098 = vsel %vm2097, %v2094, %v2096
      %2101 = vst [vmem:[#allocation3 + $0x150] sm:$0xff] %v2098
      %2102 = vst.msk [vmem:[#allocation3 + $0x158] sm:$0xff] %vm1889, %v2096
      %2103 = vrot.lane.b32.xlu0 %v1886, 49
      %v2104 = vpop.permute.xlu0 %2103
      %2105 = vrot.lane.b32.xlu0 %v1887, 49
      %v2106 = vpop.permute.xlu0 %2105
      %vm2107 = vcmask 400384
      %v2108 = vsel %vm2107, %v2104, %v2106
      %2111 = vst [vmem:[#allocation3 + $0x160] sm:$0xff] %v2108
      %2112 = vst.msk [vmem:[#allocation3 + $0x168] sm:$0xff] %vm1889, %v2106
      %2113 = vrot.lane.b32.xlu0 %v1886, 48
      %v2114 = vpop.permute.xlu0 %2113
      %2115 = vrot.lane.b32.xlu0 %v1887, 48
      %v2116 = vpop.permute.xlu0 %2115
      %vm2117 = vcmask 392192
      %v2118 = vsel %vm2117, %v2114, %v2116
      %2121 = vst [vmem:[#allocation3 + $0x170] sm:$0xff] %v2118
      %2122 = vst.msk [vmem:[#allocation3 + $0x178] sm:$0xff] %vm1889, %v2116
      %2123 = vrot.lane.b32.xlu0 %v1886, 44
      %v2124 = vpop.permute.xlu0 %2123
      %2125 = vrot.lane.b32.xlu0 %v1887, 44
      %v2126 = vpop.permute.xlu0 %2125
      %vm2127 = vcmask 359424
      %v2128 = vsel %vm2127, %v2124, %v2126
      %2131 = vst [vmem:[#allocation3 + $0x180] sm:$0xff] %v2128
      %2132 = vst.msk [vmem:[#allocation3 + $0x188] sm:$0xff] %vm1889, %v2126
      %2133 = vrot.lane.b32.xlu0 %v1886, 43
      %v2134 = vpop.permute.xlu0 %2133
      %2135 = vrot.lane.b32.xlu0 %v1887, 43
      %v2136 = vpop.permute.xlu0 %2135
      %vm2137 = vcmask 351232
      %v2138 = vsel %vm2137, %v2134, %v2136
      %2141 = vst [vmem:[#allocation3 + $0x190] sm:$0xff] %v2138
      %2142 = vst.msk [vmem:[#allocation3 + $0x198] sm:$0xff] %vm1889, %v2136
      %2143 = vrot.lane.b32.xlu0 %v1886, 42
      %v2144 = vpop.permute.xlu0 %2143
      %2145 = vrot.lane.b32.xlu0 %v1887, 42
      %v2146 = vpop.permute.xlu0 %2145
      %vm2147 = vcmask 343040
      %v2148 = vsel %vm2147, %v2144, %v2146
      %2151 = vst [vmem:[#allocation3 + $0x1a0] sm:$0xff] %v2148
      %2152 = vst.msk [vmem:[#allocation3 + $0x1a8] sm:$0xff] %vm1889, %v2146
      %v2153 = vld [vmem:[%s2] sm:$0xff]
      %v2154 = vld [vmem:[%s2 + $0x8] sm:$0xff]
      %v2155 = vld [vmem:[%s2 + $0x10] sm:$0xff]
      %v2156 = vld [vmem:[%s2 + $0x18] sm:$0xff]
      %v2157 = vld [vmem:[%s2 + $0x20] sm:$0xff]
      %v2158 = vld [vmem:[%s2 + $0x28] sm:$0xff]
      %v2159 = vld [vmem:[%s2 + $0x30] sm:$0xff]
      %v2160 = vld [vmem:[%s2 + $0x38] sm:$0xff]
      %v2161 = vld [vmem:[#allocation3] sm:$0xff]
      %v2162 = vld [vmem:[#allocation3 + $0x8] sm:$0xff]
      %v2163 = vld [vmem:[#allocation3 + $0x10] sm:$0xff]
      %v2164 = vld [vmem:[#allocation3 + $0x18] sm:$0xff]
      %v2165 = vld [vmem:[#allocation3 + $0x20] sm:$0xff]
      %v2166 = vld [vmem:[#allocation3 + $0x28] sm:$0xff]
      %v2167 = vld [vmem:[#allocation3 + $0x30] sm:$0xff]
      %v2168 = vld [vmem:[#allocation3 + $0x38] sm:$0xff]
      %v2169 = vld [vmem:[#allocation3 + $0x40] sm:$0xff]
      %v2170 = vld [vmem:[#allocation3 + $0x48] sm:$0xff]
      %v2171 = vld [vmem:[#allocation3 + $0x50] sm:$0xff]
      %v2172 = vld [vmem:[#allocation3 + $0x58] sm:$0xff]
      %v2173 = vld [vmem:[#allocation3 + $0x60] sm:$0xff]
      %v2174 = vld [vmem:[#allocation3 + $0x68] sm:$0xff]
      %v2175 = vld [vmem:[#allocation3 + $0x70] sm:$0xff]
      %v2176 = vld [vmem:[#allocation3 + $0x78] sm:$0xff]
      %v2177 = vld [vmem:[#allocation3 + $0x80] sm:$0xff]
      %v2178 = vld [vmem:[#allocation3 + $0x88] sm:$0xff]
      %v2179 = vld [vmem:[#allocation3 + $0x90] sm:$0xff]
      %v2180 = vld [vmem:[#allocation3 + $0x98] sm:$0xff]
      %v2181 = vld [vmem:[#allocation3 + $0xa0] sm:$0xff]
      %v2182 = vld [vmem:[#allocation3 + $0xa8] sm:$0xff]
      %v2183 = vld [vmem:[#allocation3 + $0xb0] sm:$0xff]
      %v2184 = vld [vmem:[#allocation3 + $0xb8] sm:$0xff]
      %v2185 = vld [vmem:[#allocation3 + $0xc0] sm:$0xff]
      %v2186 = vld [vmem:[#allocation3 + $0xc8] sm:$0xff]
      %v2187 = vld [vmem:[#allocation3 + $0xd0] sm:$0xff]
      %v2188 = vld [vmem:[#allocation3 + $0xd8] sm:$0xff]
      %v2189 = vld [vmem:[#allocation3 + $0xe0] sm:$0xff]
      %v2190 = vld [vmem:[#allocation3 + $0xe8] sm:$0xff]
      %v2191 = vld [vmem:[#allocation3 + $0xf0] sm:$0xff]
      %v2192 = vld [vmem:[#allocation3 + $0xf8] sm:$0xff]
      %v2193 = vld [vmem:[#allocation3 + $0x100] sm:$0xff]
      %v2194 = vld [vmem:[#allocation3 + $0x108] sm:$0xff]
      %v2195 = vld [vmem:[#allocation3 + $0x110] sm:$0xff]
      %v2196 = vld [vmem:[#allocation3 + $0x118] sm:$0xff]
      %v2197 = vld [vmem:[#allocation3 + $0x120] sm:$0xff]
      %v2198 = vld [vmem:[#allocation3 + $0x128] sm:$0xff]
      %v2199 = vld [vmem:[#allocation3 + $0x130] sm:$0xff]
      %v2200 = vld [vmem:[#allocation3 + $0x138] sm:$0xff]
      %v2201 = vld [vmem:[#allocation3 + $0x140] sm:$0xff]
      %v2202 = vld [vmem:[#allocation3 + $0x148] sm:$0xff]
      %v2203 = vld [vmem:[#allocation3 + $0x150] sm:$0xff]
      %v2204 = vld [vmem:[#allocation3 + $0x158] sm:$0xff]
      %v2205 = vld [vmem:[#allocation3 + $0x160] sm:$0xff]
      %v2206 = vld [vmem:[#allocation3 + $0x168] sm:$0xff]
      %v2207 = vld [vmem:[#allocation3 + $0x170] sm:$0xff]
      %v2208 = vld [vmem:[#allocation3 + $0x178] sm:$0xff]
      %v2209 = vld [vmem:[#allocation3 + $0x180] sm:$0xff]
      %v2210 = vld [vmem:[#allocation3 + $0x188] sm:$0xff]
      %v2211 = vld [vmem:[#allocation3 + $0x190] sm:$0xff]
      %v2212 = vld [vmem:[#allocation3 + $0x198] sm:$0xff]
      %v2213 = vld [vmem:[#allocation3 + $0x1a0] sm:$0xff]
      %v2214 = vld [vmem:[#allocation3 + $0x1a8] sm:$0xff]
      %v2223 = vunpack.c.l.b16 %v2153
      %v2224 = vunpack.c.h.b16 %v2153
      %v2225 = vunpack.c.l.b16 %v2154
      %v2226 = vunpack.c.h.b16 %v2154
      %v2227 = vunpack.c.l.b16 %v2155
      %v2228 = vunpack.c.h.b16 %v2155
      %v2229 = vunpack.c.l.b16 %v2156
      %v2230 = vunpack.c.h.b16 %v2156
      %v2231 = vunpack.c.l.b16 %v2157
      %v2232 = vunpack.c.h.b16 %v2157
      %v2233 = vunpack.c.l.b16 %v2158
      %v2234 = vunpack.c.h.b16 %v2158
      %v2235 = vunpack.c.l.b16 %v2159
      %v2236 = vunpack.c.h.b16 %v2159
      %v2237 = vunpack.c.l.b16 %v2160
      %v2238 = vunpack.c.h.b16 %v2160
      %v2239 = vpack.c.b16 %v2227, %v2223
      %v2240 = vpack.c.b16 %v2228, %v2224
      %v2241 = vpack.c.b16 %v2229, %v2225
      %v2242 = vpack.c.b16 %v2230, %v2226
      %v2243 = vpack.c.b16 %v2235, %v2231
      %v2244 = vpack.c.b16 %v2236, %v2232
      %v2245 = vpack.c.b16 %v2237, %v2233
      %v2246 = vpack.c.b16 %v2238, %v2234
      %vm2253 = vcmask 392192
      %v2255 = vsel %vm2253, %v2242, 0
      %v2258 = vsel %vm2253, %v2246, 0
      %2260 = vmatprep.subr.bf16.mxu0 %v2162
      %2261 = vmatpush1.bf16.msra.mxu0 %v2161
      %2262 = vmatprep.subr.bf16.mxu0 %v2164
      %2263 = vmatpush1.bf16.msra.mxu0 %v2163
      %2264 = vmatprep.subr.bf16.mxu0 %v2166
      %2265 = vmatpush1.bf16.msra.mxu0 %v2165
      %2266 = vmatprep.subr.bf16.mxu0 %v2168
      %2267 = vmatpush1.bf16.msra.mxu0 %v2167
      %2268 = vmatprep.subr.bf16.mxu0 %v2170
      %2269 = vmatpush1.bf16.msra.mxu0 %v2169
      %2270 = vmatprep.subr.bf16.mxu0 %v2172
      %2271 = vmatpush1.bf16.msra.mxu0 %v2171
      %2272 = vmatprep.subr.bf16.mxu0 %v2174
      %2273 = vmatpush1.bf16.msra.mxu0 %v2173
      %2274 = vmatprep.subr.bf16.mxu0 %v2176
      %2275 = vmatpush1.bf16.msra.mxu0 %v2175
      %2276 = vmatprep.subr.bf16.mxu0 %v2178
      %2277 = vmatpush1.bf16.msra.mxu0 %v2177
      %2278 = vmatprep.subr.bf16.mxu0 %v2180
      %2279 = vmatpush1.bf16.msra.mxu0 %v2179
      %2280 = vmatprep.subr.bf16.mxu0 %v2182
      %2281 = vmatpush1.bf16.msra.mxu0 %v2181
      %2282 = vmatprep.subr.bf16.mxu0 %v2184
      %2283 = vmatpush1.bf16.msra.mxu0 %v2183
      %2284 = vmatprep.subr.bf16.mxu0 %v2186
      %2285 = vmatpush1.bf16.msra.mxu0 %v2185
      %2286 = vmatprep.subr.bf16.mxu0 %v2188
      %2287 = vmatpush1.bf16.msra.mxu0 %v2187
      %2288 = vmatprep.subr.bf16.mxu0 %v2190
      %2289 = vmatpush1.bf16.msra.mxu0 %v2189
      %2290 = vmatprep.subr.bf16.mxu0 %v2192
      %2291 = vmatpush1.bf16.msra.mxu0 %v2191
      %2292 = vmatprep.mubr.bf16.mxu0 %v2240
      %2293 = vmatmul.mubr.bf16.gmra.mrb[0].mxu0 %v2239
      %v2294 = vpop.f32.mrb[0].mxu0
      %v2295 = vadd.f32 0.0, %v2294
      %v2296 = vpop.f32.mrb[0].mxu0
      %v2297 = vadd.f32 0.0, %v2296
      %v2298 = vpop.f32.mrb[0].mxu0
      %v2299 = vadd.f32 0.0, %v2298
      %v2300 = vpop.f32.mrb[0].mxu0
      %v2301 = vadd.f32 0.0, %v2300
      %2302 = vmatprep.mubr.bf16.mxu0 %v2244
      %2303 = vmatmul.mubr.bf16.gmra.mrb[0].mxu0 %v2243
      %v2304 = vpop.f32.mrb[0].mxu0
      %v2305 = vadd.f32 0.0, %v2304
      %v2306 = vpop.f32.mrb[0].mxu0
      %v2307 = vadd.f32 0.0, %v2306
      %v2308 = vpop.f32.mrb[0].mxu0
      %v2309 = vadd.f32 0.0, %v2308
      %v2310 = vpop.f32.mrb[0].mxu0
      %v2311 = vadd.f32 0.0, %v2310
      %2312 = vdwg.mxu0
      %2313 = vmatprep.subr.bf16.mxu0 %v2194
      %2314 = vmatpush1.bf16.msra.mxu0 %v2193
      %2315 = vmatprep.subr.bf16.mxu0 %v2196
      %2316 = vmatpush1.bf16.msra.mxu0 %v2195
      %2317 = vmatprep.subr.bf16.mxu0 %v2198
      %2318 = vmatpush1.bf16.msra.mxu0 %v2197
      %2319 = vmatprep.subr.bf16.mxu0 %v2200
      %2320 = vmatpush1.bf16.msra.mxu0 %v2199
      %2321 = vmatprep.subr.bf16.mxu0 %v2202
      %2322 = vmatpush1.bf16.msra.mxu0 %v2201
      %2323 = vmatprep.subr.bf16.mxu0 %v2204
      %2324 = vmatpush1.bf16.msra.mxu0 %v2203
      %2325 = vmatprep.subr.bf16.mxu0 %v2206
      %2326 = vmatpush1.bf16.msra.mxu0 %v2205
      %2327 = vmatprep.subr.bf16.mxu0 %v2208
      %2328 = vmatpush1.bf16.msra.mxu0 %v2207
      %2329 = vmatprep.subr.bf16.mxu0 %v2210
      %2330 = vmatpush1.bf16.msra.mxu0 %v2209
      %2331 = vmatprep.subr.bf16.mxu0 %v2212
      %2332 = vmatpush1.bf16.msra.mxu0 %v2211
      %2333 = vmatprep.subr.bf16.mxu0 %v2214
      %2334 = vmatpush1.bf16.msra.mxu0 %v2213
      %2335 = vmatprep.subr.bf16.mxu0 0
      %2336 = vmatpush1.bf16.msra.mxu0 0
      %2337 = vmatprep.subr.bf16.mxu0 0
      %2338 = vmatpush1.bf16.msra.mxu0 0
      %2339 = vmatprep.subr.bf16.mxu0 0
      %2340 = vmatpush1.bf16.msra.mxu0 0
      %2341 = vmatprep.subr.bf16.mxu0 0
      %2342 = vmatpush1.bf16.msra.mxu0 0
      %2343 = vmatprep.subr.bf16.mxu0 0
      %2344 = vmatpush1.bf16.msra.mxu0 0
      %2345 = vmatprep.mubr.bf16.mxu0 %v2255
      %2346 = vmatmul.mubr.bf16.gmra.mrb[0].mxu0 %v2241
      %v2347 = vpop.f32.mrb[0].mxu0
      %v2348 = vadd.f32 %v2295, %v2347
      %v2349 = vpop.f32.mrb[0].mxu0
      %v2350 = vadd.f32 %v2297, %v2349
      %v2351 = vpop.f32.mrb[0].mxu0
      %v2352 = vadd.f32 %v2299, %v2351
      %v2353 = vpop.f32.mrb[0].mxu0
      %v2354 = vadd.f32 %v2301, %v2353
      %2355 = vmatprep.mubr.bf16.mxu0 %v2258
      %2356 = vmatmul.mubr.bf16.gmra.mrb[0].mxu0 %v2245
      %v2357 = vpop.f32.mrb[0].mxu0
      %v2358 = vadd.f32 %v2305, %v2357
      %v2359 = vpop.f32.mrb[0].mxu0
      %v2360 = vadd.f32 %v2307, %v2359
      %v2361 = vpop.f32.mrb[0].mxu0
      %v2362 = vadd.f32 %v2309, %v2361
      %v2363 = vpop.f32.mrb[0].mxu0
      %v2364 = vadd.f32 %v2311, %v2363
      %2365 = vdwg.mxu0
      %v2366 = vld [vmem:[%s4] sm:$0xff]
      %v2367 = vld [vmem:[%s4 + $0x8] sm:$0xff]
      %v2368 = vld [vmem:[%s4 + $0x10] sm:$0xff]
      %v2369 = vld [vmem:[%s4 + $0x18] sm:$0xff]
      %2371 = vset.pattern.permute.xlu0 2
      %2372 = vperm.xlu0 %2371, %v2366
      %v2373 = vpop.permute.xlu0 %2372
      %2376 = vset.pattern.permute.xlu0 2
      %2377 = vperm.xlu0 %2376, %v2367
      %v2378 = vpop.permute.xlu0 %2377
      %2381 = vset.pattern.permute.xlu0 2
      %2382 = vperm.xlu0 %2381, %v2368
      %v2383 = vpop.permute.xlu0 %2382
      %2386 = vset.pattern.permute.xlu0 2
      %2387 = vperm.xlu0 %2386, %v2369
      %v2388 = vpop.permute.xlu0 %2387
      %v2390 = vmul.f32 %v2348, %v2373
      %v2391 = vmul.f32 %v2350, %v2373
      %v2392 = vmul.f32 %v2352, %v2378
      %v2393 = vmul.f32 %v2354, %v2378
      %v2394 = vmul.f32 %v2358, %v2383
      %v2395 = vmul.f32 %v2360, %v2383
      %v2396 = vmul.f32 %v2362, %v2388
      %v2397 = vmul.f32 %v2364, %v2388
      %2398 = vset.pattern.permute.xlu0 3
      %2399 = vperm.xlu0 %2398, %v2366
      %v2400 = vpop.permute.xlu0 %2399
      %2402 = vset.pattern.permute.xlu0 3
      %2403 = vperm.xlu0 %2402, %v2367
      %v2404 = vpop.permute.xlu0 %2403
      %2406 = vset.pattern.permute.xlu0 3
      %2407 = vperm.xlu0 %2406, %v2368
      %v2408 = vpop.permute.xlu0 %2407
      %2410 = vset.pattern.permute.xlu0 3
      %2411 = vperm.xlu0 %2410, %v2369
      %v2412 = vpop.permute.xlu0 %2411
      %v2414 = vadd.f32 %v2390, %v2400
      %v2415 = vadd.f32 %v2391, %v2400
      %v2416 = vadd.f32 %v2392, %v2404
      %v2417 = vadd.f32 %v2393, %v2404
      %v2418 = vadd.f32 %v2394, %v2408
      %v2419 = vadd.f32 %v2395, %v2408
      %v2420 = vadd.f32 %v2396, %v2412
      %v2421 = vadd.f32 %v2397, %v2412
      %v2422 = vmax.f32 %v2414, 0.0
      %v2423 = vmax.f32 %v2415, 0.0
      %v2424 = vmax.f32 %v2416, 0.0
      %v2425 = vmax.f32 %v2417, 0.0
      %v2426 = vmax.f32 %v2418, 0.0
      %v2427 = vmax.f32 %v2419, 0.0
      %v2428 = vmax.f32 %v2420, 0.0
      %v2429 = vmax.f32 %v2421, 0.0
      %2438 = vrot.lane.b32.xlu0 %v2422, 127
      %v2439 = vpop.permute.xlu0 %2438
      %2440 = vrot.lane.b32.xlu0 %v2423, 127
      %v2441 = vpop.permute.xlu0 %2440
      %2442 = vrot.lane.b32.xlu0 %v2424, 127
      %v2443 = vpop.permute.xlu0 %2442
      %2444 = vrot.lane.b32.xlu0 %v2425, 127
      %v2445 = vpop.permute.xlu0 %2444
      %2446 = vrot.lane.b32.xlu0 %v2426, 127
      %v2447 = vpop.permute.xlu0 %2446
      %2448 = vrot.lane.b32.xlu0 %v2427, 127
      %v2449 = vpop.permute.xlu0 %2448
      %2450 = vrot.lane.b32.xlu0 %v2428, 127
      %v2451 = vpop.permute.xlu0 %2450
      %2452 = vrot.lane.b32.xlu0 %v2429, 127
      %v2453 = vpop.permute.xlu0 %2452
      %v2454 = vsel %vm340, %v2439, %v2441
      %v2455 = vsel %vm340, %v2443, %v2445
      %v2456 = vsel %vm340, %v2447, %v2449
      %v2457 = vsel %vm340, %v2451, %v2453
      %v2466 = vmax.f32 %v2422, %v2454
      %v2467 = vmax.f32 %v2423, %v2441
      %v2468 = vmax.f32 %v2424, %v2455
      %v2469 = vmax.f32 %v2425, %v2445
      %v2470 = vmax.f32 %v2426, %v2456
      %v2471 = vmax.f32 %v2427, %v2449
      %v2472 = vmax.f32 %v2428, %v2457
      %v2473 = vmax.f32 %v2429, %v2453
      %2482 = vrot.lane.b32.xlu0 %v2466, 122
      %v2483 = vpop.permute.xlu0 %2482
      %2484 = vrot.lane.b32.xlu0 %v2467, 122
      %v2485 = vpop.permute.xlu0 %2484
      %2486 = vrot.lane.b32.xlu0 %v2468, 122
      %v2487 = vpop.permute.xlu0 %2486
      %2488 = vrot.lane.b32.xlu0 %v2469, 122
      %v2489 = vpop.permute.xlu0 %2488
      %2490 = vrot.lane.b32.xlu0 %v2470, 122
      %v2491 = vpop.permute.xlu0 %2490
      %2492 = vrot.lane.b32.xlu0 %v2471, 122
      %v2493 = vpop.permute.xlu0 %2492
      %2494 = vrot.lane.b32.xlu0 %v2472, 122
      %v2495 = vpop.permute.xlu0 %2494
      %2496 = vrot.lane.b32.xlu0 %v2473, 122
      %v2497 = vpop.permute.xlu0 %2496
      %vm2498 = vcmask 998400
      %v2499 = vsel %vm2498, %v2483, %v2485
      %v2500 = vsel %vm2498, %v2487, %v2489
      %v2501 = vsel %vm2498, %v2491, %v2493
      %v2502 = vsel %vm2498, %v2495, %v2497
      %v2507 = vmax.f32 %v2466, %v2499
      %v2508 = vmax.f32 %v2468, %v2500
      %v2509 = vmax.f32 %v2470, %v2501
      %v2510 = vmax.f32 %v2472, %v2502
      %2515 = vrot.lane.b32.xlu0 %v2507, 92
      %v2516 = vpop.permute.xlu0 %2515
      %2517 = vrot.lane.b32.xlu0 %v2508, 92
      %v2518 = vpop.permute.xlu0 %2517
      %2519 = vrot.lane.b32.xlu0 %v2509, 92
      %v2520 = vpop.permute.xlu0 %2519
      %2521 = vrot.lane.b32.xlu0 %v2510, 92
      %v2522 = vpop.permute.xlu0 %2521
      %v2527 = vmax.f32 %v2507, %v2516
      %v2528 = vmax.f32 %v2508, %v2518
      %v2529 = vmax.f32 %v2509, %v2520
      %v2530 = vmax.f32 %v2510, %v2522
      %v2531 = vpack.c.bf16 %v2528, %v2527
      %v2532 = vpack.c.bf16 %v2530, %v2529
      %v2533 = vld [vmem:[%s6] sm:$0xf]
      %v2534 = vld [vmem:[%s6 + $0x4] sm:$0xf]
      %v2535 = vld [vmem:[%s6 + $0x8] sm:$0xf]
      %v2536 = vld [vmem:[%s6 + $0xc] sm:$0xf]
      %v2537 = vld [vmem:[%s6 + $0x10] sm:$0xf]
      %v2538 = vld [vmem:[%s6 + $0x14] sm:$0xf]
      %v2539 = vld [vmem:[%s6 + $0x18] sm:$0xf]
      %v2540 = vld [vmem:[%s6 + $0x1c] sm:$0xf]
      %v2541 = vld [vmem:[%s6 + $0x20] sm:$0xf]
      %v2542 = vld [vmem:[%s6 + $0x24] sm:$0xf]
      %v2543 = vld [vmem:[%s6 + $0x28] sm:$0xf]
      %v2555 = vunpack.c.l.b16 %v2533
      %v2556 = vunpack.c.l.b16 %v2534
      %v2557 = vunpack.c.l.b16 %v2535
      %v2558 = vunpack.c.l.b16 %v2536
      %v2559 = vunpack.c.l.b16 %v2537
      %v2560 = vunpack.c.l.b16 %v2538
      %v2561 = vunpack.c.l.b16 %v2539
      %v2562 = vunpack.c.l.b16 %v2540
      %v2563 = vunpack.c.l.b16 %v2541
      %v2564 = vunpack.c.l.b16 %v2542
      %v2565 = vunpack.c.l.b16 %v2543
      %v2566 = vpack.c.b16 %v2556, %v2555
      %v2567 = vpack.c.b16 %v2558, %v2557
      %v2568 = vpack.c.b16 %v2560, %v2559
      %v2569 = vpack.c.b16 %v2562, %v2561
      %v2570 = vpack.c.b16 %v2564, %v2563
      %v2571 = vpack.c.b16 %v2565, %v2565
      %vm2577 = vcmask 711680
      %v2579 = vsel %vm2577, %v2531, 0
      %v2582 = vsel %vm2577, %v2532, 0
      %vm2584 = vcmask 1043456
      %v2585 = vsel %vm616, 4294967295, 65535
      %v2586 = vsel %vm2584, %v2585, 0
      %v2588 = vand.u32 %v2571, %v2586
      %2590 = vmatprep.subr.bf16.mxu0 0
      %2591 = vmatpush1.bf16.msra.mxu0 %v2566
      %2592 = vmatprep.subr.bf16.mxu0 0
      %2593 = vmatpush1.bf16.msra.mxu0 %v2567
      %2594 = vmatprep.subr.bf16.mxu0 0
      %2595 = vmatpush1.bf16.msra.mxu0 %v2568
      %2596 = vmatprep.subr.bf16.mxu0 0
      %2597 = vmatpush1.bf16.msra.mxu0 %v2569
      %2598 = vmatprep.subr.bf16.mxu0 0
      %2599 = vmatpush1.bf16.msra.mxu0 %v2570
      %2600 = vmatprep.subr.bf16.mxu0 0
      %2601 = vmatpush1.bf16.msra.mxu0 %v2588
      %2602 = vmatprep.subr.bf16.mxu0 0
      %2603 = vmatpush1.bf16.msra.mxu0 0
      %2604 = vmatprep.subr.bf16.mxu0 0
      %2605 = vmatpush1.bf16.msra.mxu0 0
      %2606 = vmatprep.subr.bf16.mxu0 0
      %2607 = vmatpush1.bf16.msra.mxu0 0
      %2608 = vmatprep.subr.bf16.mxu0 0
      %2609 = vmatpush1.bf16.msra.mxu0 0
      %2610 = vmatprep.subr.bf16.mxu0 0
      %2611 = vmatpush1.bf16.msra.mxu0 0
      %2612 = vmatprep.subr.bf16.mxu0 0
      %2613 = vmatpush1.bf16.msra.mxu0 0
      %2614 = vmatprep.subr.bf16.mxu0 0
      %2615 = vmatpush1.bf16.msra.mxu0 0
      %2616 = vmatprep.subr.bf16.mxu0 0
      %2617 = vmatpush1.bf16.msra.mxu0 0
      %2618 = vmatprep.subr.bf16.mxu0 0
      %2619 = vmatpush1.bf16.msra.mxu0 0
      %2620 = vmatprep.subr.bf16.mxu0 0
      %2621 = vmatpush1.bf16.msra.mxu0 0
      %2622 = vmatprep.mubr.bf16.mxu0 0
      %2623 = vmatmul.mubr.bf16.gmra.mrb[0].mxu0 %v2579
      %v2624 = vpop.f32.mrb[0].mxu0
      %v2625 = vadd.f32 0.0, %v2624
      %v2626 = vpop.f32.mrb[0].mxu0
      %v2627 = vpop.f32.mrb[0].mxu0
      %v2628 = vadd.f32 0.0, %v2627
      %v2629 = vpop.f32.mrb[0].mxu0
      %2630 = vmatprep.mubr.bf16.mxu0 0
      %2631 = vmatmul.mubr.bf16.gmra.mrb[0].mxu0 %v2582
      %v2632 = vpop.f32.mrb[0].mxu0
      %v2633 = vadd.f32 0.0, %v2632
      %v2634 = vpop.f32.mrb[0].mxu0
      %v2635 = vpop.f32.mrb[0].mxu0
      %v2636 = vadd.f32 0.0, %v2635
      %v2637 = vpop.f32.mrb[0].mxu0
      %2638 = vdwg.mxu0
      %v2639 = vpack.c.bf16 %v2628, %v2625
      %v2640 = vpack.c.bf16 %v2636, %v2633
      %vm2641 = vcmask 179200
      %2642 = vst.msk [vmem:[#allocation4] sm:$0xff] %vm2641, %v2639
      %2643 = vst.msk [vmem:[#allocation4 + $0x8] sm:$0xff] %vm2641, %v2640
      %2646 = vrot.lane.b32.xlu0 %v2639, 127
      %v2647 = vpop.permute.xlu0 %2646
      %2648 = vrot.lane.b32.xlu0 %v2640, 127
      %v2649 = vpop.permute.xlu0 %2648
      %2652 = vst.msk [vmem:[#allocation4 + $0x10] sm:$0xff] %vm2641, %v2647
      %2653 = vst.msk [vmem:[#allocation4 + $0x18] sm:$0xff] %vm2641, %v2649
      %2654 = vrot.lane.b32.xlu0 %v2639, 126
      %v2655 = vpop.permute.xlu0 %2654
      %2656 = vrot.lane.b32.xlu0 %v2640, 126
      %v2657 = vpop.permute.xlu0 %2656
      %2660 = vst.msk [vmem:[#allocation4 + $0x20] sm:$0xff] %vm2641, %v2655
      %2661 = vst.msk [vmem:[#allocation4 + $0x28] sm:$0xff] %vm2641, %v2657
      %2662 = vrot.lane.b32.xlu0 %v2639, 124
      %v2663 = vpop.permute.xlu0 %2662
      %2664 = vrot.lane.b32.xlu0 %v2640, 124
      %v2665 = vpop.permute.xlu0 %2664
      %2668 = vst.msk [vmem:[#allocation4 + $0x30] sm:$0xff] %vm2641, %v2663
      %2669 = vst.msk [vmem:[#allocation4 + $0x38] sm:$0xff] %vm2641, %v2665
      %2670 = vrot.lane.b32.xlu0 %v2639, 123
      %v2671 = vpop.permute.xlu0 %2670
      %2672 = vrot.lane.b32.xlu0 %v2640, 123
      %v2673 = vpop.permute.xlu0 %2672
      %2676 = vst.msk [vmem:[#allocation4 + $0x40] sm:$0xff] %vm2641, %v2671
      %2677 = vst.msk [vmem:[#allocation4 + $0x48] sm:$0xff] %vm2641, %v2673
      %2678 = vrot.lane.b32.xlu0 %v2639, 122
      %v2679 = vpop.permute.xlu0 %2678
      %2680 = vrot.lane.b32.xlu0 %v2640, 122
      %v2681 = vpop.permute.xlu0 %2680
      %2684 = vst.msk [vmem:[#allocation4 + $0x50] sm:$0xff] %vm2641, %v2679
      %2685 = vst.msk [vmem:[#allocation4 + $0x58] sm:$0xff] %vm2641, %v2681
      %2686 = vrot.lane.b32.xlu0 %v2639, 120
      %v2687 = vpop.permute.xlu0 %2686
      %2688 = vrot.lane.b32.xlu0 %v2640, 120
      %v2689 = vpop.permute.xlu0 %2688
      %2692 = vst.msk [vmem:[#allocation4 + $0x60] sm:$0xff] %vm2641, %v2687
      %2693 = vst.msk [vmem:[#allocation4 + $0x68] sm:$0xff] %vm2641, %v2689
      %2694 = vrot.lane.b32.xlu0 %v2639, 119
      %v2695 = vpop.permute.xlu0 %2694
      %2696 = vrot.lane.b32.xlu0 %v2640, 119
      %v2697 = vpop.permute.xlu0 %2696
      %2700 = vst.msk [vmem:[#allocation4 + $0x70] sm:$0xff] %vm2641, %v2695
      %2701 = vst.msk [vmem:[#allocation4 + $0x78] sm:$0xff] %vm2641, %v2697
      %2702 = vrot.lane.b32.xlu0 %v2639, 118
      %v2703 = vpop.permute.xlu0 %2702
      %2704 = vrot.lane.b32.xlu0 %v2640, 118
      %v2705 = vpop.permute.xlu0 %2704
      %2708 = vst.msk [vmem:[#allocation4 + $0x80] sm:$0xff] %vm2641, %v2703
      %2709 = vst.msk [vmem:[#allocation4 + $0x88] sm:$0xff] %vm2641, %v2705
      %2710 = vrot.lane.b32.xlu0 %v2639, 112
      %v2711 = vpop.permute.xlu0 %2710
      %2712 = vrot.lane.b32.xlu0 %v2640, 112
      %v2713 = vpop.permute.xlu0 %2712
      %2716 = vst.msk [vmem:[#allocation4 + $0x90] sm:$0xff] %vm2641, %v2711
      %2717 = vst.msk [vmem:[#allocation4 + $0x98] sm:$0xff] %vm2641, %v2713
      %2718 = vrot.lane.b32.xlu0 %v2639, 111
      %v2719 = vpop.permute.xlu0 %2718
      %2720 = vrot.lane.b32.xlu0 %v2640, 111
      %v2721 = vpop.permute.xlu0 %2720
      %2724 = vst.msk [vmem:[#allocation4 + $0xa0] sm:$0xff] %vm2641, %v2719
      %2725 = vst.msk [vmem:[#allocation4 + $0xa8] sm:$0xff] %vm2641, %v2721
      %2726 = vrot.lane.b32.xlu0 %v2639, 110
      %v2727 = vpop.permute.xlu0 %2726
      %2728 = vrot.lane.b32.xlu0 %v2640, 110
      %v2729 = vpop.permute.xlu0 %2728
      %2732 = vst.msk [vmem:[#allocation4 + $0xb0] sm:$0xff] %vm2641, %v2727
      %2733 = vst.msk [vmem:[#allocation4 + $0xb8] sm:$0xff] %vm2641, %v2729
      %2734 = vrot.lane.b32.xlu0 %v2639, 108
      %v2735 = vpop.permute.xlu0 %2734
      %2736 = vrot.lane.b32.xlu0 %v2640, 108
      %v2737 = vpop.permute.xlu0 %2736
      %2740 = vst.msk [vmem:[#allocation4 + $0xc0] sm:$0xff] %vm2641, %v2735
      %2741 = vst.msk [vmem:[#allocation4 + $0xc8] sm:$0xff] %vm2641, %v2737
      %2742 = vrot.lane.b32.xlu0 %v2639, 107
      %v2743 = vpop.permute.xlu0 %2742
      %2744 = vrot.lane.b32.xlu0 %v2640, 107
      %v2745 = vpop.permute.xlu0 %2744
      %2748 = vst.msk [vmem:[#allocation4 + $0xd0] sm:$0xff] %vm2641, %v2743
      %2749 = vst.msk [vmem:[#allocation4 + $0xd8] sm:$0xff] %vm2641, %v2745
      %2750 = vrot.lane.b32.xlu0 %v2639, 106
      %v2751 = vpop.permute.xlu0 %2750
      %2752 = vrot.lane.b32.xlu0 %v2640, 106
      %v2753 = vpop.permute.xlu0 %2752
      %2756 = vst.msk [vmem:[#allocation4 + $0xe0] sm:$0xff] %vm2641, %v2751
      %2757 = vst.msk [vmem:[#allocation4 + $0xe8] sm:$0xff] %vm2641, %v2753
      %2758 = vrot.lane.b32.xlu0 %v2639, 104
      %v2759 = vpop.permute.xlu0 %2758
      %2760 = vrot.lane.b32.xlu0 %v2640, 104
      %v2761 = vpop.permute.xlu0 %2760
      %2764 = vst.msk [vmem:[#allocation4 + $0xf0] sm:$0xff] %vm2641, %v2759
      %2765 = vst.msk [vmem:[#allocation4 + $0xf8] sm:$0xff] %vm2641, %v2761
      %2766 = vrot.lane.b32.xlu0 %v2639, 103
      %v2767 = vpop.permute.xlu0 %2766
      %2768 = vrot.lane.b32.xlu0 %v2640, 103
      %v2769 = vpop.permute.xlu0 %2768
      %2772 = vst.msk [vmem:[#allocation4 + $0x100] sm:$0xff] %vm2641, %v2767
      %2773 = vst.msk [vmem:[#allocation4 + $0x108] sm:$0xff] %vm2641, %v2769
      %2774 = vrot.lane.b32.xlu0 %v2639, 102
      %v2775 = vpop.permute.xlu0 %2774
      %2776 = vrot.lane.b32.xlu0 %v2640, 102
      %v2777 = vpop.permute.xlu0 %2776
      %2780 = vst.msk [vmem:[#allocation4 + $0x110] sm:$0xff] %vm2641, %v2775
      %2781 = vst.msk [vmem:[#allocation4 + $0x118] sm:$0xff] %vm2641, %v2777
      %2782 = vrot.lane.b32.xlu0 %v2639, 96
      %v2783 = vpop.permute.xlu0 %2782
      %2784 = vrot.lane.b32.xlu0 %v2640, 96
      %v2785 = vpop.permute.xlu0 %2784
      %2788 = vst.msk [vmem:[#allocation4 + $0x120] sm:$0xff] %vm2641, %v2783
      %2789 = vst.msk [vmem:[#allocation4 + $0x128] sm:$0xff] %vm2641, %v2785
      %2790 = vrot.lane.b32.xlu0 %v2639, 95
      %v2791 = vpop.permute.xlu0 %2790
      %2792 = vrot.lane.b32.xlu0 %v2640, 95
      %v2793 = vpop.permute.xlu0 %2792
      %2796 = vst.msk [vmem:[#allocation4 + $0x130] sm:$0xff] %vm2641, %v2791
      %2797 = vst.msk [vmem:[#allocation4 + $0x138] sm:$0xff] %vm2641, %v2793
      %2798 = vrot.lane.b32.xlu0 %v2639, 94
      %v2799 = vpop.permute.xlu0 %2798
      %2800 = vrot.lane.b32.xlu0 %v2640, 94
      %v2801 = vpop.permute.xlu0 %2800
      %2804 = vst.msk [vmem:[#allocation4 + $0x140] sm:$0xff] %vm2641, %v2799
      %2805 = vst.msk [vmem:[#allocation4 + $0x148] sm:$0xff] %vm2641, %v2801
      %2806 = vrot.lane.b32.xlu0 %v2639, 92
      %v2807 = vpop.permute.xlu0 %2806
      %2808 = vrot.lane.b32.xlu0 %v2640, 92
      %v2809 = vpop.permute.xlu0 %2808
      %2812 = vst.msk [vmem:[#allocation4 + $0x150] sm:$0xff] %vm2641, %v2807
      %2813 = vst.msk [vmem:[#allocation4 + $0x158] sm:$0xff] %vm2641, %v2809
      %2814 = vrot.lane.b32.xlu0 %v2639, 91
      %v2815 = vpop.permute.xlu0 %2814
      %2816 = vrot.lane.b32.xlu0 %v2640, 91
      %v2817 = vpop.permute.xlu0 %2816
      %2820 = vst.msk [vmem:[#allocation4 + $0x160] sm:$0xff] %vm2641, %v2815
      %2821 = vst.msk [vmem:[#allocation4 + $0x168] sm:$0xff] %vm2641, %v2817
      %2822 = vrot.lane.b32.xlu0 %v2639, 90
      %v2823 = vpop.permute.xlu0 %2822
      %2824 = vrot.lane.b32.xlu0 %v2640, 90
      %v2825 = vpop.permute.xlu0 %2824
      %2828 = vst.msk [vmem:[#allocation4 + $0x170] sm:$0xff] %vm2641, %v2823
      %2829 = vst.msk [vmem:[#allocation4 + $0x178] sm:$0xff] %vm2641, %v2825
      %2830 = vrot.lane.b32.xlu0 %v2639, 88
      %v2831 = vpop.permute.xlu0 %2830
      %2832 = vrot.lane.b32.xlu0 %v2640, 88
      %v2833 = vpop.permute.xlu0 %2832
      %2836 = vst.msk [vmem:[#allocation4 + $0x180] sm:$0xff] %vm2641, %v2831
      %2837 = vst.msk [vmem:[#allocation4 + $0x188] sm:$0xff] %vm2641, %v2833
      %2838 = vrot.lane.b32.xlu0 %v2639, 87
      %v2839 = vpop.permute.xlu0 %2838
      %2840 = vrot.lane.b32.xlu0 %v2640, 87
      %v2841 = vpop.permute.xlu0 %2840
      %2844 = vst.msk [vmem:[#allocation4 + $0x190] sm:$0xff] %vm2641, %v2839
      %2845 = vst.msk [vmem:[#allocation4 + $0x198] sm:$0xff] %vm2641, %v2841
      %2846 = vrot.lane.b32.xlu0 %v2639, 86
      %v2847 = vpop.permute.xlu0 %2846
      %2848 = vrot.lane.b32.xlu0 %v2640, 86
      %v2849 = vpop.permute.xlu0 %2848
      %2852 = vst.msk [vmem:[#allocation4 + $0x1a0] sm:$0xff] %vm2641, %v2847
      %2853 = vst.msk [vmem:[#allocation4 + $0x1a8] sm:$0xff] %vm2641, %v2849
      %v2854 = vld [vmem:[%s3] sm:$0xff]
      %v2855 = vld [vmem:[%s3 + $0x8] sm:$0xff]
      %v2856 = vld [vmem:[%s3 + $0x10] sm:$0xff]
      %v2857 = vld [vmem:[%s3 + $0x18] sm:$0xf]
      %v2858 = vld [vmem:[%s3 + $0x1c] sm:$0xff]
      %v2859 = vld [vmem:[%s3 + $0x24] sm:$0xff]
      %v2860 = vld [vmem:[%s3 + $0x2c] sm:$0xff]
      %v2861 = vld [vmem:[%s3 + $0x34] sm:$0xf]
      %v2862 = vld [vmem:[%s3 + $0x38] sm:$0xff]
      %v2863 = vld [vmem:[%s3 + $0x40] sm:$0xff]
      %v2864 = vld [vmem:[%s3 + $0x48] sm:$0xff]
      %v2865 = vld [vmem:[%s3 + $0x50] sm:$0xf]
      %v2866 = vld [vmem:[%s3 + $0x54] sm:$0xff]
      %v2867 = vld [vmem:[%s3 + $0x5c] sm:$0xff]
      %v2868 = vld [vmem:[%s3 + $0x64] sm:$0xff]
      %v2869 = vld [vmem:[%s3 + $0x6c] sm:$0xf]
      %v2870 = vld [vmem:[%s3 + $0x70] sm:$0xff]
      %v2871 = vld [vmem:[%s3 + $0x78] sm:$0xff]
      %v2872 = vld [vmem:[%s3 + $0x80] sm:$0xff]
      %v2873 = vld [vmem:[%s3 + $0x88] sm:$0xf]
      %v2874 = vld [vmem:[%s3 + $0x8c] sm:$0xff]
      %v2875 = vld [vmem:[%s3 + $0x94] sm:$0xff]
      %v2876 = vld [vmem:[%s3 + $0x9c] sm:$0xff]
      %v2877 = vld [vmem:[%s3 + $0xa4] sm:$0xf]
      %v2878 = vld [vmem:[%s3 + $0xa8] sm:$0xff]
      %v2879 = vld [vmem:[%s3 + $0xb0] sm:$0xff]
      %v2880 = vld [vmem:[%s3 + $0xb8] sm:$0xff]
      %v2881 = vld [vmem:[%s3 + $0xc0] sm:$0xf]
      %v2882 = vld [vmem:[%s3 + $0xc4] sm:$0xff]
      %v2883 = vld [vmem:[%s3 + $0xcc] sm:$0xff]
      %v2884 = vld [vmem:[%s3 + $0xd4] sm:$0xff]
      %v2885 = vld [vmem:[%s3 + $0xdc] sm:$0xf]
      %v2886 = vld [vmem:[#allocation4] sm:$0xff]
      %v2887 = vld [vmem:[#allocation4 + $0x8] sm:$0xff]
      %v2888 = vld [vmem:[#allocation4 + $0x10] sm:$0xff]
      %v2889 = vld [vmem:[#allocation4 + $0x18] sm:$0xff]
      %v2890 = vld [vmem:[#allocation4 + $0x20] sm:$0xff]
      %v2891 = vld [vmem:[#allocation4 + $0x28] sm:$0xff]
      %v2892 = vld [vmem:[#allocation4 + $0x30] sm:$0xff]
      %v2893 = vld [vmem:[#allocation4 + $0x38] sm:$0xff]
      %v2894 = vld [vmem:[#allocation4 + $0x40] sm:$0xff]
      %v2895 = vld [vmem:[#allocation4 + $0x48] sm:$0xff]
      %v2896 = vld [vmem:[#allocation4 + $0x50] sm:$0xff]
      %v2897 = vld [vmem:[#allocation4 + $0x58] sm:$0xff]
      %v2898 = vld [vmem:[#allocation4 + $0x60] sm:$0xff]
      %v2899 = vld [vmem:[#allocation4 + $0x68] sm:$0xff]
      %v2900 = vld [vmem:[#allocation4 + $0x70] sm:$0xff]
      %v2901 = vld [vmem:[#allocation4 + $0x78] sm:$0xff]
      %v2902 = vld [vmem:[#allocation4 + $0x80] sm:$0xff]
      %v2903 = vld [vmem:[#allocation4 + $0x88] sm:$0xff]
      %v2904 = vld [vmem:[#allocation4 + $0x90] sm:$0xff]
      %v2905 = vld [vmem:[#allocation4 + $0x98] sm:$0xff]
      %v2906 = vld [vmem:[#allocation4 + $0xa0] sm:$0xff]
      %v2907 = vld [vmem:[#allocation4 + $0xa8] sm:$0xff]
      %v2908 = vld [vmem:[#allocation4 + $0xb0] sm:$0xff]
      %v2909 = vld [vmem:[#allocation4 + $0xb8] sm:$0xff]
      %v2910 = vld [vmem:[#allocation4 + $0xc0] sm:$0xff]
      %v2911 = vld [vmem:[#allocation4 + $0xc8] sm:$0xff]
      %v2912 = vld [vmem:[#allocation4 + $0xd0] sm:$0xff]
      %v2913 = vld [vmem:[#allocation4 + $0xd8] sm:$0xff]
      %v2914 = vld [vmem:[#allocation4 + $0xe0] sm:$0xff]
      %v2915 = vld [vmem:[#allocation4 + $0xe8] sm:$0xff]
      %v2916 = vld [vmem:[#allocation4 + $0xf0] sm:$0xff]
      %v2917 = vld [vmem:[#allocation4 + $0xf8] sm:$0xff]
      %v2918 = vld [vmem:[#allocation4 + $0x100] sm:$0xff]
      %v2919 = vld [vmem:[#allocation4 + $0x108] sm:$0xff]
      %v2920 = vld [vmem:[#allocation4 + $0x110] sm:$0xff]
      %v2921 = vld [vmem:[#allocation4 + $0x118] sm:$0xff]
      %v2922 = vld [vmem:[#allocation4 + $0x120] sm:$0xff]
      %v2923 = vld [vmem:[#allocation4 + $0x128] sm:$0xff]
      %v2924 = vld [vmem:[#allocation4 + $0x130] sm:$0xff]
      %v2925 = vld [vmem:[#allocation4 + $0x138] sm:$0xff]
      %v2926 = vld [vmem:[#allocation4 + $0x140] sm:$0xff]
      %v2927 = vld [vmem:[#allocation4 + $0x148] sm:$0xff]
      %v2928 = vld [vmem:[#allocation4 + $0x150] sm:$0xff]
      %v2929 = vld [vmem:[#allocation4 + $0x158] sm:$0xff]
      %v2930 = vld [vmem:[#allocation4 + $0x160] sm:$0xff]
      %v2931 = vld [vmem:[#allocation4 + $0x168] sm:$0xff]
      %v2932 = vld [vmem:[#allocation4 + $0x170] sm:$0xff]
      %v2933 = vld [vmem:[#allocation4 + $0x178] sm:$0xff]
      %v2934 = vld [vmem:[#allocation4 + $0x180] sm:$0xff]
      %v2935 = vld [vmem:[#allocation4 + $0x188] sm:$0xff]
      %v2936 = vld [vmem:[#allocation4 + $0x190] sm:$0xff]
      %v2937 = vld [vmem:[#allocation4 + $0x198] sm:$0xff]
      %v2938 = vld [vmem:[#allocation4 + $0x1a0] sm:$0xff]
      %v2939 = vld [vmem:[#allocation4 + $0x1a8] sm:$0xff]
      %v2972 = vunpack.c.l.b16 %v2854
      %v2973 = vunpack.c.h.b16 %v2854
      %v2974 = vunpack.c.l.b16 %v2855
      %v2975 = vunpack.c.h.b16 %v2855
      %v2976 = vunpack.c.l.b16 %v2856
      %v2977 = vunpack.c.h.b16 %v2856
      %v2978 = vunpack.c.l.b16 %v2857
      %v2979 = vunpack.c.l.b16 %v2858
      %v2980 = vunpack.c.h.b16 %v2858
      %v2981 = vunpack.c.l.b16 %v2859
      %v2982 = vunpack.c.h.b16 %v2859
      %v2983 = vunpack.c.l.b16 %v2860
      %v2984 = vunpack.c.h.b16 %v2860
      %v2985 = vunpack.c.l.b16 %v2861
      %v2986 = vunpack.c.l.b16 %v2862
      %v2987 = vunpack.c.h.b16 %v2862
      %v2988 = vunpack.c.l.b16 %v2863
      %v2989 = vunpack.c.h.b16 %v2863
      %v2990 = vunpack.c.l.b16 %v2864
      %v2991 = vunpack.c.h.b16 %v2864
      %v2992 = vunpack.c.l.b16 %v2865
      %v2993 = vunpack.c.l.b16 %v2866
      %v2994 = vunpack.c.h.b16 %v2866
      %v2995 = vunpack.c.l.b16 %v2867
      %v2996 = vunpack.c.h.b16 %v2867
      %v2997 = vunpack.c.l.b16 %v2868
      %v2998 = vunpack.c.h.b16 %v2868
      %v2999 = vunpack.c.l.b16 %v2869
      %v3000 = vunpack.c.l.b16 %v2870
      %v3001 = vunpack.c.h.b16 %v2870
      %v3002 = vunpack.c.l.b16 %v2871
      %v3003 = vunpack.c.h.b16 %v2871
      %v3004 = vunpack.c.l.b16 %v2872
      %v3005 = vunpack.c.h.b16 %v2872
      %v3006 = vunpack.c.l.b16 %v2873
      %v3007 = vunpack.c.l.b16 %v2874
      %v3008 = vunpack.c.h.b16 %v2874
      %v3009 = vunpack.c.l.b16 %v2875
      %v3010 = vunpack.c.h.b16 %v2875
      %v3011 = vunpack.c.l.b16 %v2876
      %v3012 = vunpack.c.h.b16 %v2876
      %v3013 = vunpack.c.l.b16 %v2877
      %v3014 = vunpack.c.l.b16 %v2878
      %v3015 = vunpack.c.h.b16 %v2878
      %v3016 = vunpack.c.l.b16 %v2879
      %v3017 = vunpack.c.h.b16 %v2879
      %v3018 = vunpack.c.l.b16 %v2880
      %v3019 = vunpack.c.h.b16 %v2880
      %v3020 = vunpack.c.l.b16 %v2881
      %v3021 = vunpack.c.l.b16 %v2882
      %v3022 = vunpack.c.h.b16 %v2882
      %v3023 = vunpack.c.l.b16 %v2883
      %v3024 = vunpack.c.h.b16 %v2883
      %v3025 = vunpack.c.l.b16 %v2884
      %v3026 = vunpack.c.h.b16 %v2884
      %v3027 = vunpack.c.l.b16 %v2885
      %v3028 = vpack.c.b16 %v2979, %v2972
      %v3029 = vpack.c.b16 %v2980, %v2973
      %v3030 = vpack.c.b16 %v2981, %v2974
      %v3031 = vpack.c.b16 %v2982, %v2975
      %v3032 = vpack.c.b16 %v2983, %v2976
      %v3033 = vpack.c.b16 %v2984, %v2977
      %v3034 = vpack.c.b16 %v2985, %v2978
      %v3035 = vpack.c.b16 %v2993, %v2986
      %v3036 = vpack.c.b16 %v2994, %v2987
      %v3037 = vpack.c.b16 %v2995, %v2988
      %v3038 = vpack.c.b16 %v2996, %v2989
      %v3039 = vpack.c.b16 %v2997, %v2990
      %v3040 = vpack.c.b16 %v2998, %v2991
      %v3041 = vpack.c.b16 %v2999, %v2992
      %v3042 = vpack.c.b16 %v3007, %v3000
      %v3043 = vpack.c.b16 %v3008, %v3001
      %v3044 = vpack.c.b16 %v3009, %v3002
      %v3045 = vpack.c.b16 %v3010, %v3003
      %v3046 = vpack.c.b16 %v3011, %v3004
      %v3047 = vpack.c.b16 %v3012, %v3005
      %v3048 = vpack.c.b16 %v3013, %v3006
      %v3049 = vpack.c.b16 %v3021, %v3014
      %v3050 = vpack.c.b16 %v3022, %v3015
      %v3051 = vpack.c.b16 %v3023, %v3016
      %v3052 = vpack.c.b16 %v3024, %v3017
      %v3053 = vpack.c.b16 %v3025, %v3018
      %v3054 = vpack.c.b16 %v3026, %v3019
      %v3055 = vpack.c.b16 %v3027, %v3020
      %vm3080 = vcmask 785408
      %v3082 = vsel %vm3080, %v3034, 0
      %v3085 = vsel %vm3080, %v3041, 0
      %v3088 = vsel %vm3080, %v3048, 0
      %v3091 = vsel %vm3080, %v3055, 0
      %3093 = vmatprep.subr.bf16.mxu0 0
      %3094 = vmatpush1.bf16.msra.mxu0 %v2886
      %3095 = vmatprep.subr.bf16.mxu0 0
      %3096 = vmatpush1.bf16.msra.mxu0 %v2887
      %3097 = vmatprep.subr.bf16.mxu0 0
      %3098 = vmatpush1.bf16.msra.mxu0 %v2888
      %3099 = vmatprep.subr.bf16.mxu0 0
      %3100 = vmatpush1.bf16.msra.mxu0 %v2889
      %3101 = vmatprep.subr.bf16.mxu0 0
      %3102 = vmatpush1.bf16.msra.mxu0 %v2890
      %3103 = vmatprep.subr.bf16.mxu0 0
      %3104 = vmatpush1.bf16.msra.mxu0 %v2891
      %3105 = vmatprep.subr.bf16.mxu0 0
      %3106 = vmatpush1.bf16.msra.mxu0 %v2892
      %3107 = vmatprep.subr.bf16.mxu0 0
      %3108 = vmatpush1.bf16.msra.mxu0 %v2893
      %3109 = vmatprep.subr.bf16.mxu0 0
      %3110 = vmatpush1.bf16.msra.mxu0 %v2894
      %3111 = vmatprep.subr.bf16.mxu0 0
      %3112 = vmatpush1.bf16.msra.mxu0 %v2895
      %3113 = vmatprep.subr.bf16.mxu0 0
      %3114 = vmatpush1.bf16.msra.mxu0 %v2896
      %3115 = vmatprep.subr.bf16.mxu0 0
      %3116 = vmatpush1.bf16.msra.mxu0 %v2897
      %3117 = vmatprep.subr.bf16.mxu0 0
      %3118 = vmatpush1.bf16.msra.mxu0 %v2898
      %3119 = vmatprep.subr.bf16.mxu0 0
      %3120 = vmatpush1.bf16.msra.mxu0 %v2899
      %3121 = vmatprep.subr.bf16.mxu0 0
      %3122 = vmatpush1.bf16.msra.mxu0 %v2900
      %3123 = vmatprep.subr.bf16.mxu0 0
      %3124 = vmatpush1.bf16.msra.mxu0 %v2901
      %3125 = vmatprep.mubr.bf16.mxu0 %v3029
      %3126 = vmatmul.mubr.bf16.gmra.mrb[0].mxu0 %v3028
      %v3127 = vpop.f32.mrb[0].mxu0
      %v3128 = vadd.f32 0.0, %v3127
      %v3129 = vpop.f32.mrb[0].mxu0
      %v3130 = vpop.f32.mrb[0].mxu0
      %v3131 = vadd.f32 0.0, %v3130
      %v3132 = vpop.f32.mrb[0].mxu0
      %3133 = vmatprep.mubr.bf16.mxu0 %v3036
      %3134 = vmatmul.mubr.bf16.gmra.mrb[0].mxu0 %v3035
      %v3135 = vpop.f32.mrb[0].mxu0
      %v3136 = vadd.f32 0.0, %v3135
      %v3137 = vpop.f32.mrb[0].mxu0
      %v3138 = vpop.f32.mrb[0].mxu0
      %v3139 = vadd.f32 0.0, %v3138
      %v3140 = vpop.f32.mrb[0].mxu0
      %3141 = vmatprep.mubr.bf16.mxu0 %v3043
      %3142 = vmatmul.mubr.bf16.gmra.mrb[0].mxu0 %v3042
      %v3143 = vpop.f32.mrb[0].mxu0
      %v3144 = vadd.f32 0.0, %v3143
      %v3145 = vpop.f32.mrb[0].mxu0
      %v3146 = vpop.f32.mrb[0].mxu0
      %v3147 = vadd.f32 0.0, %v3146
      %v3148 = vpop.f32.mrb[0].mxu0
      %3149 = vmatprep.mubr.bf16.mxu0 %v3050
      %3150 = vmatmul.mubr.bf16.gmra.mrb[0].mxu0 %v3049
      %v3151 = vpop.f32.mrb[0].mxu0
      %v3152 = vadd.f32 0.0, %v3151
      %v3153 = vpop.f32.mrb[0].mxu0
      %v3154 = vpop.f32.mrb[0].mxu0
      %v3155 = vadd.f32 0.0, %v3154
      %v3156 = vpop.f32.mrb[0].mxu0
      %3157 = vdwg.mxu0
      %3158 = vmatprep.subr.bf16.mxu0 0
      %3159 = vmatpush1.bf16.msra.mxu0 %v2902
      %3160 = vmatprep.subr.bf16.mxu0 0
      %3161 = vmatpush1.bf16.msra.mxu0 %v2903
      %3162 = vmatprep.subr.bf16.mxu0 0
      %3163 = vmatpush1.bf16.msra.mxu0 %v2904
      %3164 = vmatprep.subr.bf16.mxu0 0
      %3165 = vmatpush1.bf16.msra.mxu0 %v2905
      %3166 = vmatprep.subr.bf16.mxu0 0
      %3167 = vmatpush1.bf16.msra.mxu0 %v2906
      %3168 = vmatprep.subr.bf16.mxu0 0
      %3169 = vmatpush1.bf16.msra.mxu0 %v2907
      %3170 = vmatprep.subr.bf16.mxu0 0
      %3171 = vmatpush1.bf16.msra.mxu0 %v2908
      %3172 = vmatprep.subr.bf16.mxu0 0
      %3173 = vmatpush1.bf16.msra.mxu0 %v2909
      %3174 = vmatprep.subr.bf16.mxu0 0
      %3175 = vmatpush1.bf16.msra.mxu0 %v2910
      %3176 = vmatprep.subr.bf16.mxu0 0
      %3177 = vmatpush1.bf16.msra.mxu0 %v2911
      %3178 = vmatprep.subr.bf16.mxu0 0
      %3179 = vmatpush1.bf16.msra.mxu0 %v2912
      %3180 = vmatprep.subr.bf16.mxu0 0
      %3181 = vmatpush1.bf16.msra.mxu0 %v2913
      %3182 = vmatprep.subr.bf16.mxu0 0
      %3183 = vmatpush1.bf16.msra.mxu0 %v2914
      %3184 = vmatprep.subr.bf16.mxu0 0
      %3185 = vmatpush1.bf16.msra.mxu0 %v2915
      %3186 = vmatprep.subr.bf16.mxu0 0
      %3187 = vmatpush1.bf16.msra.mxu0 %v2916
      %3188 = vmatprep.subr.bf16.mxu0 0
      %3189 = vmatpush1.bf16.msra.mxu0 %v2917
      %3190 = vmatprep.mubr.bf16.mxu0 %v3031
      %3191 = vmatmul.mubr.bf16.gmra.mrb[0].mxu0 %v3030
      %v3192 = vpop.f32.mrb[0].mxu0
      %v3193 = vadd.f32 %v3128, %v3192
      %v3194 = vpop.f32.mrb[0].mxu0
      %v3195 = vpop.f32.mrb[0].mxu0
      %v3196 = vadd.f32 %v3131, %v3195
      %v3197 = vpop.f32.mrb[0].mxu0
      %3198 = vmatprep.mubr.bf16.mxu0 %v3038
      %3199 = vmatmul.mubr.bf16.gmra.mrb[0].mxu0 %v3037
      %v3200 = vpop.f32.mrb[0].mxu0
      %v3201 = vadd.f32 %v3136, %v3200
      %v3202 = vpop.f32.mrb[0].mxu0
      %v3203 = vpop.f32.mrb[0].mxu0
      %v3204 = vadd.f32 %v3139, %v3203
      %v3205 = vpop.f32.mrb[0].mxu0
      %3206 = vmatprep.mubr.bf16.mxu0 %v3045
      %3207 = vmatmul.mubr.bf16.gmra.mrb[0].mxu0 %v3044
      %v3208 = vpop.f32.mrb[0].mxu0
      %v3209 = vadd.f32 %v3144, %v3208
      %v3210 = vpop.f32.mrb[0].mxu0
      %v3211 = vpop.f32.mrb[0].mxu0
      %v3212 = vadd.f32 %v3147, %v3211
      %v3213 = vpop.f32.mrb[0].mxu0
      %3214 = vmatprep.mubr.bf16.mxu0 %v3052
      %3215 = vmatmul.mubr.bf16.gmra.mrb[0].mxu0 %v3051
      %v3216 = vpop.f32.mrb[0].mxu0
      %v3217 = vadd.f32 %v3152, %v3216
      %v3218 = vpop.f32.mrb[0].mxu0
      %v3219 = vpop.f32.mrb[0].mxu0
      %v3220 = vadd.f32 %v3155, %v3219
      %v3221 = vpop.f32.mrb[0].mxu0
      %3222 = vdwg.mxu0
      %3223 = vmatprep.subr.bf16.mxu0 0
      %3224 = vmatpush1.bf16.msra.mxu0 %v2918
      %3225 = vmatprep.subr.bf16.mxu0 0
      %3226 = vmatpush1.bf16.msra.mxu0 %v2919
      %3227 = vmatprep.subr.bf16.mxu0 0
      %3228 = vmatpush1.bf16.msra.mxu0 %v2920
      %3229 = vmatprep.subr.bf16.mxu0 0
      %3230 = vmatpush1.bf16.msra.mxu0 %v2921
      %3231 = vmatprep.subr.bf16.mxu0 0
      %3232 = vmatpush1.bf16.msra.mxu0 %v2922
      %3233 = vmatprep.subr.bf16.mxu0 0
      %3234 = vmatpush1.bf16.msra.mxu0 %v2923
      %3235 = vmatprep.subr.bf16.mxu0 0
      %3236 = vmatpush1.bf16.msra.mxu0 %v2924
      %3237 = vmatprep.subr.bf16.mxu0 0
      %3238 = vmatpush1.bf16.msra.mxu0 %v2925
      %3239 = vmatprep.subr.bf16.mxu0 0
      %3240 = vmatpush1.bf16.msra.mxu0 %v2926
      %3241 = vmatprep.subr.bf16.mxu0 0
      %3242 = vmatpush1.bf16.msra.mxu0 %v2927
      %3243 = vmatprep.subr.bf16.mxu0 0
      %3244 = vmatpush1.bf16.msra.mxu0 %v2928
      %3245 = vmatprep.subr.bf16.mxu0 0
      %3246 = vmatpush1.bf16.msra.mxu0 %v2929
      %3247 = vmatprep.subr.bf16.mxu0 0
      %3248 = vmatpush1.bf16.msra.mxu0 %v2930
      %3249 = vmatprep.subr.bf16.mxu0 0
      %3250 = vmatpush1.bf16.msra.mxu0 %v2931
      %3251 = vmatprep.subr.bf16.mxu0 0
      %3252 = vmatpush1.bf16.msra.mxu0 %v2932
      %3253 = vmatprep.subr.bf16.mxu0 0
      %3254 = vmatpush1.bf16.msra.mxu0 %v2933
      %3255 = vmatprep.mubr.bf16.mxu0 %v3033
      %3256 = vmatmul.mubr.bf16.gmra.mrb[0].mxu0 %v3032
      %v3257 = vpop.f32.mrb[0].mxu0
      %v3258 = vadd.f32 %v3193, %v3257
      %v3259 = vpop.f32.mrb[0].mxu0
      %v3260 = vpop.f32.mrb[0].mxu0
      %v3261 = vadd.f32 %v3196, %v3260
      %v3262 = vpop.f32.mrb[0].mxu0
      %3263 = vmatprep.mubr.bf16.mxu0 %v3040
      %3264 = vmatmul.mubr.bf16.gmra.mrb[0].mxu0 %v3039
      %v3265 = vpop.f32.mrb[0].mxu0
      %v3266 = vadd.f32 %v3201, %v3265
      %v3267 = vpop.f32.mrb[0].mxu0
      %v3268 = vpop.f32.mrb[0].mxu0
      %v3269 = vadd.f32 %v3204, %v3268
      %v3270 = vpop.f32.mrb[0].mxu0
      %3271 = vmatprep.mubr.bf16.mxu0 %v3047
      %3272 = vmatmul.mubr.bf16.gmra.mrb[0].mxu0 %v3046
      %v3273 = vpop.f32.mrb[0].mxu0
      %v3274 = vadd.f32 %v3209, %v3273
      %v3275 = vpop.f32.mrb[0].mxu0
      %v3276 = vpop.f32.mrb[0].mxu0
      %v3277 = vadd.f32 %v3212, %v3276
      %v3278 = vpop.f32.mrb[0].mxu0
      %3279 = vmatprep.mubr.bf16.mxu0 %v3054
      %3280 = vmatmul.mubr.bf16.gmra.mrb[0].mxu0 %v3053
      %v3281 = vpop.f32.mrb[0].mxu0
      %v3282 = vadd.f32 %v3217, %v3281
      %v3283 = vpop.f32.mrb[0].mxu0
      %v3284 = vpop.f32.mrb[0].mxu0
      %v3285 = vadd.f32 %v3220, %v3284
      %v3286 = vpop.f32.mrb[0].mxu0
      %3287 = vdwg.mxu0
      %3288 = vmatprep.subr.bf16.mxu0 0
      %3289 = vmatpush1.bf16.msra.mxu0 %v2934
      %3290 = vmatprep.subr.bf16.mxu0 0
      %3291 = vmatpush1.bf16.msra.mxu0 %v2935
      %3292 = vmatprep.subr.bf16.mxu0 0
      %3293 = vmatpush1.bf16.msra.mxu0 %v2936
      %3294 = vmatprep.subr.bf16.mxu0 0
      %3295 = vmatpush1.bf16.msra.mxu0 %v2937
      %3296 = vmatprep.subr.bf16.mxu0 0
      %3297 = vmatpush1.bf16.msra.mxu0 %v2938
      %3298 = vmatprep.subr.bf16.mxu0 0
      %3299 = vmatpush1.bf16.msra.mxu0 %v2939
      %3300 = vmatprep.subr.bf16.mxu0 0
      %3301 = vmatpush1.bf16.msra.mxu0 0
      %3302 = vmatprep.subr.bf16.mxu0 0
      %3303 = vmatpush1.bf16.msra.mxu0 0
      %3304 = vmatprep.subr.bf16.mxu0 0
      %3305 = vmatpush1.bf16.msra.mxu0 0
      %3306 = vmatprep.subr.bf16.mxu0 0
      %3307 = vmatpush1.bf16.msra.mxu0 0
      %3308 = vmatprep.subr.bf16.mxu0 0
      %3309 = vmatpush1.bf16.msra.mxu0 0
      %3310 = vmatprep.subr.bf16.mxu0 0
      %3311 = vmatpush1.bf16.msra.mxu0 0
      %3312 = vmatprep.subr.bf16.mxu0 0
      %3313 = vmatpush1.bf16.msra.mxu0 0
      %3314 = vmatprep.subr.bf16.mxu0 0
      %3315 = vmatpush1.bf16.msra.mxu0 0
      %3316 = vmatprep.subr.bf16.mxu0 0
      %3317 = vmatpush1.bf16.msra.mxu0 0
      %3318 = vmatprep.subr.bf16.mxu0 0
      %3319 = vmatpush1.bf16.msra.mxu0 0
      %3320 = vmatprep.mubr.bf16.mxu0 0
      %3321 = vmatmul.mubr.bf16.gmra.mrb[0].mxu0 %v3082
      %v3322 = vpop.f32.mrb[0].mxu0
      %v3323 = vadd.f32 %v3258, %v3322
      %v3324 = vpop.f32.mrb[0].mxu0
      %v3325 = vpop.f32.mrb[0].mxu0
      %v3326 = vadd.f32 %v3261, %v3325
      %v3327 = vpop.f32.mrb[0].mxu0
      %3328 = vmatprep.mubr.bf16.mxu0 0
      %3329 = vmatmul.mubr.bf16.gmra.mrb[0].mxu0 %v3085
      %v3330 = vpop.f32.mrb[0].mxu0
      %v3331 = vadd.f32 %v3266, %v3330
      %v3332 = vpop.f32.mrb[0].mxu0
      %v3333 = vpop.f32.mrb[0].mxu0
      %v3334 = vadd.f32 %v3269, %v3333
      %v3335 = vpop.f32.mrb[0].mxu0
      %3336 = vmatprep.mubr.bf16.mxu0 0
      %3337 = vmatmul.mubr.bf16.gmra.mrb[0].mxu0 %v3088
      %v3338 = vpop.f32.mrb[0].mxu0
      %v3339 = vadd.f32 %v3274, %v3338
      %v3340 = vpop.f32.mrb[0].mxu0
      %v3341 = vpop.f32.mrb[0].mxu0
      %v3342 = vadd.f32 %v3277, %v3341
      %v3343 = vpop.f32.mrb[0].mxu0
      %3344 = vmatprep.mubr.bf16.mxu0 0
      %3345 = vmatmul.mubr.bf16.gmra.mrb[0].mxu0 %v3091
      %v3346 = vpop.f32.mrb[0].mxu0
      %v3347 = vadd.f32 %v3282, %v3346
      %v3348 = vpop.f32.mrb[0].mxu0
      %v3349 = vpop.f32.mrb[0].mxu0
      %v3350 = vadd.f32 %v3285, %v3349
      %v3351 = vpop.f32.mrb[0].mxu0
      %3352 = vdwg.mxu0
      %v3353 = vld [vmem:[%s4] sm:$0xff]
      %v3354 = vld [vmem:[%s4 + $0x8] sm:$0xff]
      %v3355 = vld [vmem:[%s4 + $0x10] sm:$0xff]
      %v3356 = vld [vmem:[%s4 + $0x18] sm:$0xff]
      %v3357 = vld [vmem:[%s4 + $0x20] sm:$0xff]
      %v3358 = vld [vmem:[%s4 + $0x28] sm:$0xff]
      %v3359 = vld [vmem:[%s4 + $0x30] sm:$0xff]
      %v3360 = vld [vmem:[%s4 + $0x38] sm:$0xff]
      %3362 = vset.pattern.permute.xlu0 4
      %3363 = vperm.xlu0 %3362, %v3353
      %v3364 = vpop.permute.xlu0 %3363
      %3367 = vset.pattern.permute.xlu0 4
      %3368 = vperm.xlu0 %3367, %v3354
      %v3369 = vpop.permute.xlu0 %3368
      %3372 = vset.pattern.permute.xlu0 4
      %3373 = vperm.xlu0 %3372, %v3355
      %v3374 = vpop.permute.xlu0 %3373
      %3377 = vset.pattern.permute.xlu0 4
      %3378 = vperm.xlu0 %3377, %v3356
      %v3379 = vpop.permute.xlu0 %3378
      %3382 = vset.pattern.permute.xlu0 4
      %3383 = vperm.xlu0 %3382, %v3357
      %v3384 = vpop.permute.xlu0 %3383
      %3387 = vset.pattern.permute.xlu0 4
      %3388 = vperm.xlu0 %3387, %v3358
      %v3389 = vpop.permute.xlu0 %3388
      %3392 = vset.pattern.permute.xlu0 4
      %3393 = vperm.xlu0 %3392, %v3359
      %v3394 = vpop.permute.xlu0 %3393
      %3397 = vset.pattern.permute.xlu0 4
      %3398 = vperm.xlu0 %3397, %v3360
      %v3399 = vpop.permute.xlu0 %3398
      %v3401 = vmul.f32 %v3323, %v3364
      %v3402 = vmul.f32 %v3326, %v3369
      %v3403 = vmul.f32 %v3331, %v3374
      %v3404 = vmul.f32 %v3334, %v3379
      %v3405 = vmul.f32 %v3339, %v3384
      %v3406 = vmul.f32 %v3342, %v3389
      %v3407 = vmul.f32 %v3347, %v3394
      %v3408 = vmul.f32 %v3350, %v3399
      %3409 = vset.pattern.permute.xlu0 5
      %3410 = vperm.xlu0 %3409, %v3353
      %v3411 = vpop.permute.xlu0 %3410
      %3413 = vset.pattern.permute.xlu0 5
      %3414 = vperm.xlu0 %3413, %v3354
      %v3415 = vpop.permute.xlu0 %3414
      %3417 = vset.pattern.permute.xlu0 5
      %3418 = vperm.xlu0 %3417, %v3355
      %v3419 = vpop.permute.xlu0 %3418
      %3421 = vset.pattern.permute.xlu0 5
      %3422 = vperm.xlu0 %3421, %v3356
      %v3423 = vpop.permute.xlu0 %3422
      %3425 = vset.pattern.permute.xlu0 5
      %3426 = vperm.xlu0 %3425, %v3357
      %v3427 = vpop.permute.xlu0 %3426
      %3429 = vset.pattern.permute.xlu0 5
      %3430 = vperm.xlu0 %3429, %v3358
      %v3431 = vpop.permute.xlu0 %3430
      %3433 = vset.pattern.permute.xlu0 5
      %3434 = vperm.xlu0 %3433, %v3359
      %v3435 = vpop.permute.xlu0 %3434
      %3437 = vset.pattern.permute.xlu0 5
      %3438 = vperm.xlu0 %3437, %v3360
      %v3439 = vpop.permute.xlu0 %3438
      %v3441 = vadd.f32 %v3401, %v3411
      %v3442 = vadd.f32 %v3402, %v3415
      %v3443 = vadd.f32 %v3403, %v3419
      %v3444 = vadd.f32 %v3404, %v3423
      %v3445 = vadd.f32 %v3405, %v3427
      %v3446 = vadd.f32 %v3406, %v3431
      %v3447 = vadd.f32 %v3407, %v3435
      %v3448 = vadd.f32 %v3408, %v3439
      %v3449 = vmax.f32 %v3441, 0.0
      %v3450 = vmax.f32 %v3442, 0.0
      %v3451 = vmax.f32 %v3443, 0.0
      %v3452 = vmax.f32 %v3444, 0.0
      %v3453 = vmax.f32 %v3445, 0.0
      %v3454 = vmax.f32 %v3446, 0.0
      %v3455 = vmax.f32 %v3447, 0.0
      %v3456 = vmax.f32 %v3448, 0.0
      %v3457 = vld [vmem:[%s7] sm:$0x1]
      %v3459 = vlaneseq
      %v3460 = vshrl.u32 %v3459, 7
      %v3461 = vsub.s32 0, %v3460
      %v3462 = vrot.slane %v3457, %v3461
      %v3464 = vmul.f32 %v3449, %v3462
      %v3465 = vmul.f32 %v3450, %v3462
      %v3466 = vmul.f32 %v3451, %v3462
      %v3467 = vmul.f32 %v3452, %v3462
      %v3468 = vmul.f32 %v3453, %v3462
      %v3469 = vmul.f32 %v3454, %v3462
      %v3470 = vmul.f32 %v3455, %v3462
      %v3471 = vmul.f32 %v3456, %v3462
      %v3472 = vsel %vm2641, %v3464, 0.0
      %3473 = vadd.xlane.f32.xlu0 %v3472
      %v3474 = vpop.xlane.xlu0 %3473
      %v3475 = vsel %vm2641, %v3465, 0.0
      %3476 = vadd.xlane.f32.xlu0 %v3475
      %v3477 = vpop.xlane.xlu0 %3476
      %v3478 = vsel %vm2641, %v3466, 0.0
      %3479 = vadd.xlane.f32.xlu0 %v3478
      %v3480 = vpop.xlane.xlu0 %3479
      %v3481 = vsel %vm2641, %v3467, 0.0
      %3482 = vadd.xlane.f32.xlu0 %v3481
      %v3483 = vpop.xlane.xlu0 %3482
      %v3484 = vsel %vm2641, %v3468, 0.0
      %3485 = vadd.xlane.f32.xlu0 %v3484
      %v3486 = vpop.xlane.xlu0 %3485
      %v3487 = vsel %vm2641, %v3469, 0.0
      %3488 = vadd.xlane.f32.xlu0 %v3487
      %v3489 = vpop.xlane.xlu0 %3488
      %v3490 = vsel %vm2641, %v3470, 0.0
      %3491 = vadd.xlane.f32.xlu0 %v3490
      %v3492 = vpop.xlane.xlu0 %3491
      %v3493 = vsel %vm2641, %v3471, 0.0
      %3494 = vadd.xlane.f32.xlu0 %v3493
      %v3495 = vpop.xlane.xlu0 %3494
      %v3496 = vld [vmem:[%s8] sm:$0x7]
      %3498 = vrot.lane.b32.xlu0 %v3496, 64
      %v3499 = vpop.permute.xlu0 %3498
      %vm3501 = vcmask 523264
      %v3502 = vsel %vm3501, %v3496, 0
      %3504 = vmatprep.subr.mxu0 0.0
      %3505 = vmatpush1.msra.mxu0 %v3474
      %3506 = vmatprep.subr.mxu0 0.0
      %3507 = vmatpush1.msra.mxu0 %v3477
      %3508 = vmatprep.subr.mxu0 0.0
      %3509 = vmatpush1.msra.mxu0 %v3480
      %3510 = vmatprep.subr.mxu0 0.0
      %3511 = vmatpush1.msra.mxu0 %v3483
      %3512 = vmatprep.subr.mxu0 0.0
      %3513 = vmatpush1.msra.mxu0 %v3486
      %3514 = vmatprep.subr.mxu0 0.0
      %3515 = vmatpush1.msra.mxu0 %v3489
      %3516 = vmatprep.subr.mxu0 0.0
      %3517 = vmatpush1.msra.mxu0 %v3492
      %3518 = vmatprep.subr.mxu0 0.0
      %3519 = vmatpush1.msra.mxu0 %v3495
      %3520 = vmatprep.subr.mxu0 0.0
      %3521 = vmatpush1.msra.mxu0 0.0
      %3522 = vmatprep.subr.mxu0 0.0
      %3523 = vmatpush1.msra.mxu0 0.0
      %3524 = vmatprep.subr.mxu0 0.0
      %3525 = vmatpush1.msra.mxu0 0.0
      %3526 = vmatprep.subr.mxu0 0.0
      %3527 = vmatpush1.msra.mxu0 0.0
      %3528 = vmatprep.subr.mxu0 0.0
      %3529 = vmatpush1.msra.mxu0 0.0
      %3530 = vmatprep.subr.mxu0 0.0
      %3531 = vmatpush1.msra.mxu0 0.0
      %3532 = vmatprep.subr.mxu0 0.0
      %3533 = vmatpush1.msra.mxu0 0.0
      %3534 = vmatprep.subr.mxu0 0.0
      %3535 = vmatpush1.msra.mxu0 0.0
      %3536 = vmatprep.subr.mxu0 0.0
      %3537 = vmatpush1.msra.mxu0 0.0
      %3538 = vmatprep.subr.mxu0 0.0
      %3539 = vmatpush1.msra.mxu0 0.0
      %3540 = vmatprep.subr.mxu0 0.0
      %3541 = vmatpush1.msra.mxu0 0.0
      %3542 = vmatprep.subr.mxu0 0.0
      %3543 = vmatpush1.msra.mxu0 0.0
      %3544 = vmatprep.subr.mxu0 0.0
      %3545 = vmatpush1.msra.mxu0 0.0
      %3546 = vmatprep.subr.mxu0 0.0
      %3547 = vmatpush1.msra.mxu0 0.0
      %3548 = vmatprep.subr.mxu0 0.0
      %3549 = vmatpush1.msra.mxu0 0.0
      %3550 = vmatprep.subr.mxu0 0.0
      %3551 = vmatpush1.msra.mxu0 0.0
      %3552 = vmatprep.subr.mxu0 0.0
      %3553 = vmatpush1.msra.mxu0 0.0
      %3554 = vmatprep.subr.mxu0 0.0
      %3555 = vmatpush1.msra.mxu0 0.0
      %3556 = vmatprep.subr.mxu0 0.0
      %3557 = vmatpush1.msra.mxu0 0.0
      %3558 = vmatprep.subr.mxu0 0.0
      %3559 = vmatpush1.msra.mxu0 0.0
      %3560 = vmatprep.subr.mxu0 0.0
      %3561 = vmatpush1.msra.mxu0 0.0
      %3562 = vmatprep.subr.mxu0 0.0
      %3563 = vmatpush1.msra.mxu0 0.0
      %3564 = vmatprep.subr.mxu0 0.0
      %3565 = vmatpush1.msra.mxu0 0.0
      %3566 = vmatprep.subr.mxu0 0.0
      %3567 = vmatpush1.msra.mxu0 0.0
      %3568 = vmatprep.mubr.f32.mxu0 0.0
      %3569 = vmatmul.mubr.f32.gmra.mrb[0].mxu0 %v3502
      %v3570 = vpop.f32.mrb[0].mxu0
      %v3571 = vadd.f32 %v3499, %v3570
      %v3572 = vpop.f32.mrb[0].mxu0
      %3573 = vdwg.mxu0
      %3575 = vset.pattern.permute.xlu0 0
      %3576 = vperm.xlu0 %3575, %v3571
      %v3577 = vpop.permute.xlu0 %3576
      %3579 = vst [vmem:[%s327] sm:$0x7] %v3577
      %p3580 = scmp.lt.s32.totalorder %s20, 1
      %s3581 = scalar_select %p3580, %s20, 1
      %s3582 = smul.addr %s3581, 4
      %s3583 = scalar_lea.vmem %s9, %s3582
      // Predicated region
      $region57: #{forward.1} parent=55 // pred_check
        %p3584 = pneg %p232
      $region58: #{forward.1} parent=55 // pred_check_branch
        %3586 = sbr.rel (%p3584) target = $region60
      $region59: #{forward.1} parent=55 // pred_region
        _
      $region60: #{forward.1} parent=55 // pred_fallthru
        _
    $region56: #{forward.1} parent=5 // pred_fallthru
      _
    %p3587 = scmp.le.s32.totalorder 2, %s15
    // Predicated region
    $region61: #{forward.1} parent=5 // pred_check
      %p3588 = pneg %p3587
    $region62: #{forward.1} parent=5 // pred_check_branch
      %3590 = sbr.rel (%p3588) target = $region64
    $region63: #{forward.1} parent=5 // pred_region
      %s3591 = ssub.s32 %s15, 2
      // Predicated region
      $region65: #{forward.1} parent=63 // pred_check
        %p3592 = pneg %p238
      $region66: #{forward.1} parent=63 // pred_check_branch
        %3594 = sbr.rel (%p3592) target = $region68
      $region67: #{forward.1} parent=63 // pred_region
        %p3595 = scmp.lt.s32.totalorder %s21, 1
        %s3596 = scalar_select %p3595, %s21, 1
        %s3597 = smul.addr %s3596, 4
        %s3598 = scalar_lea.vmem %s9, %s3597
      $region68: #{forward.1} parent=63 // pred_fallthru
        _
    $region64: #{forward.1} parent=5 // pred_fallthru
      _
  $region6: #{forward.1} parent=0 // loop_footer
    %s19 = sadd.s32 1, %s15
  $region7: #{forward.1} parent=0 // loop_footer_branch
    %14 = sbr.rel target = $region3
  $region8: #{forward.1} parent=0 // loop_exit
    _

</llo_original>
